<compile_context>
chip_gen: v5e
topology: v5e:2x2
jax: 0.10.0
libtpu: 0.0.40
codegen_flags: <defaults>
</compile_context>

<pallas_src>
import jax
import jax.numpy as jnp
import numpy as np
from jax import lax
from jax.experimental import pallas as pl
from jax.experimental.pallas import tpu as pltpu

EPS = 1e-5
# Fits v7x's 64 MiB physical VMEM with headroom; far below v5e/v6e's 128 MiB.
_VMEM_LIMIT = 48 * 1024 * 1024


# ---------------------------------------------------------------------------
# In-kernel helpers
# ---------------------------------------------------------------------------
def _pad_and_patch(act, pad_ref, patch_ref):
    """Zero-pad `act` by 1 pixel into pad_ref (halo-only zeroing) and build the
    im2col patch matrix: patch[h, w, k*Cin:(k+1)*Cin] = pad[h+dy, w+dx, :]."""
    Hp2, Wp2, cin = pad_ref.shape
    H, W = Hp2 - 2, Wp2 - 2
    zero_row = jnp.zeros((1, Wp2, cin), pad_ref.dtype)
    zero_col = jnp.zeros((Hp2, 1, cin), pad_ref.dtype)
    pad_ref[0:1, :, :] = zero_row            # top halo
    pad_ref[H + 1:H + 2, :, :] = zero_row    # bottom halo
    pad_ref[:, 0:1, :] = zero_col            # left halo
    pad_ref[:, W + 1:W + 2, :] = zero_col    # right halo
    pad_ref[1:H + 1, 1:W + 1, :] = act.astype(pad_ref.dtype)

    k = 0
    for dy in range(3):
        for dx in range(3):
            patch_ref[:, :, k * cin:(k + 1) * cin] = pad_ref[dy:dy + H, dx:dx + W, :]
            k += 1


def _conv3x3(patch_ref, w_ref, b_ref):
    """Single MXU matmul: (H*W, 9*Cin) @ (9*Cin, Cout), f32 accumulation + bias."""
    H, W, K = patch_ref.shape
    p = patch_ref[...].reshape(H * W, K)
    y = jnp.dot(p, w_ref[...], preferred_element_type=jnp.float32)
    return y + b_ref[...].astype(jnp.float32)            # (H*W, Cout) f32


def _store_conv_and_stats(y, y_ref, stats_ref):
    H, W, _ = y_ref.shape
    # Conv result stored in the (possibly reduced-precision) intermediate dtype;
    # BN statistics always accumulated from the f32 matmul result.
    y_ref[...] = y.reshape(H, W, -1).astype(y_ref.dtype)
    stats_ref[0:1, :] = jnp.sum(y, axis=0, keepdims=True)          # per-channel sum
    stats_ref[1:2, :] = jnp.sum(y * y, axis=0, keepdims=True)      # per-channel sumsq


# ---------------------------------------------------------------------------
# Kernels
# ---------------------------------------------------------------------------
def _conv1_kernel(x_ref, w_ref, b_ref, y_ref, stats_ref, pad_ref, patch_ref):
    _pad_and_patch(x_ref[...], pad_ref, patch_ref)
    _store_conv_and_stats(_conv3x3(patch_ref, w_ref, b_ref), y_ref, stats_ref)


def _bn_relu_conv2_kernel(y1_ref, scale_ref, shift_ref, w_ref, b_ref,
                          y_ref, stats_ref, pad_ref, patch_ref):
    # BN1 (folded scale/shift) + ReLU in f32, then conv2 + partial BN2 stats.
    a = jnp.maximum(y1_ref[...] * scale_ref[...] + shift_ref[...], 0.0)
    _pad_and_patch(a, pad_ref, patch_ref)
    _store_conv_and_stats(_conv3x3(patch_ref, w_ref, b_ref), y_ref, stats_ref)


def _bn_relu_kernel(y_ref, scale_ref, shift_ref, o_ref):
    # Lane-dense elementwise BN2 + ReLU on a (H, W*Cout) slab.
    o_ref[...] = jnp.maximum(y_ref[...] * scale_ref[...] + shift_ref[...], 0.0)


# ---------------------------------------------------------------------------
# Wrapper
# ---------------------------------------------------------------------------
def conv_block_forward(x_nchw, params, *, compute_dtype=jnp.bfloat16):
    """x_nchw: (N, Cin, H, W) f32.  Returns (N, Cout, H, W) f32 (PyTorch train-mode BN)."""
    # NCHW <-> NHWC only at the boundary to match nn.Conv2d; drop these transposes if
    # the surrounding model can consume NHWC directly.
    x = jnp.transpose(x_nchw, (0, 2, 3, 1)).astype(jnp.float32)
    N, H, W, Cin = x.shape
    Cout = params["w1"].shape[0]
    cnt = float(N * H * W)
    inter_dtype = compute_dtype                        # dtype of y1/y2 in HBM
    isz = jnp.dtype(inter_dtype).itemsize

    def prep_w(w):   # OIHW (Cout, Cin, 3, 3) -> (9*Cin, Cout), row = (ky*3+kx)*Cin + ci
        ci, co = w.shape[1], w.shape[0]
        return jnp.transpose(w, (2, 3, 1, 0)).reshape(9 * ci, co).astype(compute_dtype)

    def row(v):
        return v.reshape(1, -1).astype(jnp.float32)

    w1p, w2p = prep_w(params["w1"]), prep_w(params["w2"])
    b1r, b2r = row(params["b1"]), row(params["b2"])

    compiler_params = pltpu.CompilerParams(
        dimension_semantics=("parallel",),        # batch axis sharded across TCs on v7x
        vmem_limit_bytes=_VMEM_LIMIT,
    )

    def bn_affine(stats, gamma, beta):
        tot = jnp.sum(stats, axis=0)                       # (2, C) f32
        mean = tot[0] / cnt
        var = tot[1] / cnt - mean * mean                   # biased variance (train mode)
        scale = gamma.astype(jnp.float32) * lax.rsqrt(var + EPS)
        shift = beta.astype(jnp.float32) - mean * scale
        return scale, shift

    # ---------------- Pass 1: conv1 + partial BN1 stats ----------------
    cost1 = pl.CostEstimate(
        flops=2 * N * H * W * 9 * Cin * Cout,
        transcendentals=0,
        bytes_accessed=4 * N * H * W * Cin + isz * N * H * W * Cout + 4 * N * 2 * Cout)
    y1, st1 = pl.pallas_call(
        _conv1_kernel,
        out_shape=(jax.ShapeDtypeStruct((N, H, W, Cout), inter_dtype),
                   jax.ShapeDtypeStruct((N, 2, Cout), jnp.float32)),
        grid_spec=pltpu.PrefetchScalarGridSpec(
            num_scalar_prefetch=0,
            grid=(N,),
            in_specs=[
                pl.BlockSpec((None, H, W, Cin), lambda n: (n, 0, 0, 0)),
                pl.BlockSpec((9 * Cin, Cout), lambda n: (0, 0)),
                pl.BlockSpec((1, Cout), lambda n: (0, 0)),
            ],
            out_specs=(
                pl.BlockSpec((None, H, W, Cout), lambda n: (n, 0, 0, 0)),
                pl.BlockSpec((None, 2, Cout), lambda n: (n, 0, 0)),
            ),
            scratch_shapes=[
                pltpu.VMEM((H + 2, W + 2, Cin), compute_dtype),      # padded activations
                pltpu.VMEM((H, W, 9 * Cin), compute_dtype),          # im2col patches
            ]),
        compiler_params=compiler_params,
        cost_estimate=cost1,
    )(x, w1p, b1r)

    s1, t1 = bn_affine(st1, params["g1"], params["bt1"])

    # ---------------- Pass 2: BN1+ReLU + conv2 + partial BN2 stats ----------------
    cost2 = pl.CostEstimate(
        flops=2 * N * H * W * 9 * Cout * Cout,
        transcendentals=0,
        bytes_accessed=2 * isz * N * H * W * Cout + 4 * N * 2 * Cout)
    y2, st2 = pl.pallas_call(
        _bn_relu_conv2_kernel,
        out_shape=(jax.ShapeDtypeStruct((N, H, W, Cout), inter_dtype),
                   jax.ShapeDtypeStruct((N, 2, Cout), jnp.float32)),
        grid_spec=pltpu.PrefetchScalarGridSpec(
            num_scalar_prefetch=0,
            grid=(N,),
            in_specs=[
                pl.BlockSpec((None, H, W, Cout), lambda n: (n, 0, 0, 0)),
                pl.BlockSpec((1, 1, Cout), lambda n: (0, 0, 0)),
                pl.BlockSpec((1, 1, Cout), lambda n: (0, 0, 0)),
                pl.BlockSpec((9 * Cout, Cout), lambda n: (0, 0)),
                pl.BlockSpec((1, Cout), lambda n: (0, 0)),
            ],
            out_specs=(
                pl.BlockSpec((None, H, W, Cout), lambda n: (n, 0, 0, 0)),
                pl.BlockSpec((None, 2, Cout), lambda n: (n, 0, 0)),
            ),
            scratch_shapes=[
                pltpu.VMEM((H + 2, W + 2, Cout), compute_dtype),
                pltpu.VMEM((H, W, 9 * Cout), compute_dtype),
            ]),
        compiler_params=compiler_params,
        cost_estimate=cost2,
    )(y1, s1.reshape(1, 1, Cout), t1.reshape(1, 1, Cout), w2p, b2r)

    s2, t2 = bn_affine(st2, params["g2"], params["bt2"])

    # ---------------- Pass 3: BN2 + ReLU (lane-dense elementwise) ----------------
    y2_flat = y2.reshape(N, H, W * Cout)                       # free collapse of trailing dims
    scale2 = jnp.tile(s2.reshape(1, Cout), (1, W))             # (1, W*Cout)
    shift2 = jnp.tile(t2.reshape(1, Cout), (1, W))
    out = pl.pallas_call(
        _bn_relu_kernel,
        out_shape=jax.ShapeDtypeStruct((N, H, W * Cout), jnp.float32),
        grid_spec=pltpu.PrefetchScalarGridSpec(
            num_scalar_prefetch=0,
            grid=(N,),
            in_specs=[
                pl.BlockSpec((None, H, W * Cout), lambda n: (n, 0, 0)),
                pl.BlockSpec((1, W * Cout), lambda n: (0, 0)),
                pl.BlockSpec((1, W * Cout), lambda n: (0, 0)),
            ],
            out_specs=pl.BlockSpec((None, H, W * Cout), lambda n: (n, 0, 0)),
        ),
        compiler_params=compiler_params,
    )(y2_flat, scale2, shift2)

    out = out.reshape(N, H, W, Cout)
    return jnp.transpose(out, (0, 3, 1, 2))                    # back to NCHW


# ---------------------------------------------------------------------------
# Pure-JAX reference (NCHW) mirroring the PyTorch module in train() mode
# ---------------------------------------------------------------------------
def conv_block_reference(x, p):
    def conv(x, w, b):
        y = lax.conv_general_dilated(
            x, w, window_strides=(1, 1), padding=((1, 1), (1, 1)),
            dimension_numbers=("NCHW", "OIHW", "NCHW"))
        return y + b[None, :, None, None]

    def bn_relu(y, g, bt):
        mean = jnp.mean(y, axis=(0, 2, 3), keepdims=True)
        var = jnp.mean((y - mean) ** 2, axis=(0, 2, 3), keepdims=True)
        yn = (y - mean) / jnp.sqrt(var + EPS)
        yn = yn * g[None, :, None, None] + bt[None, :, None, None]
        return jnp.maximum(yn, 0.0)

    y = bn_relu(conv(x, p["w1"], p["b1"]), p["g1"], p["bt1"])
    y = bn_relu(conv(y, p["w2"], p["b2"]), p["g2"], p["bt2"])
    return y


if __name__ == "__main__":
    key = jax.random.PRNGKey(0)
    N, Cin, Cout, H, W = 2, 4, 8, 16, 16

    ks = jax.random.split(key, 9)
    params = {
        "w1": jax.random.normal(ks[0], (Cout, Cin, 3, 3), jnp.float32) * 0.1,
        "b1": jax.random.normal(ks[1], (Cout,), jnp.float32) * 0.1,
        "g1": 1.0 + 0.1 * jax.random.normal(ks[2], (Cout,), jnp.float32),
        "bt1": 0.1 * jax.random.normal(ks[3], (Cout,), jnp.float32),
        "w2": jax.random.normal(ks[4], (Cout, Cout, 3, 3), jnp.float32) * 0.1,
        "b2": jax.random.normal(ks[5], (Cout,), jnp.float32) * 0.1,
        "g2": 1.0 + 0.1 * jax.random.normal(ks[6], (Cout,), jnp.float32),
        "bt2": 0.1 * jax.random.normal(ks[7], (Cout,), jnp.float32),
    }
    x = jax.random.normal(ks[8], (N, Cin, H, W), jnp.float32)

    ref = jax.block_until_ready(conv_block_reference(x, params))
    fwd = jax.jit(conv_block_forward, static_argnames=("compute_dtype",))

    # f32 path (f32 intermediates + f32 MXU operands): validates semantics at tight tolerance.
    out_f32 = jax.block_until_ready(fwd(x, params, compute_dtype=jnp.float32))
    assert out_f32.shape == (N, Cout, H, W), out_f32.shape
    np.testing.assert_allclose(np.asarray(out_f32), np.asarray(ref), rtol=2e-3, atol=2e-3)

    # bf16 MXU operands + bf16 intermediates (f32 accumulation + f32 BN math): looser tolerance.
    out_bf16 = jax.block_until_ready(fwd(x, params, compute_dtype=jnp.bfloat16))
    np.testing.assert_allclose(np.asarray(out_bf16), np.asarray(ref), rtol=3e-2, atol=3e-2)

    print("KERNEL_OK")
</pallas_src>

<mosaic_0001>
module attributes {stable_mosaic.version = 11 : i64} {
  func.func @_conv1_kernel(%arg0: i32, %arg1: memref<1x16x16x4xf32, #tpu.memory_space<vmem>>, %arg2: memref<36x8xf32, #tpu.memory_space<vmem>>, %arg3: memref<1x8xf32, #tpu.memory_space<vmem>>, %arg4: memref<1x16x16x8xf32, #tpu.memory_space<vmem>>, %arg5: memref<1x2x8xf32, #tpu.memory_space<vmem>>, %arg6: memref<18x18x4xf32, #tpu.memory_space<vmem>>, %arg7: memref<16x16x36xf32, #tpu.memory_space<vmem>>) attributes {dimension_semantics = [#tpu.dimension_semantics<parallel>], iteration_bounds = array<i64: 2>, scalar_prefetch = 0 : i64, scratch_operands = 2 : i64, tpu.core_type = #tpu.core_type<tc>, window_params = [{transform_indices = @transform_0, window_bounds = array<i64: 1, 16, 16, 4>}, {pipeline_mode = #tpu.pipeline_mode<synchronous>, transform_indices = @transform_1, window_bounds = array<i64: 36, 8>}, {pipeline_mode = #tpu.pipeline_mode<synchronous>, transform_indices = @transform_2, window_bounds = array<i64: 1, 8>}, {transform_indices = @transform_3, window_bounds = array<i64: 1, 16, 16, 8>}, {transform_indices = @transform_4, window_bounds = array<i64: 1, 2, 8>}]} {
    %c0 = arith.constant 0 : index
    %c0_0 = arith.constant 0 : index
    %c0_1 = arith.constant 0 : index
    %c0_2 = arith.constant 0 : index
    %0 = vector.load %arg1[%c0, %c0_0, %c0_1, %c0_2] : memref<1x16x16x4xf32, #tpu.memory_space<vmem>>, vector<1x16x16x4xf32>
    %1 = vector.shape_cast %0 : vector<1x16x16x4xf32> to vector<16x16x4xf32>
    %cst = arith.constant 0.000000e+00 : f32
    %2 = vector.broadcast %cst : f32 to vector<1x18x4xf32>
    %cst_3 = arith.constant 0.000000e+00 : f32
    %3 = vector.broadcast %cst_3 : f32 to vector<18x1x4xf32>
    %c0_4 = arith.constant 0 : index
    %c0_5 = arith.constant 0 : index
    %c0_6 = arith.constant 0 : index
    %4 = vector.load %arg6[%c0_4, %c0_5, %c0_6] : memref<18x18x4xf32, #tpu.memory_space<vmem>>, vector<1x18x4xf32>
    tpu.vector_store %arg6[%c0_4, %c0_5, %c0_6], %2 {strides = array<i32>} : memref<18x18x4xf32, #tpu.memory_space<vmem>>, vector<1x18x4xf32>,
    %c17 = arith.constant 17 : index
    %c0_7 = arith.constant 0 : index
    %c0_8 = arith.constant 0 : index
    %5 = vector.load %arg6[%c17, %c0_7, %c0_8] : memref<18x18x4xf32, #tpu.memory_space<vmem>>, vector<1x18x4xf32>
    tpu.vector_store %arg6[%c17, %c0_7, %c0_8], %2 {strides = array<i32>} : memref<18x18x4xf32, #tpu.memory_space<vmem>>, vector<1x18x4xf32>,
    %c0_9 = arith.constant 0 : index
    %c0_10 = arith.constant 0 : index
    %c0_11 = arith.constant 0 : index
    %6 = vector.load %arg6[%c0_9, %c0_10, %c0_11] : memref<18x18x4xf32, #tpu.memory_space<vmem>>, vector<18x1x4xf32>
    tpu.vector_store %arg6[%c0_9, %c0_10, %c0_11], %3 {strides = array<i32>} : memref<18x18x4xf32, #tpu.memory_space<vmem>>, vector<18x1x4xf32>,
    %c0_12 = arith.constant 0 : index
    %c17_13 = arith.constant 17 : index
    %c0_14 = arith.constant 0 : index
    %7 = vector.load %arg6[%c0_12, %c17_13, %c0_14] : memref<18x18x4xf32, #tpu.memory_space<vmem>>, vector<18x1x4xf32>
    tpu.vector_store %arg6[%c0_12, %c17_13, %c0_14], %3 {strides = array<i32>} : memref<18x18x4xf32, #tpu.memory_space<vmem>>, vector<18x1x4xf32>,
    %c1 = arith.constant 1 : index
    %c1_15 = arith.constant 1 : index
    %c0_16 = arith.constant 0 : index
    %8 = vector.load %arg6[%c1, %c1_15, %c0_16] : memref<18x18x4xf32, #tpu.memory_space<vmem>>, vector<16x16x4xf32>
    tpu.vector_store %arg6[%c1, %c1_15, %c0_16], %1 {strides = array<i32>} : memref<18x18x4xf32, #tpu.memory_space<vmem>>, vector<16x16x4xf32>,
    %c0_17 = arith.constant 0 : index
    %c0_18 = arith.constant 0 : index
    %c0_19 = arith.constant 0 : index
    %9 = vector.load %arg6[%c0_17, %c0_18, %c0_19] : memref<18x18x4xf32, #tpu.memory_space<vmem>>, vector<16x16x4xf32>
    %c0_20 = arith.constant 0 : index
    %c0_21 = arith.constant 0 : index
    %c0_22 = arith.constant 0 : index
    %10 = vector.load %arg7[%c0_20, %c0_21, %c0_22] : memref<16x16x36xf32, #tpu.memory_space<vmem>>, vector<16x16x4xf32>
    tpu.vector_store %arg7[%c0_20, %c0_21, %c0_22], %9 {strides = array<i32>} : memref<16x16x36xf32, #tpu.memory_space<vmem>>, vector<16x16x4xf32>,
    %c0_23 = arith.constant 0 : index
    %c1_24 = arith.constant 1 : index
    %c0_25 = arith.constant 0 : index
    %11 = vector.load %arg6[%c0_23, %c1_24, %c0_25] : memref<18x18x4xf32, #tpu.memory_space<vmem>>, vector<16x16x4xf32>
    %c0_26 = arith.constant 0 : index
    %c0_27 = arith.constant 0 : index
    %c4 = arith.constant 4 : index
    %12 = vector.load %arg7[%c0_26, %c0_27, %c4] : memref<16x16x36xf32, #tpu.memory_space<vmem>>, vector<16x16x4xf32>
    tpu.vector_store %arg7[%c0_26, %c0_27, %c4], %11 {strides = array<i32>} : memref<16x16x36xf32, #tpu.memory_space<vmem>>, vector<16x16x4xf32>,
    %c0_28 = arith.constant 0 : index
    %c2 = arith.constant 2 : index
    %c0_29 = arith.constant 0 : index
    %13 = vector.load %arg6[%c0_28, %c2, %c0_29] : memref<18x18x4xf32, #tpu.memory_space<vmem>>, vector<16x16x4xf32>
    %c0_30 = arith.constant 0 : index
    %c0_31 = arith.constant 0 : index
    %c8 = arith.constant 8 : index
    %14 = vector.load %arg7[%c0_30, %c0_31, %c8] : memref<16x16x36xf32, #tpu.memory_space<vmem>>, vector<16x16x4xf32>
    tpu.vector_store %arg7[%c0_30, %c0_31, %c8], %13 {strides = array<i32>} : memref<16x16x36xf32, #tpu.memory_space<vmem>>, vector<16x16x4xf32>,
    %c1_32 = arith.constant 1 : index
    %c0_33 = arith.constant 0 : index
    %c0_34 = arith.constant 0 : index
    %15 = vector.load %arg6[%c1_32, %c0_33, %c0_34] : memref<18x18x4xf32, #tpu.memory_space<vmem>>, vector<16x16x4xf32>
    %c0_35 = arith.constant 0 : index
    %c0_36 = arith.constant 0 : index
    %c12 = arith.constant 12 : index
    %16 = vector.load %arg7[%c0_35, %c0_36, %c12] : memref<16x16x36xf32, #tpu.memory_space<vmem>>, vector<16x16x4xf32>
    tpu.vector_store %arg7[%c0_35, %c0_36, %c12], %15 {strides = array<i32>} : memref<16x16x36xf32, #tpu.memory_space<vmem>>, vector<16x16x4xf32>,
    %c1_37 = arith.constant 1 : index
    %c1_38 = arith.constant 1 : index
    %c0_39 = arith.constant 0 : index
    %17 = vector.load %arg6[%c1_37, %c1_38, %c0_39] : memref<18x18x4xf32, #tpu.memory_space<vmem>>, vector<16x16x4xf32>
    %c0_40 = arith.constant 0 : index
    %c0_41 = arith.constant 0 : index
    %c16 = arith.constant 16 : index
    %18 = vector.load %arg7[%c0_40, %c0_41, %c16] : memref<16x16x36xf32, #tpu.memory_space<vmem>>, vector<16x16x4xf32>
    tpu.vector_store %arg7[%c0_40, %c0_41, %c16], %17 {strides = array<i32>} : memref<16x16x36xf32, #tpu.memory_space<vmem>>, vector<16x16x4xf32>,
    %c1_42 = arith.constant 1 : index
    %c2_43 = arith.constant 2 : index
    %c0_44 = arith.constant 0 : index
    %19 = vector.load %arg6[%c1_42, %c2_43, %c0_44] : memref<18x18x4xf32, #tpu.memory_space<vmem>>, vector<16x16x4xf32>
    %c0_45 = arith.constant 0 : index
    %c0_46 = arith.constant 0 : index
    %c20 = arith.constant 20 : index
    %20 = vector.load %arg7[%c0_45, %c0_46, %c20] : memref<16x16x36xf32, #tpu.memory_space<vmem>>, vector<16x16x4xf32>
    tpu.vector_store %arg7[%c0_45, %c0_46, %c20], %19 {strides = array<i32>} : memref<16x16x36xf32, #tpu.memory_space<vmem>>, vector<16x16x4xf32>,
    %c2_47 = arith.constant 2 : index
    %c0_48 = arith.constant 0 : index
    %c0_49 = arith.constant 0 : index
    %21 = vector.load %arg6[%c2_47, %c0_48, %c0_49] : memref<18x18x4xf32, #tpu.memory_space<vmem>>, vector<16x16x4xf32>
    %c0_50 = arith.constant 0 : index
    %c0_51 = arith.constant 0 : index
    %c24 = arith.constant 24 : index
    %22 = vector.load %arg7[%c0_50, %c0_51, %c24] : memref<16x16x36xf32, #tpu.memory_space<vmem>>, vector<16x16x4xf32>
    tpu.vector_store %arg7[%c0_50, %c0_51, %c24], %21 {strides = array<i32>} : memref<16x16x36xf32, #tpu.memory_space<vmem>>, vector<16x16x4xf32>,
    %c2_52 = arith.constant 2 : index
    %c1_53 = arith.constant 1 : index
    %c0_54 = arith.constant 0 : index
    %23 = vector.load %arg6[%c2_52, %c1_53, %c0_54] : memref<18x18x4xf32, #tpu.memory_space<vmem>>, vector<16x16x4xf32>
    %c0_55 = arith.constant 0 : index
    %c0_56 = arith.constant 0 : index
    %c28 = arith.constant 28 : index
    %24 = vector.load %arg7[%c0_55, %c0_56, %c28] : memref<16x16x36xf32, #tpu.memory_space<vmem>>, vector<16x16x4xf32>
    tpu.vector_store %arg7[%c0_55, %c0_56, %c28], %23 {strides = array<i32>} : memref<16x16x36xf32, #tpu.memory_space<vmem>>, vector<16x16x4xf32>,
    %c2_57 = arith.constant 2 : index
    %c2_58 = arith.constant 2 : index
    %c0_59 = arith.constant 0 : index
    %25 = vector.load %arg6[%c2_57, %c2_58, %c0_59] : memref<18x18x4xf32, #tpu.memory_space<vmem>>, vector<16x16x4xf32>
    %c0_60 = arith.constant 0 : index
    %c0_61 = arith.constant 0 : index
    %c32 = arith.constant 32 : index
    %26 = vector.load %arg7[%c0_60, %c0_61, %c32] : memref<16x16x36xf32, #tpu.memory_space<vmem>>, vector<16x16x4xf32>
    tpu.vector_store %arg7[%c0_60, %c0_61, %c32], %25 {strides = array<i32>} : memref<16x16x36xf32, #tpu.memory_space<vmem>>, vector<16x16x4xf32>,
    %c0_62 = arith.constant 0 : index
    %c0_63 = arith.constant 0 : index
    %c0_64 = arith.constant 0 : index
    %27 = vector.load %arg7[%c0_62, %c0_63, %c0_64] : memref<16x16x36xf32, #tpu.memory_space<vmem>>, vector<16x16x36xf32>
    %28 = vector.shape_cast %27 : vector<16x16x36xf32> to vector<256x36xf32>
    %c0_65 = arith.constant 0 : index
    %c0_66 = arith.constant 0 : index
    %29 = vector.load %arg2[%c0_65, %c0_66] : memref<36x8xf32, #tpu.memory_space<vmem>>, vector<36x8xf32>
    %cst_67 = arith.constant dense<0.000000e+00> : vector<256x8xf32>
    %30 = tpu.matmul %28, %29, %cst_67 {dimension_numbers = #tpu.dot_dimension_numbers<[1], [0], [0], [1], [0, 0, 1, 1], [], []>} : vector<256x36xf32>, vector<36x8xf32>, vector<256x8xf32> -> vector<256x8xf32>
    %c0_68 = arith.constant 0 : index
    %c0_69 = arith.constant 0 : index
    %31 = vector.load %arg3[%c0_68, %c0_69] : memref<1x8xf32, #tpu.memory_space<vmem>>, vector<1x8xf32>
    %32 = vector.broadcast %31 : vector<1x8xf32> to vector<256x8xf32>
    %33 = arith.addf %30, %32 : vector<256x8xf32>
    %34 = vector.shape_cast %33 : vector<256x8xf32> to vector<16x16x8xf32>
    %c0_70 = arith.constant 0 : index
    %c0_71 = arith.constant 0 : index
    %c0_72 = arith.constant 0 : index
    %c0_73 = arith.constant 0 : index
    %35 = vector.load %arg4[%c0_70, %c0_71, %c0_72, %c0_73] : memref<1x16x16x8xf32, #tpu.memory_space<vmem>>, vector<1x16x16x8xf32>
    %36 = vector.shape_cast %35 : vector<1x16x16x8xf32> to vector<16x16x8xf32>
    %37 = vector.shape_cast %34 : vector<16x16x8xf32> to vector<1x16x16x8xf32>
    tpu.vector_store %arg4[%c0_70, %c0_71, %c0_72, %c0_73], %37 {strides = array<i32>} : memref<1x16x16x8xf32, #tpu.memory_space<vmem>>, vector<1x16x16x8xf32>,
    %cst_74 = arith.constant dense<0.000000e+00> : vector<8xf32>
    %38 = vector.multi_reduction <add>, %33, %cst_74 [0] : vector<256x8xf32> to vector<8xf32>
    %39 = vector.shape_cast %38 : vector<8xf32> to vector<1x8xf32>
    %c0_75 = arith.constant 0 : index
    %c0_76 = arith.constant 0 : index
    %c0_77 = arith.constant 0 : index
    %40 = vector.load %arg5[%c0_75, %c0_76, %c0_77] : memref<1x2x8xf32, #tpu.memory_space<vmem>>, vector<1x1x8xf32>
    %41 = vector.shape_cast %40 : vector<1x1x8xf32> to vector<1x8xf32>
    %42 = vector.shape_cast %39 : vector<1x8xf32> to vector<1x1x8xf32>
    tpu.vector_store %arg5[%c0_75, %c0_76, %c0_77], %42 {strides = array<i32>} : memref<1x2x8xf32, #tpu.memory_space<vmem>>, vector<1x1x8xf32>,
    %43 = arith.mulf %33, %33 : vector<256x8xf32>
    %cst_78 = arith.constant dense<0.000000e+00> : vector<8xf32>
    %44 = vector.multi_reduction <add>, %43, %cst_78 [0] : vector<256x8xf32> to vector<8xf32>
    %45 = vector.shape_cast %44 : vector<8xf32> to vector<1x8xf32>
    %c0_79 = arith.constant 0 : index
    %c1_80 = arith.constant 1 : index
    %c0_81 = arith.constant 0 : index
    %46 = vector.load %arg5[%c0_79, %c1_80, %c0_81] : memref<1x2x8xf32, #tpu.memory_space<vmem>>, vector<1x1x8xf32>
    %47 = vector.shape_cast %46 : vector<1x1x8xf32> to vector<1x8xf32>
    %48 = vector.shape_cast %45 : vector<1x8xf32> to vector<1x1x8xf32>
    tpu.vector_store %arg5[%c0_79, %c1_80, %c0_81], %48 {strides = array<i32>} : memref<1x2x8xf32, #tpu.memory_space<vmem>>, vector<1x1x8xf32>,
    return
  }
  func.func @transform_0(%arg0: i32) -> (i32, i32, i32, i32) {
    %c0_i32 = arith.constant 0 : i32
    %c0_i32_0 = arith.constant 0 : i32
    %c0_i32_1 = arith.constant 0 : i32
    %c0_i32_2 = arith.constant 0 : i32
    return %arg0, %c0_i32, %c0_i32_0, %c0_i32_1 : i32, i32, i32, i32
  }
  func.func @transform_1(%arg0: i32) -> (i32, i32) {
    %c0_i32 = arith.constant 0 : i32
    %c0_i32_0 = arith.constant 0 : i32
    %c0_i32_1 = arith.constant 0 : i32
    return %c0_i32, %c0_i32_0 : i32, i32
  }
  func.func @transform_2(%arg0: i32) -> (i32, i32) {
    %c0_i32 = arith.constant 0 : i32
    %c0_i32_0 = arith.constant 0 : i32
    %c0_i32_1 = arith.constant 0 : i32
    return %c0_i32, %c0_i32_0 : i32, i32
  }
  func.func @transform_3(%arg0: i32) -> (i32, i32, i32, i32) {
    %c0_i32 = arith.constant 0 : i32
    %c0_i32_0 = arith.constant 0 : i32
    %c0_i32_1 = arith.constant 0 : i32
    %c0_i32_2 = arith.constant 0 : i32
    return %arg0, %c0_i32, %c0_i32_0, %c0_i32_1 : i32, i32, i32, i32
  }
  func.func @transform_4(%arg0: i32) -> (i32, i32, i32) {
    %c0_i32 = arith.constant 0 : i32
    %c0_i32_0 = arith.constant 0 : i32
    %c0_i32_1 = arith.constant 0 : i32
    return %arg0, %c0_i32, %c0_i32_0 : i32, i32, i32
  }
}

module attributes {stable_mosaic.version = 11 : i64} {
  func.func @_bn_relu_conv2_kernel(%arg0: i32, %arg1: memref<1x16x16x8xf32, #tpu.memory_space<vmem>>, %arg2: memref<1x1x8xf32, #tpu.memory_space<vmem>>, %arg3: memref<1x1x8xf32, #tpu.memory_space<vmem>>, %arg4: memref<72x8xf32, #tpu.memory_space<vmem>>, %arg5: memref<1x8xf32, #tpu.memory_space<vmem>>, %arg6: memref<1x16x16x8xf32, #tpu.memory_space<vmem>>, %arg7: memref<1x2x8xf32, #tpu.memory_space<vmem>>, %arg8: memref<18x18x8xf32, #tpu.memory_space<vmem>>, %arg9: memref<16x16x72xf32, #tpu.memory_space<vmem>>) attributes {dimension_semantics = [#tpu.dimension_semantics<parallel>], iteration_bounds = array<i64: 2>, scalar_prefetch = 0 : i64, scratch_operands = 2 : i64, tpu.core_type = #tpu.core_type<tc>, window_params = [{transform_indices = @transform_0, window_bounds = array<i64: 1, 16, 16, 8>}, {pipeline_mode = #tpu.pipeline_mode<synchronous>, transform_indices = @transform_1, window_bounds = array<i64: 1, 1, 8>}, {pipeline_mode = #tpu.pipeline_mode<synchronous>, transform_indices = @transform_2, window_bounds = array<i64: 1, 1, 8>}, {pipeline_mode = #tpu.pipeline_mode<synchronous>, transform_indices = @transform_3, window_bounds = array<i64: 72, 8>}, {pipeline_mode = #tpu.pipeline_mode<synchronous>, transform_indices = @transform_4, window_bounds = array<i64: 1, 8>}, {transform_indices = @transform_5, window_bounds = array<i64: 1, 16, 16, 8>}, {transform_indices = @transform_6, window_bounds = array<i64: 1, 2, 8>}]} {
    %c0 = arith.constant 0 : index
    %c0_0 = arith.constant 0 : index
    %c0_1 = arith.constant 0 : index
    %c0_2 = arith.constant 0 : index
    %0 = vector.load %arg1[%c0, %c0_0, %c0_1, %c0_2] : memref<1x16x16x8xf32, #tpu.memory_space<vmem>>, vector<1x16x16x8xf32>
    %1 = vector.shape_cast %0 : vector<1x16x16x8xf32> to vector<16x16x8xf32>
    %c0_3 = arith.constant 0 : index
    %c0_4 = arith.constant 0 : index
    %c0_5 = arith.constant 0 : index
    %2 = vector.load %arg2[%c0_3, %c0_4, %c0_5] : memref<1x1x8xf32, #tpu.memory_space<vmem>>, vector<1x1x8xf32>
    %3 = vector.broadcast %2 : vector<1x1x8xf32> to vector<16x16x8xf32>
    %4 = arith.mulf %1, %3 : vector<16x16x8xf32>
    %c0_6 = arith.constant 0 : index
    %c0_7 = arith.constant 0 : index
    %c0_8 = arith.constant 0 : index
    %5 = vector.load %arg3[%c0_6, %c0_7, %c0_8] : memref<1x1x8xf32, #tpu.memory_space<vmem>>, vector<1x1x8xf32>
    %6 = vector.broadcast %5 : vector<1x1x8xf32> to vector<16x16x8xf32>
    %7 = arith.addf %4, %6 : vector<16x16x8xf32>
    %cst = arith.constant 0.000000e+00 : f32
    %8 = vector.broadcast %cst : f32 to vector<16x16x8xf32>
    %9 = arith.maximumf %7, %8 : vector<16x16x8xf32>
    %cst_9 = arith.constant 0.000000e+00 : f32
    %10 = vector.broadcast %cst_9 : f32 to vector<1x18x8xf32>
    %cst_10 = arith.constant 0.000000e+00 : f32
    %11 = vector.broadcast %cst_10 : f32 to vector<18x1x8xf32>
    %c0_11 = arith.constant 0 : index
    %c0_12 = arith.constant 0 : index
    %c0_13 = arith.constant 0 : index
    %12 = vector.load %arg8[%c0_11, %c0_12, %c0_13] : memref<18x18x8xf32, #tpu.memory_space<vmem>>, vector<1x18x8xf32>
    tpu.vector_store %arg8[%c0_11, %c0_12, %c0_13], %10 {strides = array<i32>} : memref<18x18x8xf32, #tpu.memory_space<vmem>>, vector<1x18x8xf32>,
    %c17 = arith.constant 17 : index
    %c0_14 = arith.constant 0 : index
    %c0_15 = arith.constant 0 : index
    %13 = vector.load %arg8[%c17, %c0_14, %c0_15] : memref<18x18x8xf32, #tpu.memory_space<vmem>>, vector<1x18x8xf32>
    tpu.vector_store %arg8[%c17, %c0_14, %c0_15], %10 {strides = array<i32>} : memref<18x18x8xf32, #tpu.memory_space<vmem>>, vector<1x18x8xf32>,
    %c0_16 = arith.constant 0 : index
    %c0_17 = arith.constant 0 : index
    %c0_18 = arith.constant 0 : index
    %14 = vector.load %arg8[%c0_16, %c0_17, %c0_18] : memref<18x18x8xf32, #tpu.memory_space<vmem>>, vector<18x1x8xf32>
    tpu.vector_store %arg8[%c0_16, %c0_17, %c0_18], %11 {strides = array<i32>} : memref<18x18x8xf32, #tpu.memory_space<vmem>>, vector<18x1x8xf32>,
    %c0_19 = arith.constant 0 : index
    %c17_20 = arith.constant 17 : index
    %c0_21 = arith.constant 0 : index
    %15 = vector.load %arg8[%c0_19, %c17_20, %c0_21] : memref<18x18x8xf32, #tpu.memory_space<vmem>>, vector<18x1x8xf32>
    tpu.vector_store %arg8[%c0_19, %c17_20, %c0_21], %11 {strides = array<i32>} : memref<18x18x8xf32, #tpu.memory_space<vmem>>, vector<18x1x8xf32>,
    %c1 = arith.constant 1 : index
    %c1_22 = arith.constant 1 : index
    %c0_23 = arith.constant 0 : index
    %16 = vector.load %arg8[%c1, %c1_22, %c0_23] : memref<18x18x8xf32, #tpu.memory_space<vmem>>, vector<16x16x8xf32>
    tpu.vector_store %arg8[%c1, %c1_22, %c0_23], %9 {strides = array<i32>} : memref<18x18x8xf32, #tpu.memory_space<vmem>>, vector<16x16x8xf32>,
    %c0_24 = arith.constant 0 : index
    %c0_25 = arith.constant 0 : index
    %c0_26 = arith.constant 0 : index
    %17 = vector.load %arg8[%c0_24, %c0_25, %c0_26] : memref<18x18x8xf32, #tpu.memory_space<vmem>>, vector<16x16x8xf32>
    %c0_27 = arith.constant 0 : index
    %c0_28 = arith.constant 0 : index
    %c0_29 = arith.constant 0 : index
    %18 = vector.load %arg9[%c0_27, %c0_28, %c0_29] : memref<16x16x72xf32, #tpu.memory_space<vmem>>, vector<16x16x8xf32>
    tpu.vector_store %arg9[%c0_27, %c0_28, %c0_29], %17 {strides = array<i32>} : memref<16x16x72xf32, #tpu.memory_space<vmem>>, vector<16x16x8xf32>,
    %c0_30 = arith.constant 0 : index
    %c1_31 = arith.constant 1 : index
    %c0_32 = arith.constant 0 : index
    %19 = vector.load %arg8[%c0_30, %c1_31, %c0_32] : memref<18x18x8xf32, #tpu.memory_space<vmem>>, vector<16x16x8xf32>
    %c0_33 = arith.constant 0 : index
    %c0_34 = arith.constant 0 : index
    %c8 = arith.constant 8 : index
    %20 = vector.load %arg9[%c0_33, %c0_34, %c8] : memref<16x16x72xf32, #tpu.memory_space<vmem>>, vector<16x16x8xf32>
    tpu.vector_store %arg9[%c0_33, %c0_34, %c8], %19 {strides = array<i32>} : memref<16x16x72xf32, #tpu.memory_space<vmem>>, vector<16x16x8xf32>,
    %c0_35 = arith.constant 0 : index
    %c2 = arith.constant 2 : index
    %c0_36 = arith.constant 0 : index
    %21 = vector.load %arg8[%c0_35, %c2, %c0_36] : memref<18x18x8xf32, #tpu.memory_space<vmem>>, vector<16x16x8xf32>
    %c0_37 = arith.constant 0 : index
    %c0_38 = arith.constant 0 : index
    %c16 = arith.constant 16 : index
    %22 = vector.load %arg9[%c0_37, %c0_38, %c16] : memref<16x16x72xf32, #tpu.memory_space<vmem>>, vector<16x16x8xf32>
    tpu.vector_store %arg9[%c0_37, %c0_38, %c16], %21 {strides = array<i32>} : memref<16x16x72xf32, #tpu.memory_space<vmem>>, vector<16x16x8xf32>,
    %c1_39 = arith.constant 1 : index
    %c0_40 = arith.constant 0 : index
    %c0_41 = arith.constant 0 : index
    %23 = vector.load %arg8[%c1_39, %c0_40, %c0_41] : memref<18x18x8xf32, #tpu.memory_space<vmem>>, vector<16x16x8xf32>
    %c0_42 = arith.constant 0 : index
    %c0_43 = arith.constant 0 : index
    %c24 = arith.constant 24 : index
    %24 = vector.load %arg9[%c0_42, %c0_43, %c24] : memref<16x16x72xf32, #tpu.memory_space<vmem>>, vector<16x16x8xf32>
    tpu.vector_store %arg9[%c0_42, %c0_43, %c24], %23 {strides = array<i32>} : memref<16x16x72xf32, #tpu.memory_space<vmem>>, vector<16x16x8xf32>,
    %c1_44 = arith.constant 1 : index
    %c1_45 = arith.constant 1 : index
    %c0_46 = arith.constant 0 : index
    %25 = vector.load %arg8[%c1_44, %c1_45, %c0_46] : memref<18x18x8xf32, #tpu.memory_space<vmem>>, vector<16x16x8xf32>
    %c0_47 = arith.constant 0 : index
    %c0_48 = arith.constant 0 : index
    %c32 = arith.constant 32 : index
    %26 = vector.load %arg9[%c0_47, %c0_48, %c32] : memref<16x16x72xf32, #tpu.memory_space<vmem>>, vector<16x16x8xf32>
    tpu.vector_store %arg9[%c0_47, %c0_48, %c32], %25 {strides = array<i32>} : memref<16x16x72xf32, #tpu.memory_space<vmem>>, vector<16x16x8xf32>,
    %c1_49 = arith.constant 1 : index
    %c2_50 = arith.constant 2 : index
    %c0_51 = arith.constant 0 : index
    %27 = vector.load %arg8[%c1_49, %c2_50, %c0_51] : memref<18x18x8xf32, #tpu.memory_space<vmem>>, vector<16x16x8xf32>
    %c0_52 = arith.constant 0 : index
    %c0_53 = arith.constant 0 : index
    %c40 = arith.constant 40 : index
    %28 = vector.load %arg9[%c0_52, %c0_53, %c40] : memref<16x16x72xf32, #tpu.memory_space<vmem>>, vector<16x16x8xf32>
    tpu.vector_store %arg9[%c0_52, %c0_53, %c40], %27 {strides = array<i32>} : memref<16x16x72xf32, #tpu.memory_space<vmem>>, vector<16x16x8xf32>,
    %c2_54 = arith.constant 2 : index
    %c0_55 = arith.constant 0 : index
    %c0_56 = arith.constant 0 : index
    %29 = vector.load %arg8[%c2_54, %c0_55, %c0_56] : memref<18x18x8xf32, #tpu.memory_space<vmem>>, vector<16x16x8xf32>
    %c0_57 = arith.constant 0 : index
    %c0_58 = arith.constant 0 : index
    %c48 = arith.constant 48 : index
    %30 = vector.load %arg9[%c0_57, %c0_58, %c48] : memref<16x16x72xf32, #tpu.memory_space<vmem>>, vector<16x16x8xf32>
    tpu.vector_store %arg9[%c0_57, %c0_58, %c48], %29 {strides = array<i32>} : memref<16x16x72xf32, #tpu.memory_space<vmem>>, vector<16x16x8xf32>,
    %c2_59 = arith.constant 2 : index
    %c1_60 = arith.constant 1 : index
    %c0_61 = arith.constant 0 : index
    %31 = vector.load %arg8[%c2_59, %c1_60, %c0_61] : memref<18x18x8xf32, #tpu.memory_space<vmem>>, vector<16x16x8xf32>
    %c0_62 = arith.constant 0 : index
    %c0_63 = arith.constant 0 : index
    %c56 = arith.constant 56 : index
    %32 = vector.load %arg9[%c0_62, %c0_63, %c56] : memref<16x16x72xf32, #tpu.memory_space<vmem>>, vector<16x16x8xf32>
    tpu.vector_store %arg9[%c0_62, %c0_63, %c56], %31 {strides = array<i32>} : memref<16x16x72xf32, #tpu.memory_space<vmem>>, vector<16x16x8xf32>,
    %c2_64 = arith.constant 2 : index
    %c2_65 = arith.constant 2 : index
    %c0_66 = arith.constant 0 : index
    %33 = vector.load %arg8[%c2_64, %c2_65, %c0_66] : memref<18x18x8xf32, #tpu.memory_space<vmem>>, vector<16x16x8xf32>
    %c0_67 = arith.constant 0 : index
    %c0_68 = arith.constant 0 : index
    %c64 = arith.constant 64 : index
    %34 = vector.load %arg9[%c0_67, %c0_68, %c64] : memref<16x16x72xf32, #tpu.memory_space<vmem>>, vector<16x16x8xf32>
    tpu.vector_store %arg9[%c0_67, %c0_68, %c64], %33 {strides = array<i32>} : memref<16x16x72xf32, #tpu.memory_space<vmem>>, vector<16x16x8xf32>,
    %c0_69 = arith.constant 0 : index
    %c0_70 = arith.constant 0 : index
    %c0_71 = arith.constant 0 : index
    %35 = vector.load %arg9[%c0_69, %c0_70, %c0_71] : memref<16x16x72xf32, #tpu.memory_space<vmem>>, vector<16x16x72xf32>
    %36 = vector.shape_cast %35 : vector<16x16x72xf32> to vector<256x72xf32>
    %c0_72 = arith.constant 0 : index
    %c0_73 = arith.constant 0 : index
    %37 = vector.load %arg4[%c0_72, %c0_73] : memref<72x8xf32, #tpu.memory_space<vmem>>, vector<72x8xf32>
    %cst_74 = arith.constant dense<0.000000e+00> : vector<256x8xf32>
    %38 = tpu.matmul %36, %37, %cst_74 {dimension_numbers = #tpu.dot_dimension_numbers<[1], [0], [0], [1], [0, 0, 1, 1], [], []>} : vector<256x72xf32>, vector<72x8xf32>, vector<256x8xf32> -> vector<256x8xf32>
    %c0_75 = arith.constant 0 : index
    %c0_76 = arith.constant 0 : index
    %39 = vector.load %arg5[%c0_75, %c0_76] : memref<1x8xf32, #tpu.memory_space<vmem>>, vector<1x8xf32>
    %40 = vector.broadcast %39 : vector<1x8xf32> to vector<256x8xf32>
    %41 = arith.addf %38, %40 : vector<256x8xf32>
    %42 = vector.shape_cast %41 : vector<256x8xf32> to vector<16x16x8xf32>
    %c0_77 = arith.constant 0 : index
    %c0_78 = arith.constant 0 : index
    %c0_79 = arith.constant 0 : index
    %c0_80 = arith.constant 0 : index
    %43 = vector.load %arg6[%c0_77, %c0_78, %c0_79, %c0_80] : memref<1x16x16x8xf32, #tpu.memory_space<vmem>>, vector<1x16x16x8xf32>
    %44 = vector.shape_cast %43 : vector<1x16x16x8xf32> to vector<16x16x8xf32>
    %45 = vector.shape_cast %42 : vector<16x16x8xf32> to vector<1x16x16x8xf32>
    tpu.vector_store %arg6[%c0_77, %c0_78, %c0_79, %c0_80], %45 {strides = array<i32>} : memref<1x16x16x8xf32, #tpu.memory_space<vmem>>, vector<1x16x16x8xf32>,
    %cst_81 = arith.constant dense<0.000000e+00> : vector<8xf32>
    %46 = vector.multi_reduction <add>, %41, %cst_81 [0] : vector<256x8xf32> to vector<8xf32>
    %47 = vector.shape_cast %46 : vector<8xf32> to vector<1x8xf32>
    %c0_82 = arith.constant 0 : index
    %c0_83 = arith.constant 0 : index
    %c0_84 = arith.constant 0 : index
    %48 = vector.load %arg7[%c0_82, %c0_83, %c0_84] : memref<1x2x8xf32, #tpu.memory_space<vmem>>, vector<1x1x8xf32>
    %49 = vector.shape_cast %48 : vector<1x1x8xf32> to vector<1x8xf32>
    %50 = vector.shape_cast %47 : vector<1x8xf32> to vector<1x1x8xf32>
    tpu.vector_store %arg7[%c0_82, %c0_83, %c0_84], %50 {strides = array<i32>} : memref<1x2x8xf32, #tpu.memory_space<vmem>>, vector<1x1x8xf32>,
    %51 = arith.mulf %41, %41 : vector<256x8xf32>
    %cst_85 = arith.constant dense<0.000000e+00> : vector<8xf32>
    %52 = vector.multi_reduction <add>, %51, %cst_85 [0] : vector<256x8xf32> to vector<8xf32>
    %53 = vector.shape_cast %52 : vector<8xf32> to vector<1x8xf32>
    %c0_86 = arith.constant 0 : index
    %c1_87 = arith.constant 1 : index
    %c0_88 = arith.constant 0 : index
    %54 = vector.load %arg7[%c0_86, %c1_87, %c0_88] : memref<1x2x8xf32, #tpu.memory_space<vmem>>, vector<1x1x8xf32>
    %55 = vector.shape_cast %54 : vector<1x1x8xf32> to vector<1x8xf32>
    %56 = vector.shape_cast %53 : vector<1x8xf32> to vector<1x1x8xf32>
    tpu.vector_store %arg7[%c0_86, %c1_87, %c0_88], %56 {strides = array<i32>} : memref<1x2x8xf32, #tpu.memory_space<vmem>>, vector<1x1x8xf32>,
    return
  }
  func.func @transform_0(%arg0: i32) -> (i32, i32, i32, i32) {
    %c0_i32 = arith.constant 0 : i32
    %c0_i32_0 = arith.constant 0 : i32
    %c0_i32_1 = arith.constant 0 : i32
    %c0_i32_2 = arith.constant 0 : i32
    return %arg0, %c0_i32, %c0_i32_0, %c0_i32_1 : i32, i32, i32, i32
  }
  func.func @transform_1(%arg0: i32) -> (i32, i32, i32) {
    %c0_i32 = arith.constant 0 : i32
    %c0_i32_0 = arith.constant 0 : i32
    %c0_i32_1 = arith.constant 0 : i32
    %c0_i32_2 = arith.constant 0 : i32
    return %c0_i32, %c0_i32_0, %c0_i32_1 : i32, i32, i32
  }
  func.func @transform_2(%arg0: i32) -> (i32, i32, i32) {
    %c0_i32 = arith.constant 0 : i32
    %c0_i32_0 = arith.constant 0 : i32
    %c0_i32_1 = arith.constant 0 : i32
    %c0_i32_2 = arith.constant 0 : i32
    return %c0_i32, %c0_i32_0, %c0_i32_1 : i32, i32, i32
  }
  func.func @transform_3(%arg0: i32) -> (i32, i32) {
    %c0_i32 = arith.constant 0 : i32
    %c0_i32_0 = arith.constant 0 : i32
    %c0_i32_1 = arith.constant 0 : i32
    return %c0_i32, %c0_i32_0 : i32, i32
  }
  func.func @transform_4(%arg0: i32) -> (i32, i32) {
    %c0_i32 = arith.constant 0 : i32
    %c0_i32_0 = arith.constant 0 : i32
    %c0_i32_1 = arith.constant 0 : i32
    return %c0_i32, %c0_i32_0 : i32, i32
  }
  func.func @transform_5(%arg0: i32) -> (i32, i32, i32, i32) {
    %c0_i32 = arith.constant 0 : i32
    %c0_i32_0 = arith.constant 0 : i32
    %c0_i32_1 = arith.constant 0 : i32
    %c0_i32_2 = arith.constant 0 : i32
    return %arg0, %c0_i32, %c0_i32_0, %c0_i32_1 : i32, i32, i32, i32
  }
  func.func @transform_6(%arg0: i32) -> (i32, i32, i32) {
    %c0_i32 = arith.constant 0 : i32
    %c0_i32_0 = arith.constant 0 : i32
    %c0_i32_1 = arith.constant 0 : i32
    return %arg0, %c0_i32, %c0_i32_0 : i32, i32, i32
  }
}

module attributes {stable_mosaic.version = 11 : i64} {
  func.func @_bn_relu_kernel(%arg0: i32, %arg1: memref<1x16x128xf32, #tpu.memory_space<vmem>>, %arg2: memref<1x128xf32, #tpu.memory_space<vmem>>, %arg3: memref<1x128xf32, #tpu.memory_space<vmem>>, %arg4: memref<1x16x128xf32, #tpu.memory_space<vmem>>) attributes {dimension_semantics = [#tpu.dimension_semantics<parallel>], iteration_bounds = array<i64: 2>, scalar_prefetch = 0 : i64, scratch_operands = 0 : i64, tpu.core_type = #tpu.core_type<tc>, window_params = [{transform_indices = @transform_0, window_bounds = array<i64: 1, 16, 128>}, {pipeline_mode = #tpu.pipeline_mode<synchronous>, transform_indices = @transform_1, window_bounds = array<i64: 1, 128>}, {pipeline_mode = #tpu.pipeline_mode<synchronous>, transform_indices = @transform_2, window_bounds = array<i64: 1, 128>}, {transform_indices = @transform_3, window_bounds = array<i64: 1, 16, 128>}]} {
    %c0 = arith.constant 0 : index
    %c0_0 = arith.constant 0 : index
    %c0_1 = arith.constant 0 : index
    %0 = vector.load %arg1[%c0, %c0_0, %c0_1] : memref<1x16x128xf32, #tpu.memory_space<vmem>>, vector<1x16x128xf32>
    %1 = vector.shape_cast %0 : vector<1x16x128xf32> to vector<16x128xf32>
    %c0_2 = arith.constant 0 : index
    %c0_3 = arith.constant 0 : index
    %2 = vector.load %arg2[%c0_2, %c0_3] : memref<1x128xf32, #tpu.memory_space<vmem>>, vector<1x128xf32>
    %3 = vector.broadcast %2 : vector<1x128xf32> to vector<16x128xf32>
    %4 = arith.mulf %1, %3 : vector<16x128xf32>
    %c0_4 = arith.constant 0 : index
    %c0_5 = arith.constant 0 : index
    %5 = vector.load %arg3[%c0_4, %c0_5] : memref<1x128xf32, #tpu.memory_space<vmem>>, vector<1x128xf32>
    %6 = vector.broadcast %5 : vector<1x128xf32> to vector<16x128xf32>
    %7 = arith.addf %4, %6 : vector<16x128xf32>
    %cst = arith.constant 0.000000e+00 : f32
    %8 = vector.broadcast %cst : f32 to vector<16x128xf32>
    %9 = arith.maximumf %7, %8 : vector<16x128xf32>
    %c0_6 = arith.constant 0 : index
    %c0_7 = arith.constant 0 : index
    %c0_8 = arith.constant 0 : index
    %10 = vector.load %arg4[%c0_6, %c0_7, %c0_8] : memref<1x16x128xf32, #tpu.memory_space<vmem>>, vector<1x16x128xf32>
    %11 = vector.shape_cast %10 : vector<1x16x128xf32> to vector<16x128xf32>
    %12 = vector.shape_cast %9 : vector<16x128xf32> to vector<1x16x128xf32>
    tpu.vector_store %arg4[%c0_6, %c0_7, %c0_8], %12 {strides = array<i32>} : memref<1x16x128xf32, #tpu.memory_space<vmem>>, vector<1x16x128xf32>,
    return
  }
  func.func @transform_0(%arg0: i32) -> (i32, i32, i32) {
    %c0_i32 = arith.constant 0 : i32
    %c0_i32_0 = arith.constant 0 : i32
    %c0_i32_1 = arith.constant 0 : i32
    return %arg0, %c0_i32, %c0_i32_0 : i32, i32, i32
  }
  func.func @transform_1(%arg0: i32) -> (i32, i32) {
    %c0_i32 = arith.constant 0 : i32
    %c0_i32_0 = arith.constant 0 : i32
    %c0_i32_1 = arith.constant 0 : i32
    return %c0_i32, %c0_i32_0 : i32, i32
  }
  func.func @transform_2(%arg0: i32) -> (i32, i32) {
    %c0_i32 = arith.constant 0 : i32
    %c0_i32_0 = arith.constant 0 : i32
    %c0_i32_1 = arith.constant 0 : i32
    return %c0_i32, %c0_i32_0 : i32, i32
  }
  func.func @transform_3(%arg0: i32) -> (i32, i32, i32) {
    %c0_i32 = arith.constant 0 : i32
    %c0_i32_0 = arith.constant 0 : i32
    %c0_i32_1 = arith.constant 0 : i32
    return %arg0, %c0_i32, %c0_i32_0 : i32, i32, i32
  }
}

</mosaic_0001>

<llo_original>
// kernel: conv_block_forward.5
$region0: #{conv_block_forward.5}
  #allocation0 [shape = 'u32[]', space=smem, size = 0x4, offset = 0x4, fixed_abs, tag = 'smem constant byte address 0x4 - core index']
  #allocation1 [shape = 'u32[72,128]{1,0:T(1,128)}', space=vmem, size = 0x9000, scoped, tag = 'internal scratch']
  %s0 = inlined_call_operand.vmem [shape: f32[2,16,128], index: 0, kind: input, shape index: {}]
  %s1 = inlined_call_operand.vmem [shape: f32[1,128], index: 1, kind: input, shape index: {}]
  %s2 = inlined_call_operand.vmem [shape: f32[1,128], index: 2, kind: input, shape index: {}]
  %s3 = inlined_call_operand.vmem [shape: f32[2,16,128], index: 3, kind: output, shape index: {}]
  %s4 = sld [smem:[#allocation0]]
  $region45: #{conv_block_forward.5} parent=0
    _
  %s6 = ssub.s32 1, %s4
  %s7 = scalar_select 0, %s6, %s4
  loop: start=0, step=1, limit=4
  $region2: #{conv_block_forward.5} parent=0 // loop_pre_header
    _
  $region3: #{conv_block_forward.5} parent=0 // loop_header
    %s9 = sphi 0, %s13
    %p10 = scmp.ge.s32.totalorder %s9, 4
    %s19 = sphi 0, %s21
    %s22 = sphi 0, %s19
    %s23 = sphi 0, %s22
    %s39 = sphi 0, %s23
    %s43 = sphi 0, %s43
    %s45 = sphi 0, %s43
    %s46 = sphi 0, %s45
    %s60 = sphi 0, %s46
    %s64 = sphi 0, %s64
    %s66 = sphi 0, %s64
    %s67 = sphi 0, %s66
    %s81 = sphi 0, %s67
    %s87 = sphi 0, %s89
    %s90 = sphi 0, %s87
    %s91 = sphi 0, %s90
    %s107 = sphi 0, %s91
  $region4: #{conv_block_forward.5} parent=0 // loop_header_branch
    %12 = sbr.rel (%p10) target = $region8
  $region5: #{conv_block_forward.5} parent=0 // loop_body
    %s14 = ssub.s32 %s9, 1
    %s15 = ssub.s32 %s9, 2
    %s16 = sadd.s32 %s9, 1
    %s17 = ssub.s32 %s9, %s16
    %p18 = scmp.eq.s32.totalorder %s17, 0
    %s20 = sadd.s32 %s19, 1
    %s21 = scalar_select %p18, %s19, %s20
    %p24 = pneg %p18
    %p25 = scmp.eq.s32.totalorder %s9, 1
    %p26 = por %p24, %p25
    %p27 = scmp.ne.s32.totalorder %s19, %s22
    %p28 = scmp.eq.s32.totalorder %s9, 0
    %p29 = por %p27, %p28
    %p30 = scmp.ne.s32.totalorder %s19, %s22
    %p31 = scmp.eq.s32.totalorder %s14, 1
    %p32 = por %p30, %p31
    %p33 = scmp.ne.s32.totalorder %s22, %s23
    %p34 = scmp.eq.s32.totalorder %s14, 0
    %p35 = por %p33, %p34
    %p36 = scmp.ne.s32.totalorder %s22, %s23
    %p37 = scmp.eq.s32.totalorder %s15, 1
    %p38 = por %p36, %p37
    %p40 = scmp.ne.s32.totalorder %s23, %s39
    %p41 = scmp.eq.s32.totalorder %s15, 0
    %p42 = por %p40, %p41
    %s44 = sadd.s32 %s43, 1
    %p47 = scmp.eq.s32.totalorder %s9, 1
    %p48 = scmp.ne.s32.totalorder %s43, %s45
    %p49 = scmp.eq.s32.totalorder %s9, 0
    %p50 = por %p48, %p49
    %p51 = scmp.ne.s32.totalorder %s43, %s45
    %p52 = scmp.eq.s32.totalorder %s14, 1
    %p53 = por %p51, %p52
    %p54 = scmp.ne.s32.totalorder %s45, %s46
    %p55 = scmp.eq.s32.totalorder %s14, 0
    %p56 = por %p54, %p55
    %p57 = scmp.ne.s32.totalorder %s45, %s46
    %p58 = scmp.eq.s32.totalorder %s15, 1
    %p59 = por %p57, %p58
    %p61 = scmp.ne.s32.totalorder %s46, %s60
    %p62 = scmp.eq.s32.totalorder %s15, 0
    %p63 = por %p61, %p62
    %s65 = sadd.s32 %s64, 1
    %p68 = scmp.eq.s32.totalorder %s9, 1
    %p69 = scmp.ne.s32.totalorder %s64, %s66
    %p70 = scmp.eq.s32.totalorder %s9, 0
    %p71 = por %p69, %p70
    %p72 = scmp.ne.s32.totalorder %s64, %s66
    %p73 = scmp.eq.s32.totalorder %s14, 1
    %p74 = por %p72, %p73
    %p75 = scmp.ne.s32.totalorder %s66, %s67
    %p76 = scmp.eq.s32.totalorder %s14, 0
    %p77 = por %p75, %p76
    %p78 = scmp.ne.s32.totalorder %s66, %s67
    %p79 = scmp.eq.s32.totalorder %s15, 1
    %p80 = por %p78, %p79
    %p82 = scmp.ne.s32.totalorder %s67, %s81
    %p83 = scmp.eq.s32.totalorder %s15, 0
    %p84 = por %p82, %p83
    %s85 = ssub.s32 %s9, %s16
    %p86 = scmp.eq.s32.totalorder %s85, 0
    %s88 = sadd.s32 %s87, 1
    %s89 = scalar_select %p86, %s87, %s88
    %p92 = pneg %p86
    %p93 = scmp.eq.s32.totalorder %s9, 1
    %p94 = por %p92, %p93
    %p95 = scmp.ne.s32.totalorder %s87, %s90
    %p96 = scmp.eq.s32.totalorder %s9, 0
    %p97 = por %p95, %p96
    %p98 = scmp.ne.s32.totalorder %s87, %s90
    %p99 = scmp.eq.s32.totalorder %s14, 1
    %p100 = por %p98, %p99
    %p101 = scmp.ne.s32.totalorder %s90, %s91
    %p102 = scmp.eq.s32.totalorder %s14, 0
    %p103 = por %p101, %p102
    %p104 = scmp.ne.s32.totalorder %s90, %s91
    %p105 = scmp.eq.s32.totalorder %s15, 1
    %p106 = por %p104, %p105
    %p108 = scmp.ne.s32.totalorder %s91, %s107
    %p109 = scmp.eq.s32.totalorder %s15, 0
    %p110 = por %p108, %p109
    %p111 = scmp.le.s32.totalorder 1, %s9
    %p112 = scmp.lt.s32.totalorder %s9, 3
    %p113 = pnand %p111, %p112
    %p114 = pneg %p113
    // Predicated region
    $region9: #{conv_block_forward.5} parent=5 // pred_check
      _
    $region10: #{conv_block_forward.5} parent=5 // pred_check_branch
      %116 = sbr.rel (%p113) target = $region12
    $region11: #{conv_block_forward.5} parent=5 // pred_region
      %s117 = ssub.s32 %s9, 1
      // Predicated region
      $region13: #{conv_block_forward.5} parent=11 // pred_check
        %p118 = pneg %p56
      $region14: #{conv_block_forward.5} parent=11 // pred_check_branch
        %120 = sbr.rel (%p118) target = $region16
      $region15: #{conv_block_forward.5} parent=11 // pred_region
        _
      $region16: #{conv_block_forward.5} parent=11 // pred_fallthru
        _
      // Predicated region
      $region17: #{conv_block_forward.5} parent=11 // pred_check
        %p121 = pneg %p77
      $region18: #{conv_block_forward.5} parent=11 // pred_check_branch
        %123 = sbr.rel (%p121) target = $region20
      $region19: #{conv_block_forward.5} parent=11 // pred_region
        _
      $region20: #{conv_block_forward.5} parent=11 // pred_fallthru
        _
    $region12: #{conv_block_forward.5} parent=5 // pred_fallthru
      _
    %p124 = scmp.lt.s32.totalorder %s9, 2
    // Predicated region
    $region21: #{conv_block_forward.5} parent=5 // pred_check
      %p125 = pneg %p124
    $region22: #{conv_block_forward.5} parent=5 // pred_check_branch
      %127 = sbr.rel (%p125) target = $region24
    $region23: #{conv_block_forward.5} parent=5 // pred_region
      // Predicated region
      $region25: #{conv_block_forward.5} parent=23 // pred_check
        %p128 = pneg %p29
      $region26: #{conv_block_forward.5} parent=23 // pred_check_branch
        %130 = sbr.rel (%p128) target = $region28
      $region27: #{conv_block_forward.5} parent=23 // pred_region
        %p131 = scmp.lt.s32.totalorder %s9, 1
        %s132 = scalar_select %p131, %s9, 1
        %s133 = smul.addr %s132, 2
        %s134 = smul.addr %s133, 8
        %s135 = scalar_lea.vmem %s0, %s134
      $region28: #{conv_block_forward.5} parent=23 // pred_fallthru
        _
    $region24: #{conv_block_forward.5} parent=5 // pred_fallthru
      _
    %p136 = scmp.le.s32.totalorder 1, %s9
    %p137 = scmp.lt.s32.totalorder %s9, 3
    %p138 = pnand %p136, %p137
    %p139 = pneg %p138
    // Predicated region
    $region29: #{conv_block_forward.5} parent=5 // pred_check
      _
    $region30: #{conv_block_forward.5} parent=5 // pred_check_branch
      %141 = sbr.rel (%p138) target = $region32
    $region31: #{conv_block_forward.5} parent=5 // pred_region
      %s142 = ssub.s32 %s9, 1
      %p143 = scmp.lt.s32.totalorder %s14, 1
      %s144 = scalar_select %p143, %s14, 1
      %s145 = smul.addr %s144, 2
      %s146 = smul.addr %s145, 8
      %s147 = scalar_lea.vmem %s0, %s146
      %p148 = pneg %p35
      %p149 = pneg %p32
      %p150 = pneg %p56
      %p151 = pneg %p53
      %p152 = pneg %p77
      %p153 = pneg %p74
      %p154 = pneg %p103
      %p155 = pneg %p100
      %p156 = scmp.lt.s32.totalorder %s14, 1
      %s157 = scalar_select %p156, %s14, 1
      %s158 = smul.addr %s157, 2
      %s159 = smul.addr %s158, 8
      %s160 = scalar_lea.vmem %s3, %s159
      %p161 = scmp.lt.s32.totalorder %s14, 1
      %s162 = scalar_select %p161, %s14, 1
      %s163 = smul.addr %s162, 2
      %s164 = smul.addr %s163, 8
      %s165 = scalar_lea.vmem %s0, %s164
      %p166 = scmp.lt.s32.totalorder %s14, 1
      %s167 = scalar_select %p166, %s14, 1
      %s168 = smul.addr %s167, 2
      %s169 = smul.addr %s168, 8
      %s170 = scalar_lea.vmem %s3, %s169
      %v171 = vld [vmem:[%s165] sm:$0xff]
      %v172 = vld [vmem:[%s165 + $0x8] sm:$0xff]
      %v173 = vld [vmem:[%s1] sm:$0x1]
      %v175 = vperm.slane %v173, 0
      %v177 = vmul.f32 %v171, %v175
      %v178 = vmul.f32 %v172, %v175
      %v179 = vld [vmem:[%s2] sm:$0x1]
      %v181 = vperm.slane %v179, 0
      %v183 = vadd.f32 %v177, %v181
      %v184 = vadd.f32 %v178, %v181
      %v185 = vmax.f32 %v183, 0.0
      %v186 = vmax.f32 %v184, 0.0
      %187 = vst [vmem:[%s170] sm:$0xff] %v185
      %188 = vst [vmem:[%s170 + $0x8] sm:$0xff] %v186
      %p189 = scmp.lt.s32.totalorder %s14, 1
      %s190 = scalar_select %p189, %s14, 1
      %s191 = smul.addr %s190, 2
      %s192 = smul.addr %s191, 8
      %s193 = scalar_lea.vmem %s3, %s192
      // Predicated region
      $region33: #{conv_block_forward.5} parent=31 // pred_check
        %p194 = pneg %p100
      $region34: #{conv_block_forward.5} parent=31 // pred_check_branch
        %196 = sbr.rel (%p194) target = $region36
      $region35: #{conv_block_forward.5} parent=31 // pred_region
        _
      $region36: #{conv_block_forward.5} parent=31 // pred_fallthru
        _
    $region32: #{conv_block_forward.5} parent=5 // pred_fallthru
      _
    %p197 = scmp.le.s32.totalorder 2, %s9
    // Predicated region
    $region37: #{conv_block_forward.5} parent=5 // pred_check
      %p198 = pneg %p197
    $region38: #{conv_block_forward.5} parent=5 // pred_check_branch
      %200 = sbr.rel (%p198) target = $region40
    $region39: #{conv_block_forward.5} parent=5 // pred_region
      %s201 = ssub.s32 %s9, 2
      // Predicated region
      $region41: #{conv_block_forward.5} parent=39 // pred_check
        %p202 = pneg %p106
      $region42: #{conv_block_forward.5} parent=39 // pred_check_branch
        %204 = sbr.rel (%p202) target = $region44
      $region43: #{conv_block_forward.5} parent=39 // pred_region
        %p205 = scmp.lt.s32.totalorder %s15, 1
        %s206 = scalar_select %p205, %s15, 1
        %s207 = smul.addr %s206, 2
        %s208 = smul.addr %s207, 8
        %s209 = scalar_lea.vmem %s3, %s208
      $region44: #{conv_block_forward.5} parent=39 // pred_fallthru
        _
    $region40: #{conv_block_forward.5} parent=5 // pred_fallthru
      _
  $region6: #{conv_block_forward.5} parent=0 // loop_footer
    %s13 = sadd.s32 1, %s9
  $region7: #{conv_block_forward.5} parent=0 // loop_footer_branch
    %8 = sbr.rel target = $region3
  $region8: #{conv_block_forward.5} parent=0 // loop_exit
    _

// kernel: conv_block_forward.4
$region0: #{conv_block_forward.4}
  #allocation0 [shape = 'u32[]', space=smem, size = 0x4, offset = 0x4, fixed_abs, tag = 'smem constant byte address 0x4 - core index']
  #allocation1 [shape = 'u32[72,128]{1,0:T(1,128)}', space=vmem, size = 0x9000, scoped, tag = 'internal scratch']
  #allocation2 [shape = 'f32[18,18,8]{2,1,0:T(8,128)}', space=vmem, size = 0x36000, scoped, tag = 'scratch operand']
  #allocation3 [shape = 'f32[16,16,72]{2,1,0:T(8,128)}', space=vmem, size = 0x20000, scoped, tag = 'scratch operand']
  %s0 = inlined_call_operand.vmem [shape: f32[2,16,16,8], index: 0, kind: input, shape index: {}]
  %s1 = inlined_call_operand.vmem [shape: f32[1,1,8], index: 1, kind: input, shape index: {}]
  %s2 = inlined_call_operand.vmem [shape: f32[1,1,8], index: 2, kind: input, shape index: {}]
  %s3 = inlined_call_operand.vmem [shape: f32[72,8], index: 3, kind: input, shape index: {}]
  %s4 = inlined_call_operand.vmem [shape: f32[1,8], index: 4, kind: input, shape index: {}]
  %s5 = inlined_call_operand.vmem [shape: f32[2,16,16,8], index: 5, kind: output, shape index: {0}]
  %s6 = inlined_call_operand.vmem [shape: f32[2,2,8], index: 6, kind: output, shape index: {1}]
  %7 = xla_tuple %s5, %s6
  %s8 = sld [smem:[#allocation0]]
  $region61: #{conv_block_forward.4} parent=0
    _
  %s10 = ssub.s32 1, %s8
  %s11 = scalar_select 0, %s10, %s8
  loop: start=0, step=1, limit=4
  $region2: #{conv_block_forward.4} parent=0 // loop_pre_header
    _
  $region3: #{conv_block_forward.4} parent=0 // loop_header
    %s13 = sphi 0, %s17
    %p14 = scmp.ge.s32.totalorder %s13, 4
    %s23 = sphi 0, %s25
    %s26 = sphi 0, %s23
    %s27 = sphi 0, %s26
    %s43 = sphi 0, %s27
    %s47 = sphi 0, %s47
    %s49 = sphi 0, %s47
    %s50 = sphi 0, %s49
    %s64 = sphi 0, %s50
    %s68 = sphi 0, %s68
    %s70 = sphi 0, %s68
    %s71 = sphi 0, %s70
    %s85 = sphi 0, %s71
    %s89 = sphi 0, %s89
    %s91 = sphi 0, %s89
    %s92 = sphi 0, %s91
    %s106 = sphi 0, %s92
    %s110 = sphi 0, %s110
    %s112 = sphi 0, %s110
    %s113 = sphi 0, %s112
    %s127 = sphi 0, %s113
    %s133 = sphi 0, %s135
    %s136 = sphi 0, %s133
    %s137 = sphi 0, %s136
    %s153 = sphi 0, %s137
    %s159 = sphi 0, %s161
    %s162 = sphi 0, %s159
    %s163 = sphi 0, %s162
    %s179 = sphi 0, %s163
  $region4: #{conv_block_forward.4} parent=0 // loop_header_branch
    %16 = sbr.rel (%p14) target = $region8
  $region5: #{conv_block_forward.4} parent=0 // loop_body
    %s18 = ssub.s32 %s13, 1
    %s19 = ssub.s32 %s13, 2
    %s20 = sadd.s32 %s13, 1
    %s21 = ssub.s32 %s13, %s20
    %p22 = scmp.eq.s32.totalorder %s21, 0
    %s24 = sadd.s32 %s23, 1
    %s25 = scalar_select %p22, %s23, %s24
    %p28 = pneg %p22
    %p29 = scmp.eq.s32.totalorder %s13, 1
    %p30 = por %p28, %p29
    %p31 = scmp.ne.s32.totalorder %s23, %s26
    %p32 = scmp.eq.s32.totalorder %s13, 0
    %p33 = por %p31, %p32
    %p34 = scmp.ne.s32.totalorder %s23, %s26
    %p35 = scmp.eq.s32.totalorder %s18, 1
    %p36 = por %p34, %p35
    %p37 = scmp.ne.s32.totalorder %s26, %s27
    %p38 = scmp.eq.s32.totalorder %s18, 0
    %p39 = por %p37, %p38
    %p40 = scmp.ne.s32.totalorder %s26, %s27
    %p41 = scmp.eq.s32.totalorder %s19, 1
    %p42 = por %p40, %p41
    %p44 = scmp.ne.s32.totalorder %s27, %s43
    %p45 = scmp.eq.s32.totalorder %s19, 0
    %p46 = por %p44, %p45
    %s48 = sadd.s32 %s47, 1
    %p51 = scmp.eq.s32.totalorder %s13, 1
    %p52 = scmp.ne.s32.totalorder %s47, %s49
    %p53 = scmp.eq.s32.totalorder %s13, 0
    %p54 = por %p52, %p53
    %p55 = scmp.ne.s32.totalorder %s47, %s49
    %p56 = scmp.eq.s32.totalorder %s18, 1
    %p57 = por %p55, %p56
    %p58 = scmp.ne.s32.totalorder %s49, %s50
    %p59 = scmp.eq.s32.totalorder %s18, 0
    %p60 = por %p58, %p59
    %p61 = scmp.ne.s32.totalorder %s49, %s50
    %p62 = scmp.eq.s32.totalorder %s19, 1
    %p63 = por %p61, %p62
    %p65 = scmp.ne.s32.totalorder %s50, %s64
    %p66 = scmp.eq.s32.totalorder %s19, 0
    %p67 = por %p65, %p66
    %s69 = sadd.s32 %s68, 1
    %p72 = scmp.eq.s32.totalorder %s13, 1
    %p73 = scmp.ne.s32.totalorder %s68, %s70
    %p74 = scmp.eq.s32.totalorder %s13, 0
    %p75 = por %p73, %p74
    %p76 = scmp.ne.s32.totalorder %s68, %s70
    %p77 = scmp.eq.s32.totalorder %s18, 1
    %p78 = por %p76, %p77
    %p79 = scmp.ne.s32.totalorder %s70, %s71
    %p80 = scmp.eq.s32.totalorder %s18, 0
    %p81 = por %p79, %p80
    %p82 = scmp.ne.s32.totalorder %s70, %s71
    %p83 = scmp.eq.s32.totalorder %s19, 1
    %p84 = por %p82, %p83
    %p86 = scmp.ne.s32.totalorder %s71, %s85
    %p87 = scmp.eq.s32.totalorder %s19, 0
    %p88 = por %p86, %p87
    %s90 = sadd.s32 %s89, 1
    %p93 = scmp.eq.s32.totalorder %s13, 1
    %p94 = scmp.ne.s32.totalorder %s89, %s91
    %p95 = scmp.eq.s32.totalorder %s13, 0
    %p96 = por %p94, %p95
    %p97 = scmp.ne.s32.totalorder %s89, %s91
    %p98 = scmp.eq.s32.totalorder %s18, 1
    %p99 = por %p97, %p98
    %p100 = scmp.ne.s32.totalorder %s91, %s92
    %p101 = scmp.eq.s32.totalorder %s18, 0
    %p102 = por %p100, %p101
    %p103 = scmp.ne.s32.totalorder %s91, %s92
    %p104 = scmp.eq.s32.totalorder %s19, 1
    %p105 = por %p103, %p104
    %p107 = scmp.ne.s32.totalorder %s92, %s106
    %p108 = scmp.eq.s32.totalorder %s19, 0
    %p109 = por %p107, %p108
    %s111 = sadd.s32 %s110, 1
    %p114 = scmp.eq.s32.totalorder %s13, 1
    %p115 = scmp.ne.s32.totalorder %s110, %s112
    %p116 = scmp.eq.s32.totalorder %s13, 0
    %p117 = por %p115, %p116
    %p118 = scmp.ne.s32.totalorder %s110, %s112
    %p119 = scmp.eq.s32.totalorder %s18, 1
    %p120 = por %p118, %p119
    %p121 = scmp.ne.s32.totalorder %s112, %s113
    %p122 = scmp.eq.s32.totalorder %s18, 0
    %p123 = por %p121, %p122
    %p124 = scmp.ne.s32.totalorder %s112, %s113
    %p125 = scmp.eq.s32.totalorder %s19, 1
    %p126 = por %p124, %p125
    %p128 = scmp.ne.s32.totalorder %s113, %s127
    %p129 = scmp.eq.s32.totalorder %s19, 0
    %p130 = por %p128, %p129
    %s131 = ssub.s32 %s13, %s20
    %p132 = scmp.eq.s32.totalorder %s131, 0
    %s134 = sadd.s32 %s133, 1
    %s135 = scalar_select %p132, %s133, %s134
    %p138 = pneg %p132
    %p139 = scmp.eq.s32.totalorder %s13, 1
    %p140 = por %p138, %p139
    %p141 = scmp.ne.s32.totalorder %s133, %s136
    %p142 = scmp.eq.s32.totalorder %s13, 0
    %p143 = por %p141, %p142
    %p144 = scmp.ne.s32.totalorder %s133, %s136
    %p145 = scmp.eq.s32.totalorder %s18, 1
    %p146 = por %p144, %p145
    %p147 = scmp.ne.s32.totalorder %s136, %s137
    %p148 = scmp.eq.s32.totalorder %s18, 0
    %p149 = por %p147, %p148
    %p150 = scmp.ne.s32.totalorder %s136, %s137
    %p151 = scmp.eq.s32.totalorder %s19, 1
    %p152 = por %p150, %p151
    %p154 = scmp.ne.s32.totalorder %s137, %s153
    %p155 = scmp.eq.s32.totalorder %s19, 0
    %p156 = por %p154, %p155
    %s157 = ssub.s32 %s13, %s20
    %p158 = scmp.eq.s32.totalorder %s157, 0
    %s160 = sadd.s32 %s159, 1
    %s161 = scalar_select %p158, %s159, %s160
    %p164 = pneg %p158
    %p165 = scmp.eq.s32.totalorder %s13, 1
    %p166 = por %p164, %p165
    %p167 = scmp.ne.s32.totalorder %s159, %s162
    %p168 = scmp.eq.s32.totalorder %s13, 0
    %p169 = por %p167, %p168
    %p170 = scmp.ne.s32.totalorder %s159, %s162
    %p171 = scmp.eq.s32.totalorder %s18, 1
    %p172 = por %p170, %p171
    %p173 = scmp.ne.s32.totalorder %s162, %s163
    %p174 = scmp.eq.s32.totalorder %s18, 0
    %p175 = por %p173, %p174
    %p176 = scmp.ne.s32.totalorder %s162, %s163
    %p177 = scmp.eq.s32.totalorder %s19, 1
    %p178 = por %p176, %p177
    %p180 = scmp.ne.s32.totalorder %s163, %s179
    %p181 = scmp.eq.s32.totalorder %s19, 0
    %p182 = por %p180, %p181
    %p183 = scmp.le.s32.totalorder 1, %s13
    %p184 = scmp.lt.s32.totalorder %s13, 3
    %p185 = pnand %p183, %p184
    %p186 = pneg %p185
    // Predicated region
    $region9: #{conv_block_forward.4} parent=5 // pred_check
      _
    $region10: #{conv_block_forward.4} parent=5 // pred_check_branch
      %188 = sbr.rel (%p185) target = $region12
    $region11: #{conv_block_forward.4} parent=5 // pred_region
      %s189 = ssub.s32 %s13, 1
      // Predicated region
      $region13: #{conv_block_forward.4} parent=11 // pred_check
        %p190 = pneg %p60
      $region14: #{conv_block_forward.4} parent=11 // pred_check_branch
        %192 = sbr.rel (%p190) target = $region16
      $region15: #{conv_block_forward.4} parent=11 // pred_region
        _
      $region16: #{conv_block_forward.4} parent=11 // pred_fallthru
        _
      // Predicated region
      $region17: #{conv_block_forward.4} parent=11 // pred_check
        %p193 = pneg %p81
      $region18: #{conv_block_forward.4} parent=11 // pred_check_branch
        %195 = sbr.rel (%p193) target = $region20
      $region19: #{conv_block_forward.4} parent=11 // pred_region
        _
      $region20: #{conv_block_forward.4} parent=11 // pred_fallthru
        _
      // Predicated region
      $region21: #{conv_block_forward.4} parent=11 // pred_check
        %p196 = pneg %p102
      $region22: #{conv_block_forward.4} parent=11 // pred_check_branch
        %198 = sbr.rel (%p196) target = $region24
      $region23: #{conv_block_forward.4} parent=11 // pred_region
        _
      $region24: #{conv_block_forward.4} parent=11 // pred_fallthru
        _
      // Predicated region
      $region25: #{conv_block_forward.4} parent=11 // pred_check
        %p199 = pneg %p123
      $region26: #{conv_block_forward.4} parent=11 // pred_check_branch
        %201 = sbr.rel (%p199) target = $region28
      $region27: #{conv_block_forward.4} parent=11 // pred_region
        _
      $region28: #{conv_block_forward.4} parent=11 // pred_fallthru
        _
    $region12: #{conv_block_forward.4} parent=5 // pred_fallthru
      _
    %p202 = scmp.lt.s32.totalorder %s13, 2
    // Predicated region
    $region29: #{conv_block_forward.4} parent=5 // pred_check
      %p203 = pneg %p202
    $region30: #{conv_block_forward.4} parent=5 // pred_check_branch
      %205 = sbr.rel (%p203) target = $region32
    $region31: #{conv_block_forward.4} parent=5 // pred_region
      // Predicated region
      $region33: #{conv_block_forward.4} parent=31 // pred_check
        %p206 = pneg %p33
      $region34: #{conv_block_forward.4} parent=31 // pred_check_branch
        %208 = sbr.rel (%p206) target = $region36
      $region35: #{conv_block_forward.4} parent=31 // pred_region
        %p209 = scmp.lt.s32.totalorder %s13, 1
        %s210 = scalar_select %p209, %s13, 1
        %s211 = smul.addr %s210, 32
        %s212 = smul.addr %s211, 8
        %s213 = scalar_lea.vmem %s0, %s212
      $region36: #{conv_block_forward.4} parent=31 // pred_fallthru
        _
    $region32: #{conv_block_forward.4} parent=5 // pred_fallthru
      _
    %p214 = scmp.le.s32.totalorder 1, %s13
    %p215 = scmp.lt.s32.totalorder %s13, 3
    %p216 = pnand %p214, %p215
    %p217 = pneg %p216
    // Predicated region
    $region37: #{conv_block_forward.4} parent=5 // pred_check
      _
    $region38: #{conv_block_forward.4} parent=5 // pred_check_branch
      %219 = sbr.rel (%p216) target = $region40
    $region39: #{conv_block_forward.4} parent=5 // pred_region
      %s220 = ssub.s32 %s13, 1
      %p221 = scmp.lt.s32.totalorder %s18, 1
      %s222 = scalar_select %p221, %s18, 1
      %s223 = smul.addr %s222, 32
      %s224 = smul.addr %s223, 8
      %s225 = scalar_lea.vmem %s0, %s224
      %p226 = pneg %p39
      %p227 = pneg %p36
      %p228 = pneg %p60
      %p229 = pneg %p57
      %p230 = pneg %p81
      %p231 = pneg %p78
      %p232 = pneg %p102
      %p233 = pneg %p99
      %p234 = pneg %p123
      %p235 = pneg %p120
      %p236 = pneg %p149
      %p237 = pneg %p146
      %p238 = scmp.lt.s32.totalorder %s18, 1
      %s239 = scalar_select %p238, %s18, 1
      %s240 = smul.addr %s239, 32
      %s241 = smul.addr %s240, 8
      %s242 = scalar_lea.vmem %s5, %s241
      %p243 = pneg %p175
      %p244 = pneg %p172
      %p245 = scmp.lt.s32.totalorder %s18, 1
      %s246 = scalar_select %p245, %s18, 1
      %s247 = smul.addr %s246, 2
      %s248 = scalar_lea.vmem %s6, %s247
      %p249 = scmp.lt.s32.totalorder %s18, 1
      %s250 = scalar_select %p249, %s18, 1
      %s251 = smul.addr %s250, 32
      %s252 = smul.addr %s251, 8
      %s253 = scalar_lea.vmem %s0, %s252
      %p254 = scmp.lt.s32.totalorder %s18, 1
      %s255 = scalar_select %p254, %s18, 1
      %s256 = smul.addr %s255, 32
      %s257 = smul.addr %s256, 8
      %s258 = scalar_lea.vmem %s5, %s257
      %p259 = scmp.lt.s32.totalorder %s18, 1
      %s260 = scalar_select %p259, %s18, 1
      %s261 = smul.addr %s260, 2
      %s262 = scalar_lea.vmem %s6, %s261
      %v263 = vld [vmem:[%s253] sm:$0xff]
      %v264 = vld [vmem:[%s253 + $0x8] sm:$0xff]
      %v265 = vld [vmem:[%s253 + $0x10] sm:$0xff]
      %v266 = vld [vmem:[%s253 + $0x18] sm:$0xff]
      %v267 = vld [vmem:[%s253 + $0x20] sm:$0xff]
      %v268 = vld [vmem:[%s253 + $0x28] sm:$0xff]
      %v269 = vld [vmem:[%s253 + $0x30] sm:$0xff]
      %v270 = vld [vmem:[%s253 + $0x38] sm:$0xff]
      %v271 = vld [vmem:[%s253 + $0x40] sm:$0xff]
      %v272 = vld [vmem:[%s253 + $0x48] sm:$0xff]
      %v273 = vld [vmem:[%s253 + $0x50] sm:$0xff]
      %v274 = vld [vmem:[%s253 + $0x58] sm:$0xff]
      %v275 = vld [vmem:[%s253 + $0x60] sm:$0xff]
      %v276 = vld [vmem:[%s253 + $0x68] sm:$0xff]
      %v277 = vld [vmem:[%s253 + $0x70] sm:$0xff]
      %v278 = vld [vmem:[%s253 + $0x78] sm:$0xff]
      %v279 = vld [vmem:[%s253 + $0x80] sm:$0xff]
      %v280 = vld [vmem:[%s253 + $0x88] sm:$0xff]
      %v281 = vld [vmem:[%s253 + $0x90] sm:$0xff]
      %v282 = vld [vmem:[%s253 + $0x98] sm:$0xff]
      %v283 = vld [vmem:[%s253 + $0xa0] sm:$0xff]
      %v284 = vld [vmem:[%s253 + $0xa8] sm:$0xff]
      %v285 = vld [vmem:[%s253 + $0xb0] sm:$0xff]
      %v286 = vld [vmem:[%s253 + $0xb8] sm:$0xff]
      %v287 = vld [vmem:[%s253 + $0xc0] sm:$0xff]
      %v288 = vld [vmem:[%s253 + $0xc8] sm:$0xff]
      %v289 = vld [vmem:[%s253 + $0xd0] sm:$0xff]
      %v290 = vld [vmem:[%s253 + $0xd8] sm:$0xff]
      %v291 = vld [vmem:[%s253 + $0xe0] sm:$0xff]
      %v292 = vld [vmem:[%s253 + $0xe8] sm:$0xff]
      %v293 = vld [vmem:[%s253 + $0xf0] sm:$0xff]
      %v294 = vld [vmem:[%s253 + $0xf8] sm:$0xff]
      %v295 = vld [vmem:[%s1] sm:$0x1]
      %v297 = vperm.slane %v295, 0
      %v299 = vmul.f32 %v263, %v297
      %v300 = vmul.f32 %v264, %v297
      %v301 = vmul.f32 %v265, %v297
      %v302 = vmul.f32 %v266, %v297
      %v303 = vmul.f32 %v267, %v297
      %v304 = vmul.f32 %v268, %v297
      %v305 = vmul.f32 %v269, %v297
      %v306 = vmul.f32 %v270, %v297
      %v307 = vmul.f32 %v271, %v297
      %v308 = vmul.f32 %v272, %v297
      %v309 = vmul.f32 %v273, %v297
      %v310 = vmul.f32 %v274, %v297
      %v311 = vmul.f32 %v275, %v297
      %v312 = vmul.f32 %v276, %v297
      %v313 = vmul.f32 %v277, %v297
      %v314 = vmul.f32 %v278, %v297
      %v315 = vmul.f32 %v279, %v297
      %v316 = vmul.f32 %v280, %v297
      %v317 = vmul.f32 %v281, %v297
      %v318 = vmul.f32 %v282, %v297
      %v319 = vmul.f32 %v283, %v297
      %v320 = vmul.f32 %v284, %v297
      %v321 = vmul.f32 %v285, %v297
      %v322 = vmul.f32 %v286, %v297
      %v323 = vmul.f32 %v287, %v297
      %v324 = vmul.f32 %v288, %v297
      %v325 = vmul.f32 %v289, %v297
      %v326 = vmul.f32 %v290, %v297
      %v327 = vmul.f32 %v291, %v297
      %v328 = vmul.f32 %v292, %v297
      %v329 = vmul.f32 %v293, %v297
      %v330 = vmul.f32 %v294, %v297
      %v331 = vld [vmem:[%s2] sm:$0x1]
      %v333 = vperm.slane %v331, 0
      %v335 = vadd.f32 %v299, %v333
      %v336 = vadd.f32 %v300, %v333
      %v337 = vadd.f32 %v301, %v333
      %v338 = vadd.f32 %v302, %v333
      %v339 = vadd.f32 %v303, %v333
      %v340 = vadd.f32 %v304, %v333
      %v341 = vadd.f32 %v305, %v333
      %v342 = vadd.f32 %v306, %v333
      %v343 = vadd.f32 %v307, %v333
      %v344 = vadd.f32 %v308, %v333
      %v345 = vadd.f32 %v309, %v333
      %v346 = vadd.f32 %v310, %v333
      %v347 = vadd.f32 %v311, %v333
      %v348 = vadd.f32 %v312, %v333
      %v349 = vadd.f32 %v313, %v333
      %v350 = vadd.f32 %v314, %v333
      %v351 = vadd.f32 %v315, %v333
      %v352 = vadd.f32 %v316, %v333
      %v353 = vadd.f32 %v317, %v333
      %v354 = vadd.f32 %v318, %v333
      %v355 = vadd.f32 %v319, %v333
      %v356 = vadd.f32 %v320, %v333
      %v357 = vadd.f32 %v321, %v333
      %v358 = vadd.f32 %v322, %v333
      %v359 = vadd.f32 %v323, %v333
      %v360 = vadd.f32 %v324, %v333
      %v361 = vadd.f32 %v325, %v333
      %v362 = vadd.f32 %v326, %v333
      %v363 = vadd.f32 %v327, %v333
      %v364 = vadd.f32 %v328, %v333
      %v365 = vadd.f32 %v329, %v333
      %v366 = vadd.f32 %v330, %v333
      %v367 = vmax.f32 %v335, 0.0
      %v368 = vmax.f32 %v336, 0.0
      %v369 = vmax.f32 %v337, 0.0
      %v370 = vmax.f32 %v338, 0.0
      %v371 = vmax.f32 %v339, 0.0
      %v372 = vmax.f32 %v340, 0.0
      %v373 = vmax.f32 %v341, 0.0
      %v374 = vmax.f32 %v342, 0.0
      %v375 = vmax.f32 %v343, 0.0
      %v376 = vmax.f32 %v344, 0.0
      %v377 = vmax.f32 %v345, 0.0
      %v378 = vmax.f32 %v346, 0.0
      %v379 = vmax.f32 %v347, 0.0
      %v380 = vmax.f32 %v348, 0.0
      %v381 = vmax.f32 %v349, 0.0
      %v382 = vmax.f32 %v350, 0.0
      %v383 = vmax.f32 %v351, 0.0
      %v384 = vmax.f32 %v352, 0.0
      %v385 = vmax.f32 %v353, 0.0
      %v386 = vmax.f32 %v354, 0.0
      %v387 = vmax.f32 %v355, 0.0
      %v388 = vmax.f32 %v356, 0.0
      %v389 = vmax.f32 %v357, 0.0
      %v390 = vmax.f32 %v358, 0.0
      %v391 = vmax.f32 %v359, 0.0
      %v392 = vmax.f32 %v360, 0.0
      %v393 = vmax.f32 %v361, 0.0
      %v394 = vmax.f32 %v362, 0.0
      %v395 = vmax.f32 %v363, 0.0
      %v396 = vmax.f32 %v364, 0.0
      %v397 = vmax.f32 %v365, 0.0
      %v398 = vmax.f32 %v366, 0.0
      %vm399 = vcmask 64512
      %400 = vst.msk [vmem:[#allocation2] sm:$0xff] %vm399, 0.0
      %401 = vst.msk [vmem:[#allocation2 + $0x8] sm:$0xff] %vm399, 0.0
      %vm402 = vcmask 58368
      %403 = vst.msk [vmem:[#allocation2 + $0x10] sm:$0x3] %vm402, 0.0
      %s404 = scalar_lea.vmem [#allocation2], 408
      %405 = vst.msk [vmem:[%s404] sm:$0xff] %vm399, 0.0
      %406 = vst.msk [vmem:[%s404 + $0x8] sm:$0xff] %vm399, 0.0
      %407 = vst.msk [vmem:[%s404 + $0x10] sm:$0x3] %vm402, 0.0
      %vm408 = vcmask 57344
      %409 = vst.msk [vmem:[#allocation2] sm:$0x1] %vm408, 0.0
      %410 = vst.msk [vmem:[#allocation2 + $0x18] sm:$0x1] %vm408, 0.0
      %411 = vst.msk [vmem:[#allocation2 + $0x30] sm:$0x1] %vm408, 0.0
      %412 = vst.msk [vmem:[#allocation2 + $0x48] sm:$0x1] %vm408, 0.0
      %413 = vst.msk [vmem:[#allocation2 + $0x60] sm:$0x1] %vm408, 0.0
      %414 = vst.msk [vmem:[#allocation2 + $0x78] sm:$0x1] %vm408, 0.0
      %415 = vst.msk [vmem:[#allocation2 + $0x90] sm:$0x1] %vm408, 0.0
      %416 = vst.msk [vmem:[#allocation2 + $0xa8] sm:$0x1] %vm408, 0.0
      %417 = vst.msk [vmem:[#allocation2 + $0xc0] sm:$0x1] %vm408, 0.0
      %418 = vst.msk [vmem:[#allocation2 + $0xd8] sm:$0x1] %vm408, 0.0
      %419 = vst.msk [vmem:[#allocation2 + $0xf0] sm:$0x1] %vm408, 0.0
      %420 = vst.msk [vmem:[#allocation2 + $0x108] sm:$0x1] %vm408, 0.0
      %421 = vst.msk [vmem:[#allocation2 + $0x120] sm:$0x1] %vm408, 0.0
      %422 = vst.msk [vmem:[#allocation2 + $0x138] sm:$0x1] %vm408, 0.0
      %423 = vst.msk [vmem:[#allocation2 + $0x150] sm:$0x1] %vm408, 0.0
      %424 = vst.msk [vmem:[#allocation2 + $0x168] sm:$0x1] %vm408, 0.0
      %425 = vst.msk [vmem:[#allocation2 + $0x180] sm:$0x1] %vm408, 0.0
      %426 = vst.msk [vmem:[#allocation2 + $0x198] sm:$0x1] %vm408, 0.0
      %427 = vst.msk [vmem:[#allocation2 + $0x11] sm:$0x1] %vm408, 0.0
      %428 = vst.msk [vmem:[#allocation2 + $0x29] sm:$0x1] %vm408, 0.0
      %429 = vst.msk [vmem:[#allocation2 + $0x41] sm:$0x1] %vm408, 0.0
      %430 = vst.msk [vmem:[#allocation2 + $0x59] sm:$0x1] %vm408, 0.0
      %431 = vst.msk [vmem:[#allocation2 + $0x71] sm:$0x1] %vm408, 0.0
      %432 = vst.msk [vmem:[#allocation2 + $0x89] sm:$0x1] %vm408, 0.0
      %433 = vst.msk [vmem:[#allocation2 + $0xa1] sm:$0x1] %vm408, 0.0
      %434 = vst.msk [vmem:[#allocation2 + $0xb9] sm:$0x1] %vm408, 0.0
      %435 = vst.msk [vmem:[#allocation2 + $0xd1] sm:$0x1] %vm408, 0.0
      %436 = vst.msk [vmem:[#allocation2 + $0xe9] sm:$0x1] %vm408, 0.0
      %437 = vst.msk [vmem:[#allocation2 + $0x101] sm:$0x1] %vm408, 0.0
      %438 = vst.msk [vmem:[#allocation2 + $0x119] sm:$0x1] %vm408, 0.0
      %439 = vst.msk [vmem:[#allocation2 + $0x131] sm:$0x1] %vm408, 0.0
      %440 = vst.msk [vmem:[#allocation2 + $0x149] sm:$0x1] %vm408, 0.0
      %441 = vst.msk [vmem:[#allocation2 + $0x161] sm:$0x1] %vm408, 0.0
      %442 = vst.msk [vmem:[#allocation2 + $0x179] sm:$0x1] %vm408, 0.0
      %443 = vst.msk [vmem:[#allocation2 + $0x191] sm:$0x1] %vm408, 0.0
      %444 = vst.msk [vmem:[#allocation2 + $0x1a9] sm:$0x1] %vm408, 0.0
      %s445 = scalar_lea.vmem [#allocation2], 24
      %446 = vst.msk [vmem:[%s445 + $0x1] sm:$0xff] %vm399, %v367
      %447 = vst.msk [vmem:[%s445 + $0x9] sm:$0xff] %vm399, %v368
      %448 = vst.msk [vmem:[%s445 + $0x19] sm:$0xff] %vm399, %v369
      %449 = vst.msk [vmem:[%s445 + $0x21] sm:$0xff] %vm399, %v370
      %450 = vst.msk [vmem:[%s445 + $0x31] sm:$0xff] %vm399, %v371
      %451 = vst.msk [vmem:[%s445 + $0x39] sm:$0xff] %vm399, %v372
      %452 = vst.msk [vmem:[%s445 + $0x49] sm:$0xff] %vm399, %v373
      %453 = vst.msk [vmem:[%s445 + $0x51] sm:$0xff] %vm399, %v374
      %454 = vst.msk [vmem:[%s445 + $0x61] sm:$0xff] %vm399, %v375
      %455 = vst.msk [vmem:[%s445 + $0x69] sm:$0xff] %vm399, %v376
      %456 = vst.msk [vmem:[%s445 + $0x79] sm:$0xff] %vm399, %v377
      %457 = vst.msk [vmem:[%s445 + $0x81] sm:$0xff] %vm399, %v378
      %458 = vst.msk [vmem:[%s445 + $0x91] sm:$0xff] %vm399, %v379
      %459 = vst.msk [vmem:[%s445 + $0x99] sm:$0xff] %vm399, %v380
      %460 = vst.msk [vmem:[%s445 + $0xa9] sm:$0xff] %vm399, %v381
      %461 = vst.msk [vmem:[%s445 + $0xb1] sm:$0xff] %vm399, %v382
      %462 = vst.msk [vmem:[%s445 + $0xc1] sm:$0xff] %vm399, %v383
      %463 = vst.msk [vmem:[%s445 + $0xc9] sm:$0xff] %vm399, %v384
      %464 = vst.msk [vmem:[%s445 + $0xd9] sm:$0xff] %vm399, %v385
      %465 = vst.msk [vmem:[%s445 + $0xe1] sm:$0xff] %vm399, %v386
      %466 = vst.msk [vmem:[%s445 + $0xf1] sm:$0xff] %vm399, %v387
      %467 = vst.msk [vmem:[%s445 + $0xf9] sm:$0xff] %vm399, %v388
      %468 = vst.msk [vmem:[%s445 + $0x109] sm:$0xff] %vm399, %v389
      %469 = vst.msk [vmem:[%s445 + $0x111] sm:$0xff] %vm399, %v390
      %470 = vst.msk [vmem:[%s445 + $0x121] sm:$0xff] %vm399, %v391
      %471 = vst.msk [vmem:[%s445 + $0x129] sm:$0xff] %vm399, %v392
      %472 = vst.msk [vmem:[%s445 + $0x139] sm:$0xff] %vm399, %v393
      %473 = vst.msk [vmem:[%s445 + $0x141] sm:$0xff] %vm399, %v394
      %474 = vst.msk [vmem:[%s445 + $0x151] sm:$0xff] %vm399, %v395
      %475 = vst.msk [vmem:[%s445 + $0x159] sm:$0xff] %vm399, %v396
      %476 = vst.msk [vmem:[%s445 + $0x169] sm:$0xff] %vm399, %v397
      %477 = vst.msk [vmem:[%s445 + $0x171] sm:$0xff] %vm399, %v398
      %v478 = vld [vmem:[#allocation2] sm:$0xff]
      %v479 = vld [vmem:[#allocation2 + $0x8] sm:$0xff]
      %v480 = vld [vmem:[#allocation2 + $0x18] sm:$0xff]
      %v481 = vld [vmem:[#allocation2 + $0x20] sm:$0xff]
      %v482 = vld [vmem:[#allocation2 + $0x30] sm:$0xff]
      %v483 = vld [vmem:[#allocation2 + $0x38] sm:$0xff]
      %v484 = vld [vmem:[#allocation2 + $0x48] sm:$0xff]
      %v485 = vld [vmem:[#allocation2 + $0x50] sm:$0xff]
      %v486 = vld [vmem:[#allocation2 + $0x60] sm:$0xff]
      %v487 = vld [vmem:[#allocation2 + $0x68] sm:$0xff]
      %v488 = vld [vmem:[#allocation2 + $0x78] sm:$0xff]
      %v489 = vld [vmem:[#allocation2 + $0x80] sm:$0xff]
      %v490 = vld [vmem:[#allocation2 + $0x90] sm:$0xff]
      %v491 = vld [vmem:[#allocation2 + $0x98] sm:$0xff]
      %v492 = vld [vmem:[#allocation2 + $0xa8] sm:$0xff]
      %v493 = vld [vmem:[#allocation2 + $0xb0] sm:$0xff]
      %v494 = vld [vmem:[#allocation2 + $0xc0] sm:$0xff]
      %v495 = vld [vmem:[#allocation2 + $0xc8] sm:$0xff]
      %v496 = vld [vmem:[#allocation2 + $0xd8] sm:$0xff]
      %v497 = vld [vmem:[#allocation2 + $0xe0] sm:$0xff]
      %v498 = vld [vmem:[#allocation2 + $0xf0] sm:$0xff]
      %v499 = vld [vmem:[#allocation2 + $0xf8] sm:$0xff]
      %v500 = vld [vmem:[#allocation2 + $0x108] sm:$0xff]
      %v501 = vld [vmem:[#allocation2 + $0x110] sm:$0xff]
      %v502 = vld [vmem:[#allocation2 + $0x120] sm:$0xff]
      %v503 = vld [vmem:[#allocation2 + $0x128] sm:$0xff]
      %v504 = vld [vmem:[#allocation2 + $0x138] sm:$0xff]
      %v505 = vld [vmem:[#allocation2 + $0x140] sm:$0xff]
      %v506 = vld [vmem:[#allocation2 + $0x150] sm:$0xff]
      %v507 = vld [vmem:[#allocation2 + $0x158] sm:$0xff]
      %v508 = vld [vmem:[#allocation2 + $0x168] sm:$0xff]
      %v509 = vld [vmem:[#allocation2 + $0x170] sm:$0xff]
      %510 = vst.msk [vmem:[#allocation3] sm:$0xff] %vm399, %v478
      %511 = vst.msk [vmem:[#allocation3 + $0x8] sm:$0xff] %vm399, %v479
      %512 = vst.msk [vmem:[#allocation3 + $0x10] sm:$0xff] %vm399, %v480
      %513 = vst.msk [vmem:[#allocation3 + $0x18] sm:$0xff] %vm399, %v481
      %514 = vst.msk [vmem:[#allocation3 + $0x20] sm:$0xff] %vm399, %v482
      %515 = vst.msk [vmem:[#allocation3 + $0x28] sm:$0xff] %vm399, %v483
      %516 = vst.msk [vmem:[#allocation3 + $0x30] sm:$0xff] %vm399, %v484
      %517 = vst.msk [vmem:[#allocation3 + $0x38] sm:$0xff] %vm399, %v485
      %518 = vst.msk [vmem:[#allocation3 + $0x40] sm:$0xff] %vm399, %v486
      %519 = vst.msk [vmem:[#allocation3 + $0x48] sm:$0xff] %vm399, %v487
      %520 = vst.msk [vmem:[#allocation3 + $0x50] sm:$0xff] %vm399, %v488
      %521 = vst.msk [vmem:[#allocation3 + $0x58] sm:$0xff] %vm399, %v489
      %522 = vst.msk [vmem:[#allocation3 + $0x60] sm:$0xff] %vm399, %v490
      %523 = vst.msk [vmem:[#allocation3 + $0x68] sm:$0xff] %vm399, %v491
      %524 = vst.msk [vmem:[#allocation3 + $0x70] sm:$0xff] %vm399, %v492
      %525 = vst.msk [vmem:[#allocation3 + $0x78] sm:$0xff] %vm399, %v493
      %526 = vst.msk [vmem:[#allocation3 + $0x80] sm:$0xff] %vm399, %v494
      %527 = vst.msk [vmem:[#allocation3 + $0x88] sm:$0xff] %vm399, %v495
      %528 = vst.msk [vmem:[#allocation3 + $0x90] sm:$0xff] %vm399, %v496
      %529 = vst.msk [vmem:[#allocation3 + $0x98] sm:$0xff] %vm399, %v497
      %530 = vst.msk [vmem:[#allocation3 + $0xa0] sm:$0xff] %vm399, %v498
      %531 = vst.msk [vmem:[#allocation3 + $0xa8] sm:$0xff] %vm399, %v499
      %532 = vst.msk [vmem:[#allocation3 + $0xb0] sm:$0xff] %vm399, %v500
      %533 = vst.msk [vmem:[#allocation3 + $0xb8] sm:$0xff] %vm399, %v501
      %534 = vst.msk [vmem:[#allocation3 + $0xc0] sm:$0xff] %vm399, %v502
      %535 = vst.msk [vmem:[#allocation3 + $0xc8] sm:$0xff] %vm399, %v503
      %536 = vst.msk [vmem:[#allocation3 + $0xd0] sm:$0xff] %vm399, %v504
      %537 = vst.msk [vmem:[#allocation3 + $0xd8] sm:$0xff] %vm399, %v505
      %538 = vst.msk [vmem:[#allocation3 + $0xe0] sm:$0xff] %vm399, %v506
      %539 = vst.msk [vmem:[#allocation3 + $0xe8] sm:$0xff] %vm399, %v507
      %540 = vst.msk [vmem:[#allocation3 + $0xf0] sm:$0xff] %vm399, %v508
      %541 = vst.msk [vmem:[#allocation3 + $0xf8] sm:$0xff] %vm399, %v509
      %v542 = vld [vmem:[#allocation2 + $0x1] sm:$0xff]
      %v543 = vld [vmem:[#allocation2 + $0x9] sm:$0xff]
      %v544 = vld [vmem:[#allocation2 + $0x19] sm:$0xff]
      %v545 = vld [vmem:[#allocation2 + $0x21] sm:$0xff]
      %v546 = vld [vmem:[#allocation2 + $0x31] sm:$0xff]
      %v547 = vld [vmem:[#allocation2 + $0x39] sm:$0xff]
      %v548 = vld [vmem:[#allocation2 + $0x49] sm:$0xff]
      %v549 = vld [vmem:[#allocation2 + $0x51] sm:$0xff]
      %v550 = vld [vmem:[#allocation2 + $0x61] sm:$0xff]
      %v551 = vld [vmem:[#allocation2 + $0x69] sm:$0xff]
      %v552 = vld [vmem:[#allocation2 + $0x79] sm:$0xff]
      %v553 = vld [vmem:[#allocation2 + $0x81] sm:$0xff]
      %v554 = vld [vmem:[#allocation2 + $0x91] sm:$0xff]
      %v555 = vld [vmem:[#allocation2 + $0x99] sm:$0xff]
      %v556 = vld [vmem:[#allocation2 + $0xa9] sm:$0xff]
      %v557 = vld [vmem:[#allocation2 + $0xb1] sm:$0xff]
      %v558 = vld [vmem:[#allocation2 + $0xc1] sm:$0xff]
      %v559 = vld [vmem:[#allocation2 + $0xc9] sm:$0xff]
      %v560 = vld [vmem:[#allocation2 + $0xd9] sm:$0xff]
      %v561 = vld [vmem:[#allocation2 + $0xe1] sm:$0xff]
      %v562 = vld [vmem:[#allocation2 + $0xf1] sm:$0xff]
      %v563 = vld [vmem:[#allocation2 + $0xf9] sm:$0xff]
      %v564 = vld [vmem:[#allocation2 + $0x109] sm:$0xff]
      %v565 = vld [vmem:[#allocation2 + $0x111] sm:$0xff]
      %v566 = vld [vmem:[#allocation2 + $0x121] sm:$0xff]
      %v567 = vld [vmem:[#allocation2 + $0x129] sm:$0xff]
      %v568 = vld [vmem:[#allocation2 + $0x139] sm:$0xff]
      %v569 = vld [vmem:[#allocation2 + $0x141] sm:$0xff]
      %v570 = vld [vmem:[#allocation2 + $0x151] sm:$0xff]
      %v571 = vld [vmem:[#allocation2 + $0x159] sm:$0xff]
      %v572 = vld [vmem:[#allocation2 + $0x169] sm:$0xff]
      %v573 = vld [vmem:[#allocation2 + $0x171] sm:$0xff]
      %606 = vrot.lane.b32.xlu0 %v542, 8
      %v607 = vpop.permute.xlu0 %606
      %608 = vrot.lane.b32.xlu0 %v543, 8
      %v609 = vpop.permute.xlu0 %608
      %610 = vrot.lane.b32.xlu0 %v544, 8
      %v611 = vpop.permute.xlu0 %610
      %612 = vrot.lane.b32.xlu0 %v545, 8
      %v613 = vpop.permute.xlu0 %612
      %614 = vrot.lane.b32.xlu0 %v546, 8
      %v615 = vpop.permute.xlu0 %614
      %616 = vrot.lane.b32.xlu0 %v547, 8
      %v617 = vpop.permute.xlu0 %616
      %618 = vrot.lane.b32.xlu0 %v548, 8
      %v619 = vpop.permute.xlu0 %618
      %620 = vrot.lane.b32.xlu0 %v549, 8
      %v621 = vpop.permute.xlu0 %620
      %622 = vrot.lane.b32.xlu0 %v550, 8
      %v623 = vpop.permute.xlu0 %622
      %624 = vrot.lane.b32.xlu0 %v551, 8
      %v625 = vpop.permute.xlu0 %624
      %626 = vrot.lane.b32.xlu0 %v552, 8
      %v627 = vpop.permute.xlu0 %626
      %628 = vrot.lane.b32.xlu0 %v553, 8
      %v629 = vpop.permute.xlu0 %628
      %630 = vrot.lane.b32.xlu0 %v554, 8
      %v631 = vpop.permute.xlu0 %630
      %632 = vrot.lane.b32.xlu0 %v555, 8
      %v633 = vpop.permute.xlu0 %632
      %634 = vrot.lane.b32.xlu0 %v556, 8
      %v635 = vpop.permute.xlu0 %634
      %636 = vrot.lane.b32.xlu0 %v557, 8
      %v637 = vpop.permute.xlu0 %636
      %638 = vrot.lane.b32.xlu0 %v558, 8
      %v639 = vpop.permute.xlu0 %638
      %640 = vrot.lane.b32.xlu0 %v559, 8
      %v641 = vpop.permute.xlu0 %640
      %642 = vrot.lane.b32.xlu0 %v560, 8
      %v643 = vpop.permute.xlu0 %642
      %644 = vrot.lane.b32.xlu0 %v561, 8
      %v645 = vpop.permute.xlu0 %644
      %646 = vrot.lane.b32.xlu0 %v562, 8
      %v647 = vpop.permute.xlu0 %646
      %648 = vrot.lane.b32.xlu0 %v563, 8
      %v649 = vpop.permute.xlu0 %648
      %650 = vrot.lane.b32.xlu0 %v564, 8
      %v651 = vpop.permute.xlu0 %650
      %652 = vrot.lane.b32.xlu0 %v565, 8
      %v653 = vpop.permute.xlu0 %652
      %654 = vrot.lane.b32.xlu0 %v566, 8
      %v655 = vpop.permute.xlu0 %654
      %656 = vrot.lane.b32.xlu0 %v567, 8
      %v657 = vpop.permute.xlu0 %656
      %658 = vrot.lane.b32.xlu0 %v568, 8
      %v659 = vpop.permute.xlu0 %658
      %660 = vrot.lane.b32.xlu0 %v569, 8
      %v661 = vpop.permute.xlu0 %660
      %662 = vrot.lane.b32.xlu0 %v570, 8
      %v663 = vpop.permute.xlu0 %662
      %664 = vrot.lane.b32.xlu0 %v571, 8
      %v665 = vpop.permute.xlu0 %664
      %666 = vrot.lane.b32.xlu0 %v572, 8
      %v667 = vpop.permute.xlu0 %666
      %668 = vrot.lane.b32.xlu0 %v573, 8
      %v669 = vpop.permute.xlu0 %668
      %vm702 = vcmask 130112
      %703 = vst.msk [vmem:[#allocation3] sm:$0xff] %vm702, %v607
      %704 = vst.msk [vmem:[#allocation3 + $0x8] sm:$0xff] %vm702, %v609
      %705 = vst.msk [vmem:[#allocation3 + $0x10] sm:$0xff] %vm702, %v611
      %706 = vst.msk [vmem:[#allocation3 + $0x18] sm:$0xff] %vm702, %v613
      %707 = vst.msk [vmem:[#allocation3 + $0x20] sm:$0xff] %vm702, %v615
      %708 = vst.msk [vmem:[#allocation3 + $0x28] sm:$0xff] %vm702, %v617
      %709 = vst.msk [vmem:[#allocation3 + $0x30] sm:$0xff] %vm702, %v619
      %710 = vst.msk [vmem:[#allocation3 + $0x38] sm:$0xff] %vm702, %v621
      %711 = vst.msk [vmem:[#allocation3 + $0x40] sm:$0xff] %vm702, %v623
      %712 = vst.msk [vmem:[#allocation3 + $0x48] sm:$0xff] %vm702, %v625
      %713 = vst.msk [vmem:[#allocation3 + $0x50] sm:$0xff] %vm702, %v627
      %714 = vst.msk [vmem:[#allocation3 + $0x58] sm:$0xff] %vm702, %v629
      %715 = vst.msk [vmem:[#allocation3 + $0x60] sm:$0xff] %vm702, %v631
      %716 = vst.msk [vmem:[#allocation3 + $0x68] sm:$0xff] %vm702, %v633
      %717 = vst.msk [vmem:[#allocation3 + $0x70] sm:$0xff] %vm702, %v635
      %718 = vst.msk [vmem:[#allocation3 + $0x78] sm:$0xff] %vm702, %v637
      %719 = vst.msk [vmem:[#allocation3 + $0x80] sm:$0xff] %vm702, %v639
      %720 = vst.msk [vmem:[#allocation3 + $0x88] sm:$0xff] %vm702, %v641
      %721 = vst.msk [vmem:[#allocation3 + $0x90] sm:$0xff] %vm702, %v643
      %722 = vst.msk [vmem:[#allocation3 + $0x98] sm:$0xff] %vm702, %v645
      %723 = vst.msk [vmem:[#allocation3 + $0xa0] sm:$0xff] %vm702, %v647
      %724 = vst.msk [vmem:[#allocation3 + $0xa8] sm:$0xff] %vm702, %v649
      %725 = vst.msk [vmem:[#allocation3 + $0xb0] sm:$0xff] %vm702, %v651
      %726 = vst.msk [vmem:[#allocation3 + $0xb8] sm:$0xff] %vm702, %v653
      %727 = vst.msk [vmem:[#allocation3 + $0xc0] sm:$0xff] %vm702, %v655
      %728 = vst.msk [vmem:[#allocation3 + $0xc8] sm:$0xff] %vm702, %v657
      %729 = vst.msk [vmem:[#allocation3 + $0xd0] sm:$0xff] %vm702, %v659
      %730 = vst.msk [vmem:[#allocation3 + $0xd8] sm:$0xff] %vm702, %v661
      %731 = vst.msk [vmem:[#allocation3 + $0xe0] sm:$0xff] %vm702, %v663
      %732 = vst.msk [vmem:[#allocation3 + $0xe8] sm:$0xff] %vm702, %v665
      %733 = vst.msk [vmem:[#allocation3 + $0xf0] sm:$0xff] %vm702, %v667
      %734 = vst.msk [vmem:[#allocation3 + $0xf8] sm:$0xff] %vm702, %v669
      %v735 = vld [vmem:[#allocation2 + $0x2] sm:$0xff]
      %v736 = vld [vmem:[#allocation2 + $0xa] sm:$0xff]
      %v737 = vld [vmem:[#allocation2 + $0x1a] sm:$0xff]
      %v738 = vld [vmem:[#allocation2 + $0x22] sm:$0xff]
      %v739 = vld [vmem:[#allocation2 + $0x32] sm:$0xff]
      %v740 = vld [vmem:[#allocation2 + $0x3a] sm:$0xff]
      %v741 = vld [vmem:[#allocation2 + $0x4a] sm:$0xff]
      %v742 = vld [vmem:[#allocation2 + $0x52] sm:$0xff]
      %v743 = vld [vmem:[#allocation2 + $0x62] sm:$0xff]
      %v744 = vld [vmem:[#allocation2 + $0x6a] sm:$0xff]
      %v745 = vld [vmem:[#allocation2 + $0x7a] sm:$0xff]
      %v746 = vld [vmem:[#allocation2 + $0x82] sm:$0xff]
      %v747 = vld [vmem:[#allocation2 + $0x92] sm:$0xff]
      %v748 = vld [vmem:[#allocation2 + $0x9a] sm:$0xff]
      %v749 = vld [vmem:[#allocation2 + $0xaa] sm:$0xff]
      %v750 = vld [vmem:[#allocation2 + $0xb2] sm:$0xff]
      %v751 = vld [vmem:[#allocation2 + $0xc2] sm:$0xff]
      %v752 = vld [vmem:[#allocation2 + $0xca] sm:$0xff]
      %v753 = vld [vmem:[#allocation2 + $0xda] sm:$0xff]
      %v754 = vld [vmem:[#allocation2 + $0xe2] sm:$0xff]
      %v755 = vld [vmem:[#allocation2 + $0xf2] sm:$0xff]
      %v756 = vld [vmem:[#allocation2 + $0xfa] sm:$0xff]
      %v757 = vld [vmem:[#allocation2 + $0x10a] sm:$0xff]
      %v758 = vld [vmem:[#allocation2 + $0x112] sm:$0xff]
      %v759 = vld [vmem:[#allocation2 + $0x122] sm:$0xff]
      %v760 = vld [vmem:[#allocation2 + $0x12a] sm:$0xff]
      %v761 = vld [vmem:[#allocation2 + $0x13a] sm:$0xff]
      %v762 = vld [vmem:[#allocation2 + $0x142] sm:$0xff]
      %v763 = vld [vmem:[#allocation2 + $0x152] sm:$0xff]
      %v764 = vld [vmem:[#allocation2 + $0x15a] sm:$0xff]
      %v765 = vld [vmem:[#allocation2 + $0x16a] sm:$0xff]
      %v766 = vld [vmem:[#allocation2 + $0x172] sm:$0xff]
      %799 = vrot.lane.b32.xlu0 %v735, 16
      %v800 = vpop.permute.xlu0 %799
      %801 = vrot.lane.b32.xlu0 %v736, 16
      %v802 = vpop.permute.xlu0 %801
      %803 = vrot.lane.b32.xlu0 %v737, 16
      %v804 = vpop.permute.xlu0 %803
      %805 = vrot.lane.b32.xlu0 %v738, 16
      %v806 = vpop.permute.xlu0 %805
      %807 = vrot.lane.b32.xlu0 %v739, 16
      %v808 = vpop.permute.xlu0 %807
      %809 = vrot.lane.b32.xlu0 %v740, 16
      %v810 = vpop.permute.xlu0 %809
      %811 = vrot.lane.b32.xlu0 %v741, 16
      %v812 = vpop.permute.xlu0 %811
      %813 = vrot.lane.b32.xlu0 %v742, 16
      %v814 = vpop.permute.xlu0 %813
      %815 = vrot.lane.b32.xlu0 %v743, 16
      %v816 = vpop.permute.xlu0 %815
      %817 = vrot.lane.b32.xlu0 %v744, 16
      %v818 = vpop.permute.xlu0 %817
      %819 = vrot.lane.b32.xlu0 %v745, 16
      %v820 = vpop.permute.xlu0 %819
      %821 = vrot.lane.b32.xlu0 %v746, 16
      %v822 = vpop.permute.xlu0 %821
      %823 = vrot.lane.b32.xlu0 %v747, 16
      %v824 = vpop.permute.xlu0 %823
      %825 = vrot.lane.b32.xlu0 %v748, 16
      %v826 = vpop.permute.xlu0 %825
      %827 = vrot.lane.b32.xlu0 %v749, 16
      %v828 = vpop.permute.xlu0 %827
      %829 = vrot.lane.b32.xlu0 %v750, 16
      %v830 = vpop.permute.xlu0 %829
      %831 = vrot.lane.b32.xlu0 %v751, 16
      %v832 = vpop.permute.xlu0 %831
      %833 = vrot.lane.b32.xlu0 %v752, 16
      %v834 = vpop.permute.xlu0 %833
      %835 = vrot.lane.b32.xlu0 %v753, 16
      %v836 = vpop.permute.xlu0 %835
      %837 = vrot.lane.b32.xlu0 %v754, 16
      %v838 = vpop.permute.xlu0 %837
      %839 = vrot.lane.b32.xlu0 %v755, 16
      %v840 = vpop.permute.xlu0 %839
      %841 = vrot.lane.b32.xlu0 %v756, 16
      %v842 = vpop.permute.xlu0 %841
      %843 = vrot.lane.b32.xlu0 %v757, 16
      %v844 = vpop.permute.xlu0 %843
      %845 = vrot.lane.b32.xlu0 %v758, 16
      %v846 = vpop.permute.xlu0 %845
      %847 = vrot.lane.b32.xlu0 %v759, 16
      %v848 = vpop.permute.xlu0 %847
      %849 = vrot.lane.b32.xlu0 %v760, 16
      %v850 = vpop.permute.xlu0 %849
      %851 = vrot.lane.b32.xlu0 %v761, 16
      %v852 = vpop.permute.xlu0 %851
      %853 = vrot.lane.b32.xlu0 %v762, 16
      %v854 = vpop.permute.xlu0 %853
      %855 = vrot.lane.b32.xlu0 %v763, 16
      %v856 = vpop.permute.xlu0 %855
      %857 = vrot.lane.b32.xlu0 %v764, 16
      %v858 = vpop.permute.xlu0 %857
      %859 = vrot.lane.b32.xlu0 %v765, 16
      %v860 = vpop.permute.xlu0 %859
      %861 = vrot.lane.b32.xlu0 %v766, 16
      %v862 = vpop.permute.xlu0 %861
      %vm895 = vcmask 195712
      %896 = vst.msk [vmem:[#allocation3] sm:$0xff] %vm895, %v800
      %897 = vst.msk [vmem:[#allocation3 + $0x8] sm:$0xff] %vm895, %v802
      %898 = vst.msk [vmem:[#allocation3 + $0x10] sm:$0xff] %vm895, %v804
      %899 = vst.msk [vmem:[#allocation3 + $0x18] sm:$0xff] %vm895, %v806
      %900 = vst.msk [vmem:[#allocation3 + $0x20] sm:$0xff] %vm895, %v808
      %901 = vst.msk [vmem:[#allocation3 + $0x28] sm:$0xff] %vm895, %v810
      %902 = vst.msk [vmem:[#allocation3 + $0x30] sm:$0xff] %vm895, %v812
      %903 = vst.msk [vmem:[#allocation3 + $0x38] sm:$0xff] %vm895, %v814
      %904 = vst.msk [vmem:[#allocation3 + $0x40] sm:$0xff] %vm895, %v816
      %905 = vst.msk [vmem:[#allocation3 + $0x48] sm:$0xff] %vm895, %v818
      %906 = vst.msk [vmem:[#allocation3 + $0x50] sm:$0xff] %vm895, %v820
      %907 = vst.msk [vmem:[#allocation3 + $0x58] sm:$0xff] %vm895, %v822
      %908 = vst.msk [vmem:[#allocation3 + $0x60] sm:$0xff] %vm895, %v824
      %909 = vst.msk [vmem:[#allocation3 + $0x68] sm:$0xff] %vm895, %v826
      %910 = vst.msk [vmem:[#allocation3 + $0x70] sm:$0xff] %vm895, %v828
      %911 = vst.msk [vmem:[#allocation3 + $0x78] sm:$0xff] %vm895, %v830
      %912 = vst.msk [vmem:[#allocation3 + $0x80] sm:$0xff] %vm895, %v832
      %913 = vst.msk [vmem:[#allocation3 + $0x88] sm:$0xff] %vm895, %v834
      %914 = vst.msk [vmem:[#allocation3 + $0x90] sm:$0xff] %vm895, %v836
      %915 = vst.msk [vmem:[#allocation3 + $0x98] sm:$0xff] %vm895, %v838
      %916 = vst.msk [vmem:[#allocation3 + $0xa0] sm:$0xff] %vm895, %v840
      %917 = vst.msk [vmem:[#allocation3 + $0xa8] sm:$0xff] %vm895, %v842
      %918 = vst.msk [vmem:[#allocation3 + $0xb0] sm:$0xff] %vm895, %v844
      %919 = vst.msk [vmem:[#allocation3 + $0xb8] sm:$0xff] %vm895, %v846
      %920 = vst.msk [vmem:[#allocation3 + $0xc0] sm:$0xff] %vm895, %v848
      %921 = vst.msk [vmem:[#allocation3 + $0xc8] sm:$0xff] %vm895, %v850
      %922 = vst.msk [vmem:[#allocation3 + $0xd0] sm:$0xff] %vm895, %v852
      %923 = vst.msk [vmem:[#allocation3 + $0xd8] sm:$0xff] %vm895, %v854
      %924 = vst.msk [vmem:[#allocation3 + $0xe0] sm:$0xff] %vm895, %v856
      %925 = vst.msk [vmem:[#allocation3 + $0xe8] sm:$0xff] %vm895, %v858
      %926 = vst.msk [vmem:[#allocation3 + $0xf0] sm:$0xff] %vm895, %v860
      %927 = vst.msk [vmem:[#allocation3 + $0xf8] sm:$0xff] %vm895, %v862
      %v928 = vld [vmem:[%s445] sm:$0xff]
      %v929 = vld [vmem:[%s445 + $0x8] sm:$0xff]
      %v930 = vld [vmem:[%s445 + $0x18] sm:$0xff]
      %v931 = vld [vmem:[%s445 + $0x20] sm:$0xff]
      %v932 = vld [vmem:[%s445 + $0x30] sm:$0xff]
      %v933 = vld [vmem:[%s445 + $0x38] sm:$0xff]
      %v934 = vld [vmem:[%s445 + $0x48] sm:$0xff]
      %v935 = vld [vmem:[%s445 + $0x50] sm:$0xff]
      %v936 = vld [vmem:[%s445 + $0x60] sm:$0xff]
      %v937 = vld [vmem:[%s445 + $0x68] sm:$0xff]
      %v938 = vld [vmem:[%s445 + $0x78] sm:$0xff]
      %v939 = vld [vmem:[%s445 + $0x80] sm:$0xff]
      %v940 = vld [vmem:[%s445 + $0x90] sm:$0xff]
      %v941 = vld [vmem:[%s445 + $0x98] sm:$0xff]
      %v942 = vld [vmem:[%s445 + $0xa8] sm:$0xff]
      %v943 = vld [vmem:[%s445 + $0xb0] sm:$0xff]
      %v944 = vld [vmem:[%s445 + $0xc0] sm:$0xff]
      %v945 = vld [vmem:[%s445 + $0xc8] sm:$0xff]
      %v946 = vld [vmem:[%s445 + $0xd8] sm:$0xff]
      %v947 = vld [vmem:[%s445 + $0xe0] sm:$0xff]
      %v948 = vld [vmem:[%s445 + $0xf0] sm:$0xff]
      %v949 = vld [vmem:[%s445 + $0xf8] sm:$0xff]
      %v950 = vld [vmem:[%s445 + $0x108] sm:$0xff]
      %v951 = vld [vmem:[%s445 + $0x110] sm:$0xff]
      %v952 = vld [vmem:[%s445 + $0x120] sm:$0xff]
      %v953 = vld [vmem:[%s445 + $0x128] sm:$0xff]
      %v954 = vld [vmem:[%s445 + $0x138] sm:$0xff]
      %v955 = vld [vmem:[%s445 + $0x140] sm:$0xff]
      %v956 = vld [vmem:[%s445 + $0x150] sm:$0xff]
      %v957 = vld [vmem:[%s445 + $0x158] sm:$0xff]
      %v958 = vld [vmem:[%s445 + $0x168] sm:$0xff]
      %v959 = vld [vmem:[%s445 + $0x170] sm:$0xff]
      %992 = vrot.lane.b32.xlu0 %v928, 24
      %v993 = vpop.permute.xlu0 %992
      %994 = vrot.lane.b32.xlu0 %v929, 24
      %v995 = vpop.permute.xlu0 %994
      %996 = vrot.lane.b32.xlu0 %v930, 24
      %v997 = vpop.permute.xlu0 %996
      %998 = vrot.lane.b32.xlu0 %v931, 24
      %v999 = vpop.permute.xlu0 %998
      %1000 = vrot.lane.b32.xlu0 %v932, 24
      %v1001 = vpop.permute.xlu0 %1000
      %1002 = vrot.lane.b32.xlu0 %v933, 24
      %v1003 = vpop.permute.xlu0 %1002
      %1004 = vrot.lane.b32.xlu0 %v934, 24
      %v1005 = vpop.permute.xlu0 %1004
      %1006 = vrot.lane.b32.xlu0 %v935, 24
      %v1007 = vpop.permute.xlu0 %1006
      %1008 = vrot.lane.b32.xlu0 %v936, 24
      %v1009 = vpop.permute.xlu0 %1008
      %1010 = vrot.lane.b32.xlu0 %v937, 24
      %v1011 = vpop.permute.xlu0 %1010
      %1012 = vrot.lane.b32.xlu0 %v938, 24
      %v1013 = vpop.permute.xlu0 %1012
      %1014 = vrot.lane.b32.xlu0 %v939, 24
      %v1015 = vpop.permute.xlu0 %1014
      %1016 = vrot.lane.b32.xlu0 %v940, 24
      %v1017 = vpop.permute.xlu0 %1016
      %1018 = vrot.lane.b32.xlu0 %v941, 24
      %v1019 = vpop.permute.xlu0 %1018
      %1020 = vrot.lane.b32.xlu0 %v942, 24
      %v1021 = vpop.permute.xlu0 %1020
      %1022 = vrot.lane.b32.xlu0 %v943, 24
      %v1023 = vpop.permute.xlu0 %1022
      %1024 = vrot.lane.b32.xlu0 %v944, 24
      %v1025 = vpop.permute.xlu0 %1024
      %1026 = vrot.lane.b32.xlu0 %v945, 24
      %v1027 = vpop.permute.xlu0 %1026
      %1028 = vrot.lane.b32.xlu0 %v946, 24
      %v1029 = vpop.permute.xlu0 %1028
      %1030 = vrot.lane.b32.xlu0 %v947, 24
      %v1031 = vpop.permute.xlu0 %1030
      %1032 = vrot.lane.b32.xlu0 %v948, 24
      %v1033 = vpop.permute.xlu0 %1032
      %1034 = vrot.lane.b32.xlu0 %v949, 24
      %v1035 = vpop.permute.xlu0 %1034
      %1036 = vrot.lane.b32.xlu0 %v950, 24
      %v1037 = vpop.permute.xlu0 %1036
      %1038 = vrot.lane.b32.xlu0 %v951, 24
      %v1039 = vpop.permute.xlu0 %1038
      %1040 = vrot.lane.b32.xlu0 %v952, 24
      %v1041 = vpop.permute.xlu0 %1040
      %1042 = vrot.lane.b32.xlu0 %v953, 24
      %v1043 = vpop.permute.xlu0 %1042
      %1044 = vrot.lane.b32.xlu0 %v954, 24
      %v1045 = vpop.permute.xlu0 %1044
      %1046 = vrot.lane.b32.xlu0 %v955, 24
      %v1047 = vpop.permute.xlu0 %1046
      %1048 = vrot.lane.b32.xlu0 %v956, 24
      %v1049 = vpop.permute.xlu0 %1048
      %1050 = vrot.lane.b32.xlu0 %v957, 24
      %v1051 = vpop.permute.xlu0 %1050
      %1052 = vrot.lane.b32.xlu0 %v958, 24
      %v1053 = vpop.permute.xlu0 %1052
      %1054 = vrot.lane.b32.xlu0 %v959, 24
      %v1055 = vpop.permute.xlu0 %1054
      %vm1088 = vcmask 261312
      %1089 = vst.msk [vmem:[#allocation3] sm:$0xff] %vm1088, %v993
      %1090 = vst.msk [vmem:[#allocation3 + $0x8] sm:$0xff] %vm1088, %v995
      %1091 = vst.msk [vmem:[#allocation3 + $0x10] sm:$0xff] %vm1088, %v997
      %1092 = vst.msk [vmem:[#allocation3 + $0x18] sm:$0xff] %vm1088, %v999
      %1093 = vst.msk [vmem:[#allocation3 + $0x20] sm:$0xff] %vm1088, %v1001
      %1094 = vst.msk [vmem:[#allocation3 + $0x28] sm:$0xff] %vm1088, %v1003
      %1095 = vst.msk [vmem:[#allocation3 + $0x30] sm:$0xff] %vm1088, %v1005
      %1096 = vst.msk [vmem:[#allocation3 + $0x38] sm:$0xff] %vm1088, %v1007
      %1097 = vst.msk [vmem:[#allocation3 + $0x40] sm:$0xff] %vm1088, %v1009
      %1098 = vst.msk [vmem:[#allocation3 + $0x48] sm:$0xff] %vm1088, %v1011
      %1099 = vst.msk [vmem:[#allocation3 + $0x50] sm:$0xff] %vm1088, %v1013
      %1100 = vst.msk [vmem:[#allocation3 + $0x58] sm:$0xff] %vm1088, %v1015
      %1101 = vst.msk [vmem:[#allocation3 + $0x60] sm:$0xff] %vm1088, %v1017
      %1102 = vst.msk [vmem:[#allocation3 + $0x68] sm:$0xff] %vm1088, %v1019
      %1103 = vst.msk [vmem:[#allocation3 + $0x70] sm:$0xff] %vm1088, %v1021
      %1104 = vst.msk [vmem:[#allocation3 + $0x78] sm:$0xff] %vm1088, %v1023
      %1105 = vst.msk [vmem:[#allocation3 + $0x80] sm:$0xff] %vm1088, %v1025
      %1106 = vst.msk [vmem:[#allocation3 + $0x88] sm:$0xff] %vm1088, %v1027
      %1107 = vst.msk [vmem:[#allocation3 + $0x90] sm:$0xff] %vm1088, %v1029
      %1108 = vst.msk [vmem:[#allocation3 + $0x98] sm:$0xff] %vm1088, %v1031
      %1109 = vst.msk [vmem:[#allocation3 + $0xa0] sm:$0xff] %vm1088, %v1033
      %1110 = vst.msk [vmem:[#allocation3 + $0xa8] sm:$0xff] %vm1088, %v1035
      %1111 = vst.msk [vmem:[#allocation3 + $0xb0] sm:$0xff] %vm1088, %v1037
      %1112 = vst.msk [vmem:[#allocation3 + $0xb8] sm:$0xff] %vm1088, %v1039
      %1113 = vst.msk [vmem:[#allocation3 + $0xc0] sm:$0xff] %vm1088, %v1041
      %1114 = vst.msk [vmem:[#allocation3 + $0xc8] sm:$0xff] %vm1088, %v1043
      %1115 = vst.msk [vmem:[#allocation3 + $0xd0] sm:$0xff] %vm1088, %v1045
      %1116 = vst.msk [vmem:[#allocation3 + $0xd8] sm:$0xff] %vm1088, %v1047
      %1117 = vst.msk [vmem:[#allocation3 + $0xe0] sm:$0xff] %vm1088, %v1049
      %1118 = vst.msk [vmem:[#allocation3 + $0xe8] sm:$0xff] %vm1088, %v1051
      %1119 = vst.msk [vmem:[#allocation3 + $0xf0] sm:$0xff] %vm1088, %v1053
      %1120 = vst.msk [vmem:[#allocation3 + $0xf8] sm:$0xff] %vm1088, %v1055
      %v1121 = vld [vmem:[%s445 + $0x1] sm:$0xff]
      %v1122 = vld [vmem:[%s445 + $0x9] sm:$0xff]
      %v1123 = vld [vmem:[%s445 + $0x19] sm:$0xff]
      %v1124 = vld [vmem:[%s445 + $0x21] sm:$0xff]
      %v1125 = vld [vmem:[%s445 + $0x31] sm:$0xff]
      %v1126 = vld [vmem:[%s445 + $0x39] sm:$0xff]
      %v1127 = vld [vmem:[%s445 + $0x49] sm:$0xff]
      %v1128 = vld [vmem:[%s445 + $0x51] sm:$0xff]
      %v1129 = vld [vmem:[%s445 + $0x61] sm:$0xff]
      %v1130 = vld [vmem:[%s445 + $0x69] sm:$0xff]
      %v1131 = vld [vmem:[%s445 + $0x79] sm:$0xff]
      %v1132 = vld [vmem:[%s445 + $0x81] sm:$0xff]
      %v1133 = vld [vmem:[%s445 + $0x91] sm:$0xff]
      %v1134 = vld [vmem:[%s445 + $0x99] sm:$0xff]
      %v1135 = vld [vmem:[%s445 + $0xa9] sm:$0xff]
      %v1136 = vld [vmem:[%s445 + $0xb1] sm:$0xff]
      %v1137 = vld [vmem:[%s445 + $0xc1] sm:$0xff]
      %v1138 = vld [vmem:[%s445 + $0xc9] sm:$0xff]
      %v1139 = vld [vmem:[%s445 + $0xd9] sm:$0xff]
      %v1140 = vld [vmem:[%s445 + $0xe1] sm:$0xff]
      %v1141 = vld [vmem:[%s445 + $0xf1] sm:$0xff]
      %v1142 = vld [vmem:[%s445 + $0xf9] sm:$0xff]
      %v1143 = vld [vmem:[%s445 + $0x109] sm:$0xff]
      %v1144 = vld [vmem:[%s445 + $0x111] sm:$0xff]
      %v1145 = vld [vmem:[%s445 + $0x121] sm:$0xff]
      %v1146 = vld [vmem:[%s445 + $0x129] sm:$0xff]
      %v1147 = vld [vmem:[%s445 + $0x139] sm:$0xff]
      %v1148 = vld [vmem:[%s445 + $0x141] sm:$0xff]
      %v1149 = vld [vmem:[%s445 + $0x151] sm:$0xff]
      %v1150 = vld [vmem:[%s445 + $0x159] sm:$0xff]
      %v1151 = vld [vmem:[%s445 + $0x169] sm:$0xff]
      %v1152 = vld [vmem:[%s445 + $0x171] sm:$0xff]
      %1185 = vrot.lane.b32.xlu0 %v1121, 32
      %v1186 = vpop.permute.xlu0 %1185
      %1187 = vrot.lane.b32.xlu0 %v1122, 32
      %v1188 = vpop.permute.xlu0 %1187
      %1189 = vrot.lane.b32.xlu0 %v1123, 32
      %v1190 = vpop.permute.xlu0 %1189
      %1191 = vrot.lane.b32.xlu0 %v1124, 32
      %v1192 = vpop.permute.xlu0 %1191
      %1193 = vrot.lane.b32.xlu0 %v1125, 32
      %v1194 = vpop.permute.xlu0 %1193
      %1195 = vrot.lane.b32.xlu0 %v1126, 32
      %v1196 = vpop.permute.xlu0 %1195
      %1197 = vrot.lane.b32.xlu0 %v1127, 32
      %v1198 = vpop.permute.xlu0 %1197
      %1199 = vrot.lane.b32.xlu0 %v1128, 32
      %v1200 = vpop.permute.xlu0 %1199
      %1201 = vrot.lane.b32.xlu0 %v1129, 32
      %v1202 = vpop.permute.xlu0 %1201
      %1203 = vrot.lane.b32.xlu0 %v1130, 32
      %v1204 = vpop.permute.xlu0 %1203
      %1205 = vrot.lane.b32.xlu0 %v1131, 32
      %v1206 = vpop.permute.xlu0 %1205
      %1207 = vrot.lane.b32.xlu0 %v1132, 32
      %v1208 = vpop.permute.xlu0 %1207
      %1209 = vrot.lane.b32.xlu0 %v1133, 32
      %v1210 = vpop.permute.xlu0 %1209
      %1211 = vrot.lane.b32.xlu0 %v1134, 32
      %v1212 = vpop.permute.xlu0 %1211
      %1213 = vrot.lane.b32.xlu0 %v1135, 32
      %v1214 = vpop.permute.xlu0 %1213
      %1215 = vrot.lane.b32.xlu0 %v1136, 32
      %v1216 = vpop.permute.xlu0 %1215
      %1217 = vrot.lane.b32.xlu0 %v1137, 32
      %v1218 = vpop.permute.xlu0 %1217
      %1219 = vrot.lane.b32.xlu0 %v1138, 32
      %v1220 = vpop.permute.xlu0 %1219
      %1221 = vrot.lane.b32.xlu0 %v1139, 32
      %v1222 = vpop.permute.xlu0 %1221
      %1223 = vrot.lane.b32.xlu0 %v1140, 32
      %v1224 = vpop.permute.xlu0 %1223
      %1225 = vrot.lane.b32.xlu0 %v1141, 32
      %v1226 = vpop.permute.xlu0 %1225
      %1227 = vrot.lane.b32.xlu0 %v1142, 32
      %v1228 = vpop.permute.xlu0 %1227
      %1229 = vrot.lane.b32.xlu0 %v1143, 32
      %v1230 = vpop.permute.xlu0 %1229
      %1231 = vrot.lane.b32.xlu0 %v1144, 32
      %v1232 = vpop.permute.xlu0 %1231
      %1233 = vrot.lane.b32.xlu0 %v1145, 32
      %v1234 = vpop.permute.xlu0 %1233
      %1235 = vrot.lane.b32.xlu0 %v1146, 32
      %v1236 = vpop.permute.xlu0 %1235
      %1237 = vrot.lane.b32.xlu0 %v1147, 32
      %v1238 = vpop.permute.xlu0 %1237
      %1239 = vrot.lane.b32.xlu0 %v1148, 32
      %v1240 = vpop.permute.xlu0 %1239
      %1241 = vrot.lane.b32.xlu0 %v1149, 32
      %v1242 = vpop.permute.xlu0 %1241
      %1243 = vrot.lane.b32.xlu0 %v1150, 32
      %v1244 = vpop.permute.xlu0 %1243
      %1245 = vrot.lane.b32.xlu0 %v1151, 32
      %v1246 = vpop.permute.xlu0 %1245
      %1247 = vrot.lane.b32.xlu0 %v1152, 32
      %v1248 = vpop.permute.xlu0 %1247
      %vm1281 = vcmask 326912
      %1282 = vst.msk [vmem:[#allocation3] sm:$0xff] %vm1281, %v1186
      %1283 = vst.msk [vmem:[#allocation3 + $0x8] sm:$0xff] %vm1281, %v1188
      %1284 = vst.msk [vmem:[#allocation3 + $0x10] sm:$0xff] %vm1281, %v1190
      %1285 = vst.msk [vmem:[#allocation3 + $0x18] sm:$0xff] %vm1281, %v1192
      %1286 = vst.msk [vmem:[#allocation3 + $0x20] sm:$0xff] %vm1281, %v1194
      %1287 = vst.msk [vmem:[#allocation3 + $0x28] sm:$0xff] %vm1281, %v1196
      %1288 = vst.msk [vmem:[#allocation3 + $0x30] sm:$0xff] %vm1281, %v1198
      %1289 = vst.msk [vmem:[#allocation3 + $0x38] sm:$0xff] %vm1281, %v1200
      %1290 = vst.msk [vmem:[#allocation3 + $0x40] sm:$0xff] %vm1281, %v1202
      %1291 = vst.msk [vmem:[#allocation3 + $0x48] sm:$0xff] %vm1281, %v1204
      %1292 = vst.msk [vmem:[#allocation3 + $0x50] sm:$0xff] %vm1281, %v1206
      %1293 = vst.msk [vmem:[#allocation3 + $0x58] sm:$0xff] %vm1281, %v1208
      %1294 = vst.msk [vmem:[#allocation3 + $0x60] sm:$0xff] %vm1281, %v1210
      %1295 = vst.msk [vmem:[#allocation3 + $0x68] sm:$0xff] %vm1281, %v1212
      %1296 = vst.msk [vmem:[#allocation3 + $0x70] sm:$0xff] %vm1281, %v1214
      %1297 = vst.msk [vmem:[#allocation3 + $0x78] sm:$0xff] %vm1281, %v1216
      %1298 = vst.msk [vmem:[#allocation3 + $0x80] sm:$0xff] %vm1281, %v1218
      %1299 = vst.msk [vmem:[#allocation3 + $0x88] sm:$0xff] %vm1281, %v1220
      %1300 = vst.msk [vmem:[#allocation3 + $0x90] sm:$0xff] %vm1281, %v1222
      %1301 = vst.msk [vmem:[#allocation3 + $0x98] sm:$0xff] %vm1281, %v1224
      %1302 = vst.msk [vmem:[#allocation3 + $0xa0] sm:$0xff] %vm1281, %v1226
      %1303 = vst.msk [vmem:[#allocation3 + $0xa8] sm:$0xff] %vm1281, %v1228
      %1304 = vst.msk [vmem:[#allocation3 + $0xb0] sm:$0xff] %vm1281, %v1230
      %1305 = vst.msk [vmem:[#allocation3 + $0xb8] sm:$0xff] %vm1281, %v1232
      %1306 = vst.msk [vmem:[#allocation3 + $0xc0] sm:$0xff] %vm1281, %v1234
      %1307 = vst.msk [vmem:[#allocation3 + $0xc8] sm:$0xff] %vm1281, %v1236
      %1308 = vst.msk [vmem:[#allocation3 + $0xd0] sm:$0xff] %vm1281, %v1238
      %1309 = vst.msk [vmem:[#allocation3 + $0xd8] sm:$0xff] %vm1281, %v1240
      %1310 = vst.msk [vmem:[#allocation3 + $0xe0] sm:$0xff] %vm1281, %v1242
      %1311 = vst.msk [vmem:[#allocation3 + $0xe8] sm:$0xff] %vm1281, %v1244
      %1312 = vst.msk [vmem:[#allocation3 + $0xf0] sm:$0xff] %vm1281, %v1246
      %1313 = vst.msk [vmem:[#allocation3 + $0xf8] sm:$0xff] %vm1281, %v1248
      %v1314 = vld [vmem:[%s445 + $0x2] sm:$0xff]
      %v1315 = vld [vmem:[%s445 + $0xa] sm:$0xff]
      %v1316 = vld [vmem:[%s445 + $0x1a] sm:$0xff]
      %v1317 = vld [vmem:[%s445 + $0x22] sm:$0xff]
      %v1318 = vld [vmem:[%s445 + $0x32] sm:$0xff]
      %v1319 = vld [vmem:[%s445 + $0x3a] sm:$0xff]
      %v1320 = vld [vmem:[%s445 + $0x4a] sm:$0xff]
      %v1321 = vld [vmem:[%s445 + $0x52] sm:$0xff]
      %v1322 = vld [vmem:[%s445 + $0x62] sm:$0xff]
      %v1323 = vld [vmem:[%s445 + $0x6a] sm:$0xff]
      %v1324 = vld [vmem:[%s445 + $0x7a] sm:$0xff]
      %v1325 = vld [vmem:[%s445 + $0x82] sm:$0xff]
      %v1326 = vld [vmem:[%s445 + $0x92] sm:$0xff]
      %v1327 = vld [vmem:[%s445 + $0x9a] sm:$0xff]
      %v1328 = vld [vmem:[%s445 + $0xaa] sm:$0xff]
      %v1329 = vld [vmem:[%s445 + $0xb2] sm:$0xff]
      %v1330 = vld [vmem:[%s445 + $0xc2] sm:$0xff]
      %v1331 = vld [vmem:[%s445 + $0xca] sm:$0xff]
      %v1332 = vld [vmem:[%s445 + $0xda] sm:$0xff]
      %v1333 = vld [vmem:[%s445 + $0xe2] sm:$0xff]
      %v1334 = vld [vmem:[%s445 + $0xf2] sm:$0xff]
      %v1335 = vld [vmem:[%s445 + $0xfa] sm:$0xff]
      %v1336 = vld [vmem:[%s445 + $0x10a] sm:$0xff]
      %v1337 = vld [vmem:[%s445 + $0x112] sm:$0xff]
      %v1338 = vld [vmem:[%s445 + $0x122] sm:$0xff]
      %v1339 = vld [vmem:[%s445 + $0x12a] sm:$0xff]
      %v1340 = vld [vmem:[%s445 + $0x13a] sm:$0xff]
      %v1341 = vld [vmem:[%s445 + $0x142] sm:$0xff]
      %v1342 = vld [vmem:[%s445 + $0x152] sm:$0xff]
      %v1343 = vld [vmem:[%s445 + $0x15a] sm:$0xff]
      %v1344 = vld [vmem:[%s445 + $0x16a] sm:$0xff]
      %v1345 = vld [vmem:[%s445 + $0x172] sm:$0xff]
      %1378 = vrot.lane.b32.xlu0 %v1314, 40
      %v1379 = vpop.permute.xlu0 %1378
      %1380 = vrot.lane.b32.xlu0 %v1315, 40
      %v1381 = vpop.permute.xlu0 %1380
      %1382 = vrot.lane.b32.xlu0 %v1316, 40
      %v1383 = vpop.permute.xlu0 %1382
      %1384 = vrot.lane.b32.xlu0 %v1317, 40
      %v1385 = vpop.permute.xlu0 %1384
      %1386 = vrot.lane.b32.xlu0 %v1318, 40
      %v1387 = vpop.permute.xlu0 %1386
      %1388 = vrot.lane.b32.xlu0 %v1319, 40
      %v1389 = vpop.permute.xlu0 %1388
      %1390 = vrot.lane.b32.xlu0 %v1320, 40
      %v1391 = vpop.permute.xlu0 %1390
      %1392 = vrot.lane.b32.xlu0 %v1321, 40
      %v1393 = vpop.permute.xlu0 %1392
      %1394 = vrot.lane.b32.xlu0 %v1322, 40
      %v1395 = vpop.permute.xlu0 %1394
      %1396 = vrot.lane.b32.xlu0 %v1323, 40
      %v1397 = vpop.permute.xlu0 %1396
      %1398 = vrot.lane.b32.xlu0 %v1324, 40
      %v1399 = vpop.permute.xlu0 %1398
      %1400 = vrot.lane.b32.xlu0 %v1325, 40
      %v1401 = vpop.permute.xlu0 %1400
      %1402 = vrot.lane.b32.xlu0 %v1326, 40
      %v1403 = vpop.permute.xlu0 %1402
      %1404 = vrot.lane.b32.xlu0 %v1327, 40
      %v1405 = vpop.permute.xlu0 %1404
      %1406 = vrot.lane.b32.xlu0 %v1328, 40
      %v1407 = vpop.permute.xlu0 %1406
      %1408 = vrot.lane.b32.xlu0 %v1329, 40
      %v1409 = vpop.permute.xlu0 %1408
      %1410 = vrot.lane.b32.xlu0 %v1330, 40
      %v1411 = vpop.permute.xlu0 %1410
      %1412 = vrot.lane.b32.xlu0 %v1331, 40
      %v1413 = vpop.permute.xlu0 %1412
      %1414 = vrot.lane.b32.xlu0 %v1332, 40
      %v1415 = vpop.permute.xlu0 %1414
      %1416 = vrot.lane.b32.xlu0 %v1333, 40
      %v1417 = vpop.permute.xlu0 %1416
      %1418 = vrot.lane.b32.xlu0 %v1334, 40
      %v1419 = vpop.permute.xlu0 %1418
      %1420 = vrot.lane.b32.xlu0 %v1335, 40
      %v1421 = vpop.permute.xlu0 %1420
      %1422 = vrot.lane.b32.xlu0 %v1336, 40
      %v1423 = vpop.permute.xlu0 %1422
      %1424 = vrot.lane.b32.xlu0 %v1337, 40
      %v1425 = vpop.permute.xlu0 %1424
      %1426 = vrot.lane.b32.xlu0 %v1338, 40
      %v1427 = vpop.permute.xlu0 %1426
      %1428 = vrot.lane.b32.xlu0 %v1339, 40
      %v1429 = vpop.permute.xlu0 %1428
      %1430 = vrot.lane.b32.xlu0 %v1340, 40
      %v1431 = vpop.permute.xlu0 %1430
      %1432 = vrot.lane.b32.xlu0 %v1341, 40
      %v1433 = vpop.permute.xlu0 %1432
      %1434 = vrot.lane.b32.xlu0 %v1342, 40
      %v1435 = vpop.permute.xlu0 %1434
      %1436 = vrot.lane.b32.xlu0 %v1343, 40
      %v1437 = vpop.permute.xlu0 %1436
      %1438 = vrot.lane.b32.xlu0 %v1344, 40
      %v1439 = vpop.permute.xlu0 %1438
      %1440 = vrot.lane.b32.xlu0 %v1345, 40
      %v1441 = vpop.permute.xlu0 %1440
      %vm1474 = vcmask 392512
      %1475 = vst.msk [vmem:[#allocation3] sm:$0xff] %vm1474, %v1379
      %1476 = vst.msk [vmem:[#allocation3 + $0x8] sm:$0xff] %vm1474, %v1381
      %1477 = vst.msk [vmem:[#allocation3 + $0x10] sm:$0xff] %vm1474, %v1383
      %1478 = vst.msk [vmem:[#allocation3 + $0x18] sm:$0xff] %vm1474, %v1385
      %1479 = vst.msk [vmem:[#allocation3 + $0x20] sm:$0xff] %vm1474, %v1387
      %1480 = vst.msk [vmem:[#allocation3 + $0x28] sm:$0xff] %vm1474, %v1389
      %1481 = vst.msk [vmem:[#allocation3 + $0x30] sm:$0xff] %vm1474, %v1391
      %1482 = vst.msk [vmem:[#allocation3 + $0x38] sm:$0xff] %vm1474, %v1393
      %1483 = vst.msk [vmem:[#allocation3 + $0x40] sm:$0xff] %vm1474, %v1395
      %1484 = vst.msk [vmem:[#allocation3 + $0x48] sm:$0xff] %vm1474, %v1397
      %1485 = vst.msk [vmem:[#allocation3 + $0x50] sm:$0xff] %vm1474, %v1399
      %1486 = vst.msk [vmem:[#allocation3 + $0x58] sm:$0xff] %vm1474, %v1401
      %1487 = vst.msk [vmem:[#allocation3 + $0x60] sm:$0xff] %vm1474, %v1403
      %1488 = vst.msk [vmem:[#allocation3 + $0x68] sm:$0xff] %vm1474, %v1405
      %1489 = vst.msk [vmem:[#allocation3 + $0x70] sm:$0xff] %vm1474, %v1407
      %1490 = vst.msk [vmem:[#allocation3 + $0x78] sm:$0xff] %vm1474, %v1409
      %1491 = vst.msk [vmem:[#allocation3 + $0x80] sm:$0xff] %vm1474, %v1411
      %1492 = vst.msk [vmem:[#allocation3 + $0x88] sm:$0xff] %vm1474, %v1413
      %1493 = vst.msk [vmem:[#allocation3 + $0x90] sm:$0xff] %vm1474, %v1415
      %1494 = vst.msk [vmem:[#allocation3 + $0x98] sm:$0xff] %vm1474, %v1417
      %1495 = vst.msk [vmem:[#allocation3 + $0xa0] sm:$0xff] %vm1474, %v1419
      %1496 = vst.msk [vmem:[#allocation3 + $0xa8] sm:$0xff] %vm1474, %v1421
      %1497 = vst.msk [vmem:[#allocation3 + $0xb0] sm:$0xff] %vm1474, %v1423
      %1498 = vst.msk [vmem:[#allocation3 + $0xb8] sm:$0xff] %vm1474, %v1425
      %1499 = vst.msk [vmem:[#allocation3 + $0xc0] sm:$0xff] %vm1474, %v1427
      %1500 = vst.msk [vmem:[#allocation3 + $0xc8] sm:$0xff] %vm1474, %v1429
      %1501 = vst.msk [vmem:[#allocation3 + $0xd0] sm:$0xff] %vm1474, %v1431
      %1502 = vst.msk [vmem:[#allocation3 + $0xd8] sm:$0xff] %vm1474, %v1433
      %1503 = vst.msk [vmem:[#allocation3 + $0xe0] sm:$0xff] %vm1474, %v1435
      %1504 = vst.msk [vmem:[#allocation3 + $0xe8] sm:$0xff] %vm1474, %v1437
      %1505 = vst.msk [vmem:[#allocation3 + $0xf0] sm:$0xff] %vm1474, %v1439
      %1506 = vst.msk [vmem:[#allocation3 + $0xf8] sm:$0xff] %vm1474, %v1441
      %s1507 = scalar_lea.vmem [#allocation2], 48
      %v1508 = vld [vmem:[%s1507] sm:$0xff]
      %v1509 = vld [vmem:[%s1507 + $0x8] sm:$0xff]
      %v1510 = vld [vmem:[%s1507 + $0x18] sm:$0xff]
      %v1511 = vld [vmem:[%s1507 + $0x20] sm:$0xff]
      %v1512 = vld [vmem:[%s1507 + $0x30] sm:$0xff]
      %v1513 = vld [vmem:[%s1507 + $0x38] sm:$0xff]
      %v1514 = vld [vmem:[%s1507 + $0x48] sm:$0xff]
      %v1515 = vld [vmem:[%s1507 + $0x50] sm:$0xff]
      %v1516 = vld [vmem:[%s1507 + $0x60] sm:$0xff]
      %v1517 = vld [vmem:[%s1507 + $0x68] sm:$0xff]
      %v1518 = vld [vmem:[%s1507 + $0x78] sm:$0xff]
      %v1519 = vld [vmem:[%s1507 + $0x80] sm:$0xff]
      %v1520 = vld [vmem:[%s1507 + $0x90] sm:$0xff]
      %v1521 = vld [vmem:[%s1507 + $0x98] sm:$0xff]
      %v1522 = vld [vmem:[%s1507 + $0xa8] sm:$0xff]
      %v1523 = vld [vmem:[%s1507 + $0xb0] sm:$0xff]
      %v1524 = vld [vmem:[%s1507 + $0xc0] sm:$0xff]
      %v1525 = vld [vmem:[%s1507 + $0xc8] sm:$0xff]
      %v1526 = vld [vmem:[%s1507 + $0xd8] sm:$0xff]
      %v1527 = vld [vmem:[%s1507 + $0xe0] sm:$0xff]
      %v1528 = vld [vmem:[%s1507 + $0xf0] sm:$0xff]
      %v1529 = vld [vmem:[%s1507 + $0xf8] sm:$0xff]
      %v1530 = vld [vmem:[%s1507 + $0x108] sm:$0xff]
      %v1531 = vld [vmem:[%s1507 + $0x110] sm:$0xff]
      %v1532 = vld [vmem:[%s1507 + $0x120] sm:$0xff]
      %v1533 = vld [vmem:[%s1507 + $0x128] sm:$0xff]
      %v1534 = vld [vmem:[%s1507 + $0x138] sm:$0xff]
      %v1535 = vld [vmem:[%s1507 + $0x140] sm:$0xff]
      %v1536 = vld [vmem:[%s1507 + $0x150] sm:$0xff]
      %v1537 = vld [vmem:[%s1507 + $0x158] sm:$0xff]
      %v1538 = vld [vmem:[%s1507 + $0x168] sm:$0xff]
      %v1539 = vld [vmem:[%s1507 + $0x170] sm:$0xff]
      %1572 = vrot.lane.b32.xlu0 %v1508, 48
      %v1573 = vpop.permute.xlu0 %1572
      %1574 = vrot.lane.b32.xlu0 %v1509, 48
      %v1575 = vpop.permute.xlu0 %1574
      %1576 = vrot.lane.b32.xlu0 %v1510, 48
      %v1577 = vpop.permute.xlu0 %1576
      %1578 = vrot.lane.b32.xlu0 %v1511, 48
      %v1579 = vpop.permute.xlu0 %1578
      %1580 = vrot.lane.b32.xlu0 %v1512, 48
      %v1581 = vpop.permute.xlu0 %1580
      %1582 = vrot.lane.b32.xlu0 %v1513, 48
      %v1583 = vpop.permute.xlu0 %1582
      %1584 = vrot.lane.b32.xlu0 %v1514, 48
      %v1585 = vpop.permute.xlu0 %1584
      %1586 = vrot.lane.b32.xlu0 %v1515, 48
      %v1587 = vpop.permute.xlu0 %1586
      %1588 = vrot.lane.b32.xlu0 %v1516, 48
      %v1589 = vpop.permute.xlu0 %1588
      %1590 = vrot.lane.b32.xlu0 %v1517, 48
      %v1591 = vpop.permute.xlu0 %1590
      %1592 = vrot.lane.b32.xlu0 %v1518, 48
      %v1593 = vpop.permute.xlu0 %1592
      %1594 = vrot.lane.b32.xlu0 %v1519, 48
      %v1595 = vpop.permute.xlu0 %1594
      %1596 = vrot.lane.b32.xlu0 %v1520, 48
      %v1597 = vpop.permute.xlu0 %1596
      %1598 = vrot.lane.b32.xlu0 %v1521, 48
      %v1599 = vpop.permute.xlu0 %1598
      %1600 = vrot.lane.b32.xlu0 %v1522, 48
      %v1601 = vpop.permute.xlu0 %1600
      %1602 = vrot.lane.b32.xlu0 %v1523, 48
      %v1603 = vpop.permute.xlu0 %1602
      %1604 = vrot.lane.b32.xlu0 %v1524, 48
      %v1605 = vpop.permute.xlu0 %1604
      %1606 = vrot.lane.b32.xlu0 %v1525, 48
      %v1607 = vpop.permute.xlu0 %1606
      %1608 = vrot.lane.b32.xlu0 %v1526, 48
      %v1609 = vpop.permute.xlu0 %1608
      %1610 = vrot.lane.b32.xlu0 %v1527, 48
      %v1611 = vpop.permute.xlu0 %1610
      %1612 = vrot.lane.b32.xlu0 %v1528, 48
      %v1613 = vpop.permute.xlu0 %1612
      %1614 = vrot.lane.b32.xlu0 %v1529, 48
      %v1615 = vpop.permute.xlu0 %1614
      %1616 = vrot.lane.b32.xlu0 %v1530, 48
      %v1617 = vpop.permute.xlu0 %1616
      %1618 = vrot.lane.b32.xlu0 %v1531, 48
      %v1619 = vpop.permute.xlu0 %1618
      %1620 = vrot.lane.b32.xlu0 %v1532, 48
      %v1621 = vpop.permute.xlu0 %1620
      %1622 = vrot.lane.b32.xlu0 %v1533, 48
      %v1623 = vpop.permute.xlu0 %1622
      %1624 = vrot.lane.b32.xlu0 %v1534, 48
      %v1625 = vpop.permute.xlu0 %1624
      %1626 = vrot.lane.b32.xlu0 %v1535, 48
      %v1627 = vpop.permute.xlu0 %1626
      %1628 = vrot.lane.b32.xlu0 %v1536, 48
      %v1629 = vpop.permute.xlu0 %1628
      %1630 = vrot.lane.b32.xlu0 %v1537, 48
      %v1631 = vpop.permute.xlu0 %1630
      %1632 = vrot.lane.b32.xlu0 %v1538, 48
      %v1633 = vpop.permute.xlu0 %1632
      %1634 = vrot.lane.b32.xlu0 %v1539, 48
      %v1635 = vpop.permute.xlu0 %1634
      %vm1668 = vcmask 458112
      %1669 = vst.msk [vmem:[#allocation3] sm:$0xff] %vm1668, %v1573
      %1670 = vst.msk [vmem:[#allocation3 + $0x8] sm:$0xff] %vm1668, %v1575
      %1671 = vst.msk [vmem:[#allocation3 + $0x10] sm:$0xff] %vm1668, %v1577
      %1672 = vst.msk [vmem:[#allocation3 + $0x18] sm:$0xff] %vm1668, %v1579
      %1673 = vst.msk [vmem:[#allocation3 + $0x20] sm:$0xff] %vm1668, %v1581
      %1674 = vst.msk [vmem:[#allocation3 + $0x28] sm:$0xff] %vm1668, %v1583
      %1675 = vst.msk [vmem:[#allocation3 + $0x30] sm:$0xff] %vm1668, %v1585
      %1676 = vst.msk [vmem:[#allocation3 + $0x38] sm:$0xff] %vm1668, %v1587
      %1677 = vst.msk [vmem:[#allocation3 + $0x40] sm:$0xff] %vm1668, %v1589
      %1678 = vst.msk [vmem:[#allocation3 + $0x48] sm:$0xff] %vm1668, %v1591
      %1679 = vst.msk [vmem:[#allocation3 + $0x50] sm:$0xff] %vm1668, %v1593
      %1680 = vst.msk [vmem:[#allocation3 + $0x58] sm:$0xff] %vm1668, %v1595
      %1681 = vst.msk [vmem:[#allocation3 + $0x60] sm:$0xff] %vm1668, %v1597
      %1682 = vst.msk [vmem:[#allocation3 + $0x68] sm:$0xff] %vm1668, %v1599
      %1683 = vst.msk [vmem:[#allocation3 + $0x70] sm:$0xff] %vm1668, %v1601
      %1684 = vst.msk [vmem:[#allocation3 + $0x78] sm:$0xff] %vm1668, %v1603
      %1685 = vst.msk [vmem:[#allocation3 + $0x80] sm:$0xff] %vm1668, %v1605
      %1686 = vst.msk [vmem:[#allocation3 + $0x88] sm:$0xff] %vm1668, %v1607
      %1687 = vst.msk [vmem:[#allocation3 + $0x90] sm:$0xff] %vm1668, %v1609
      %1688 = vst.msk [vmem:[#allocation3 + $0x98] sm:$0xff] %vm1668, %v1611
      %1689 = vst.msk [vmem:[#allocation3 + $0xa0] sm:$0xff] %vm1668, %v1613
      %1690 = vst.msk [vmem:[#allocation3 + $0xa8] sm:$0xff] %vm1668, %v1615
      %1691 = vst.msk [vmem:[#allocation3 + $0xb0] sm:$0xff] %vm1668, %v1617
      %1692 = vst.msk [vmem:[#allocation3 + $0xb8] sm:$0xff] %vm1668, %v1619
      %1693 = vst.msk [vmem:[#allocation3 + $0xc0] sm:$0xff] %vm1668, %v1621
      %1694 = vst.msk [vmem:[#allocation3 + $0xc8] sm:$0xff] %vm1668, %v1623
      %1695 = vst.msk [vmem:[#allocation3 + $0xd0] sm:$0xff] %vm1668, %v1625
      %1696 = vst.msk [vmem:[#allocation3 + $0xd8] sm:$0xff] %vm1668, %v1627
      %1697 = vst.msk [vmem:[#allocation3 + $0xe0] sm:$0xff] %vm1668, %v1629
      %1698 = vst.msk [vmem:[#allocation3 + $0xe8] sm:$0xff] %vm1668, %v1631
      %1699 = vst.msk [vmem:[#allocation3 + $0xf0] sm:$0xff] %vm1668, %v1633
      %1700 = vst.msk [vmem:[#allocation3 + $0xf8] sm:$0xff] %vm1668, %v1635
      %v1701 = vld [vmem:[%s1507 + $0x1] sm:$0xff]
      %v1702 = vld [vmem:[%s1507 + $0x9] sm:$0xff]
      %v1703 = vld [vmem:[%s1507 + $0x19] sm:$0xff]
      %v1704 = vld [vmem:[%s1507 + $0x21] sm:$0xff]
      %v1705 = vld [vmem:[%s1507 + $0x31] sm:$0xff]
      %v1706 = vld [vmem:[%s1507 + $0x39] sm:$0xff]
      %v1707 = vld [vmem:[%s1507 + $0x49] sm:$0xff]
      %v1708 = vld [vmem:[%s1507 + $0x51] sm:$0xff]
      %v1709 = vld [vmem:[%s1507 + $0x61] sm:$0xff]
      %v1710 = vld [vmem:[%s1507 + $0x69] sm:$0xff]
      %v1711 = vld [vmem:[%s1507 + $0x79] sm:$0xff]
      %v1712 = vld [vmem:[%s1507 + $0x81] sm:$0xff]
      %v1713 = vld [vmem:[%s1507 + $0x91] sm:$0xff]
      %v1714 = vld [vmem:[%s1507 + $0x99] sm:$0xff]
      %v1715 = vld [vmem:[%s1507 + $0xa9] sm:$0xff]
      %v1716 = vld [vmem:[%s1507 + $0xb1] sm:$0xff]
      %v1717 = vld [vmem:[%s1507 + $0xc1] sm:$0xff]
      %v1718 = vld [vmem:[%s1507 + $0xc9] sm:$0xff]
      %v1719 = vld [vmem:[%s1507 + $0xd9] sm:$0xff]
      %v1720 = vld [vmem:[%s1507 + $0xe1] sm:$0xff]
      %v1721 = vld [vmem:[%s1507 + $0xf1] sm:$0xff]
      %v1722 = vld [vmem:[%s1507 + $0xf9] sm:$0xff]
      %v1723 = vld [vmem:[%s1507 + $0x109] sm:$0xff]
      %v1724 = vld [vmem:[%s1507 + $0x111] sm:$0xff]
      %v1725 = vld [vmem:[%s1507 + $0x121] sm:$0xff]
      %v1726 = vld [vmem:[%s1507 + $0x129] sm:$0xff]
      %v1727 = vld [vmem:[%s1507 + $0x139] sm:$0xff]
      %v1728 = vld [vmem:[%s1507 + $0x141] sm:$0xff]
      %v1729 = vld [vmem:[%s1507 + $0x151] sm:$0xff]
      %v1730 = vld [vmem:[%s1507 + $0x159] sm:$0xff]
      %v1731 = vld [vmem:[%s1507 + $0x169] sm:$0xff]
      %v1732 = vld [vmem:[%s1507 + $0x171] sm:$0xff]
      %1765 = vrot.lane.b32.xlu0 %v1701, 56
      %v1766 = vpop.permute.xlu0 %1765
      %1767 = vrot.lane.b32.xlu0 %v1702, 56
      %v1768 = vpop.permute.xlu0 %1767
      %1769 = vrot.lane.b32.xlu0 %v1703, 56
      %v1770 = vpop.permute.xlu0 %1769
      %1771 = vrot.lane.b32.xlu0 %v1704, 56
      %v1772 = vpop.permute.xlu0 %1771
      %1773 = vrot.lane.b32.xlu0 %v1705, 56
      %v1774 = vpop.permute.xlu0 %1773
      %1775 = vrot.lane.b32.xlu0 %v1706, 56
      %v1776 = vpop.permute.xlu0 %1775
      %1777 = vrot.lane.b32.xlu0 %v1707, 56
      %v1778 = vpop.permute.xlu0 %1777
      %1779 = vrot.lane.b32.xlu0 %v1708, 56
      %v1780 = vpop.permute.xlu0 %1779
      %1781 = vrot.lane.b32.xlu0 %v1709, 56
      %v1782 = vpop.permute.xlu0 %1781
      %1783 = vrot.lane.b32.xlu0 %v1710, 56
      %v1784 = vpop.permute.xlu0 %1783
      %1785 = vrot.lane.b32.xlu0 %v1711, 56
      %v1786 = vpop.permute.xlu0 %1785
      %1787 = vrot.lane.b32.xlu0 %v1712, 56
      %v1788 = vpop.permute.xlu0 %1787
      %1789 = vrot.lane.b32.xlu0 %v1713, 56
      %v1790 = vpop.permute.xlu0 %1789
      %1791 = vrot.lane.b32.xlu0 %v1714, 56
      %v1792 = vpop.permute.xlu0 %1791
      %1793 = vrot.lane.b32.xlu0 %v1715, 56
      %v1794 = vpop.permute.xlu0 %1793
      %1795 = vrot.lane.b32.xlu0 %v1716, 56
      %v1796 = vpop.permute.xlu0 %1795
      %1797 = vrot.lane.b32.xlu0 %v1717, 56
      %v1798 = vpop.permute.xlu0 %1797
      %1799 = vrot.lane.b32.xlu0 %v1718, 56
      %v1800 = vpop.permute.xlu0 %1799
      %1801 = vrot.lane.b32.xlu0 %v1719, 56
      %v1802 = vpop.permute.xlu0 %1801
      %1803 = vrot.lane.b32.xlu0 %v1720, 56
      %v1804 = vpop.permute.xlu0 %1803
      %1805 = vrot.lane.b32.xlu0 %v1721, 56
      %v1806 = vpop.permute.xlu0 %1805
      %1807 = vrot.lane.b32.xlu0 %v1722, 56
      %v1808 = vpop.permute.xlu0 %1807
      %1809 = vrot.lane.b32.xlu0 %v1723, 56
      %v1810 = vpop.permute.xlu0 %1809
      %1811 = vrot.lane.b32.xlu0 %v1724, 56
      %v1812 = vpop.permute.xlu0 %1811
      %1813 = vrot.lane.b32.xlu0 %v1725, 56
      %v1814 = vpop.permute.xlu0 %1813
      %1815 = vrot.lane.b32.xlu0 %v1726, 56
      %v1816 = vpop.permute.xlu0 %1815
      %1817 = vrot.lane.b32.xlu0 %v1727, 56
      %v1818 = vpop.permute.xlu0 %1817
      %1819 = vrot.lane.b32.xlu0 %v1728, 56
      %v1820 = vpop.permute.xlu0 %1819
      %1821 = vrot.lane.b32.xlu0 %v1729, 56
      %v1822 = vpop.permute.xlu0 %1821
      %1823 = vrot.lane.b32.xlu0 %v1730, 56
      %v1824 = vpop.permute.xlu0 %1823
      %1825 = vrot.lane.b32.xlu0 %v1731, 56
      %v1826 = vpop.permute.xlu0 %1825
      %1827 = vrot.lane.b32.xlu0 %v1732, 56
      %v1828 = vpop.permute.xlu0 %1827
      %vm1861 = vcmask 523712
      %1862 = vst.msk [vmem:[#allocation3] sm:$0xff] %vm1861, %v1766
      %1863 = vst.msk [vmem:[#allocation3 + $0x8] sm:$0xff] %vm1861, %v1768
      %1864 = vst.msk [vmem:[#allocation3 + $0x10] sm:$0xff] %vm1861, %v1770
      %1865 = vst.msk [vmem:[#allocation3 + $0x18] sm:$0xff] %vm1861, %v1772
      %1866 = vst.msk [vmem:[#allocation3 + $0x20] sm:$0xff] %vm1861, %v1774
      %1867 = vst.msk [vmem:[#allocation3 + $0x28] sm:$0xff] %vm1861, %v1776
      %1868 = vst.msk [vmem:[#allocation3 + $0x30] sm:$0xff] %vm1861, %v1778
      %1869 = vst.msk [vmem:[#allocation3 + $0x38] sm:$0xff] %vm1861, %v1780
      %1870 = vst.msk [vmem:[#allocation3 + $0x40] sm:$0xff] %vm1861, %v1782
      %1871 = vst.msk [vmem:[#allocation3 + $0x48] sm:$0xff] %vm1861, %v1784
      %1872 = vst.msk [vmem:[#allocation3 + $0x50] sm:$0xff] %vm1861, %v1786
      %1873 = vst.msk [vmem:[#allocation3 + $0x58] sm:$0xff] %vm1861, %v1788
      %1874 = vst.msk [vmem:[#allocation3 + $0x60] sm:$0xff] %vm1861, %v1790
      %1875 = vst.msk [vmem:[#allocation3 + $0x68] sm:$0xff] %vm1861, %v1792
      %1876 = vst.msk [vmem:[#allocation3 + $0x70] sm:$0xff] %vm1861, %v1794
      %1877 = vst.msk [vmem:[#allocation3 + $0x78] sm:$0xff] %vm1861, %v1796
      %1878 = vst.msk [vmem:[#allocation3 + $0x80] sm:$0xff] %vm1861, %v1798
      %1879 = vst.msk [vmem:[#allocation3 + $0x88] sm:$0xff] %vm1861, %v1800
      %1880 = vst.msk [vmem:[#allocation3 + $0x90] sm:$0xff] %vm1861, %v1802
      %1881 = vst.msk [vmem:[#allocation3 + $0x98] sm:$0xff] %vm1861, %v1804
      %1882 = vst.msk [vmem:[#allocation3 + $0xa0] sm:$0xff] %vm1861, %v1806
      %1883 = vst.msk [vmem:[#allocation3 + $0xa8] sm:$0xff] %vm1861, %v1808
      %1884 = vst.msk [vmem:[#allocation3 + $0xb0] sm:$0xff] %vm1861, %v1810
      %1885 = vst.msk [vmem:[#allocation3 + $0xb8] sm:$0xff] %vm1861, %v1812
      %1886 = vst.msk [vmem:[#allocation3 + $0xc0] sm:$0xff] %vm1861, %v1814
      %1887 = vst.msk [vmem:[#allocation3 + $0xc8] sm:$0xff] %vm1861, %v1816
      %1888 = vst.msk [vmem:[#allocation3 + $0xd0] sm:$0xff] %vm1861, %v1818
      %1889 = vst.msk [vmem:[#allocation3 + $0xd8] sm:$0xff] %vm1861, %v1820
      %1890 = vst.msk [vmem:[#allocation3 + $0xe0] sm:$0xff] %vm1861, %v1822
      %1891 = vst.msk [vmem:[#allocation3 + $0xe8] sm:$0xff] %vm1861, %v1824
      %1892 = vst.msk [vmem:[#allocation3 + $0xf0] sm:$0xff] %vm1861, %v1826
      %1893 = vst.msk [vmem:[#allocation3 + $0xf8] sm:$0xff] %vm1861, %v1828
      %v1894 = vld [vmem:[%s1507 + $0x2] sm:$0xff]
      %v1895 = vld [vmem:[%s1507 + $0xa] sm:$0xff]
      %v1896 = vld [vmem:[%s1507 + $0x1a] sm:$0xff]
      %v1897 = vld [vmem:[%s1507 + $0x22] sm:$0xff]
      %v1898 = vld [vmem:[%s1507 + $0x32] sm:$0xff]
      %v1899 = vld [vmem:[%s1507 + $0x3a] sm:$0xff]
      %v1900 = vld [vmem:[%s1507 + $0x4a] sm:$0xff]
      %v1901 = vld [vmem:[%s1507 + $0x52] sm:$0xff]
      %v1902 = vld [vmem:[%s1507 + $0x62] sm:$0xff]
      %v1903 = vld [vmem:[%s1507 + $0x6a] sm:$0xff]
      %v1904 = vld [vmem:[%s1507 + $0x7a] sm:$0xff]
      %v1905 = vld [vmem:[%s1507 + $0x82] sm:$0xff]
      %v1906 = vld [vmem:[%s1507 + $0x92] sm:$0xff]
      %v1907 = vld [vmem:[%s1507 + $0x9a] sm:$0xff]
      %v1908 = vld [vmem:[%s1507 + $0xaa] sm:$0xff]
      %v1909 = vld [vmem:[%s1507 + $0xb2] sm:$0xff]
      %v1910 = vld [vmem:[%s1507 + $0xc2] sm:$0xff]
      %v1911 = vld [vmem:[%s1507 + $0xca] sm:$0xff]
      %v1912 = vld [vmem:[%s1507 + $0xda] sm:$0xff]
      %v1913 = vld [vmem:[%s1507 + $0xe2] sm:$0xff]
      %v1914 = vld [vmem:[%s1507 + $0xf2] sm:$0xff]
      %v1915 = vld [vmem:[%s1507 + $0xfa] sm:$0xff]
      %v1916 = vld [vmem:[%s1507 + $0x10a] sm:$0xff]
      %v1917 = vld [vmem:[%s1507 + $0x112] sm:$0xff]
      %v1918 = vld [vmem:[%s1507 + $0x122] sm:$0xff]
      %v1919 = vld [vmem:[%s1507 + $0x12a] sm:$0xff]
      %v1920 = vld [vmem:[%s1507 + $0x13a] sm:$0xff]
      %v1921 = vld [vmem:[%s1507 + $0x142] sm:$0xff]
      %v1922 = vld [vmem:[%s1507 + $0x152] sm:$0xff]
      %v1923 = vld [vmem:[%s1507 + $0x15a] sm:$0xff]
      %v1924 = vld [vmem:[%s1507 + $0x16a] sm:$0xff]
      %v1925 = vld [vmem:[%s1507 + $0x172] sm:$0xff]
      %1958 = vrot.lane.b32.xlu0 %v1894, 64
      %v1959 = vpop.permute.xlu0 %1958
      %1960 = vrot.lane.b32.xlu0 %v1895, 64
      %v1961 = vpop.permute.xlu0 %1960
      %1962 = vrot.lane.b32.xlu0 %v1896, 64
      %v1963 = vpop.permute.xlu0 %1962
      %1964 = vrot.lane.b32.xlu0 %v1897, 64
      %v1965 = vpop.permute.xlu0 %1964
      %1966 = vrot.lane.b32.xlu0 %v1898, 64
      %v1967 = vpop.permute.xlu0 %1966
      %1968 = vrot.lane.b32.xlu0 %v1899, 64
      %v1969 = vpop.permute.xlu0 %1968
      %1970 = vrot.lane.b32.xlu0 %v1900, 64
      %v1971 = vpop.permute.xlu0 %1970
      %1972 = vrot.lane.b32.xlu0 %v1901, 64
      %v1973 = vpop.permute.xlu0 %1972
      %1974 = vrot.lane.b32.xlu0 %v1902, 64
      %v1975 = vpop.permute.xlu0 %1974
      %1976 = vrot.lane.b32.xlu0 %v1903, 64
      %v1977 = vpop.permute.xlu0 %1976
      %1978 = vrot.lane.b32.xlu0 %v1904, 64
      %v1979 = vpop.permute.xlu0 %1978
      %1980 = vrot.lane.b32.xlu0 %v1905, 64
      %v1981 = vpop.permute.xlu0 %1980
      %1982 = vrot.lane.b32.xlu0 %v1906, 64
      %v1983 = vpop.permute.xlu0 %1982
      %1984 = vrot.lane.b32.xlu0 %v1907, 64
      %v1985 = vpop.permute.xlu0 %1984
      %1986 = vrot.lane.b32.xlu0 %v1908, 64
      %v1987 = vpop.permute.xlu0 %1986
      %1988 = vrot.lane.b32.xlu0 %v1909, 64
      %v1989 = vpop.permute.xlu0 %1988
      %1990 = vrot.lane.b32.xlu0 %v1910, 64
      %v1991 = vpop.permute.xlu0 %1990
      %1992 = vrot.lane.b32.xlu0 %v1911, 64
      %v1993 = vpop.permute.xlu0 %1992
      %1994 = vrot.lane.b32.xlu0 %v1912, 64
      %v1995 = vpop.permute.xlu0 %1994
      %1996 = vrot.lane.b32.xlu0 %v1913, 64
      %v1997 = vpop.permute.xlu0 %1996
      %1998 = vrot.lane.b32.xlu0 %v1914, 64
      %v1999 = vpop.permute.xlu0 %1998
      %2000 = vrot.lane.b32.xlu0 %v1915, 64
      %v2001 = vpop.permute.xlu0 %2000
      %2002 = vrot.lane.b32.xlu0 %v1916, 64
      %v2003 = vpop.permute.xlu0 %2002
      %2004 = vrot.lane.b32.xlu0 %v1917, 64
      %v2005 = vpop.permute.xlu0 %2004
      %2006 = vrot.lane.b32.xlu0 %v1918, 64
      %v2007 = vpop.permute.xlu0 %2006
      %2008 = vrot.lane.b32.xlu0 %v1919, 64
      %v2009 = vpop.permute.xlu0 %2008
      %2010 = vrot.lane.b32.xlu0 %v1920, 64
      %v2011 = vpop.permute.xlu0 %2010
      %2012 = vrot.lane.b32.xlu0 %v1921, 64
      %v2013 = vpop.permute.xlu0 %2012
      %2014 = vrot.lane.b32.xlu0 %v1922, 64
      %v2015 = vpop.permute.xlu0 %2014
      %2016 = vrot.lane.b32.xlu0 %v1923, 64
      %v2017 = vpop.permute.xlu0 %2016
      %2018 = vrot.lane.b32.xlu0 %v1924, 64
      %v2019 = vpop.permute.xlu0 %2018
      %2020 = vrot.lane.b32.xlu0 %v1925, 64
      %v2021 = vpop.permute.xlu0 %2020
      %vm2054 = vcmask 589312
      %2055 = vst.msk [vmem:[#allocation3] sm:$0xff] %vm2054, %v1959
      %2056 = vst.msk [vmem:[#allocation3 + $0x8] sm:$0xff] %vm2054, %v1961
      %2057 = vst.msk [vmem:[#allocation3 + $0x10] sm:$0xff] %vm2054, %v1963
      %2058 = vst.msk [vmem:[#allocation3 + $0x18] sm:$0xff] %vm2054, %v1965
      %2059 = vst.msk [vmem:[#allocation3 + $0x20] sm:$0xff] %vm2054, %v1967
      %2060 = vst.msk [vmem:[#allocation3 + $0x28] sm:$0xff] %vm2054, %v1969
      %2061 = vst.msk [vmem:[#allocation3 + $0x30] sm:$0xff] %vm2054, %v1971
      %2062 = vst.msk [vmem:[#allocation3 + $0x38] sm:$0xff] %vm2054, %v1973
      %2063 = vst.msk [vmem:[#allocation3 + $0x40] sm:$0xff] %vm2054, %v1975
      %2064 = vst.msk [vmem:[#allocation3 + $0x48] sm:$0xff] %vm2054, %v1977
      %2065 = vst.msk [vmem:[#allocation3 + $0x50] sm:$0xff] %vm2054, %v1979
      %2066 = vst.msk [vmem:[#allocation3 + $0x58] sm:$0xff] %vm2054, %v1981
      %2067 = vst.msk [vmem:[#allocation3 + $0x60] sm:$0xff] %vm2054, %v1983
      %2068 = vst.msk [vmem:[#allocation3 + $0x68] sm:$0xff] %vm2054, %v1985
      %2069 = vst.msk [vmem:[#allocation3 + $0x70] sm:$0xff] %vm2054, %v1987
      %2070 = vst.msk [vmem:[#allocation3 + $0x78] sm:$0xff] %vm2054, %v1989
      %2071 = vst.msk [vmem:[#allocation3 + $0x80] sm:$0xff] %vm2054, %v1991
      %2072 = vst.msk [vmem:[#allocation3 + $0x88] sm:$0xff] %vm2054, %v1993
      %2073 = vst.msk [vmem:[#allocation3 + $0x90] sm:$0xff] %vm2054, %v1995
      %2074 = vst.msk [vmem:[#allocation3 + $0x98] sm:$0xff] %vm2054, %v1997
      %2075 = vst.msk [vmem:[#allocation3 + $0xa0] sm:$0xff] %vm2054, %v1999
      %2076 = vst.msk [vmem:[#allocation3 + $0xa8] sm:$0xff] %vm2054, %v2001
      %2077 = vst.msk [vmem:[#allocation3 + $0xb0] sm:$0xff] %vm2054, %v2003
      %2078 = vst.msk [vmem:[#allocation3 + $0xb8] sm:$0xff] %vm2054, %v2005
      %2079 = vst.msk [vmem:[#allocation3 + $0xc0] sm:$0xff] %vm2054, %v2007
      %2080 = vst.msk [vmem:[#allocation3 + $0xc8] sm:$0xff] %vm2054, %v2009
      %2081 = vst.msk [vmem:[#allocation3 + $0xd0] sm:$0xff] %vm2054, %v2011
      %2082 = vst.msk [vmem:[#allocation3 + $0xd8] sm:$0xff] %vm2054, %v2013
      %2083 = vst.msk [vmem:[#allocation3 + $0xe0] sm:$0xff] %vm2054, %v2015
      %2084 = vst.msk [vmem:[#allocation3 + $0xe8] sm:$0xff] %vm2054, %v2017
      %2085 = vst.msk [vmem:[#allocation3 + $0xf0] sm:$0xff] %vm2054, %v2019
      %2086 = vst.msk [vmem:[#allocation3 + $0xf8] sm:$0xff] %vm2054, %v2021
      %v2087 = vld [vmem:[#allocation3] sm:$0xff]
      %v2088 = vld [vmem:[#allocation3 + $0x8] sm:$0xff]
      %v2089 = vld [vmem:[#allocation3 + $0x10] sm:$0xff]
      %v2090 = vld [vmem:[#allocation3 + $0x18] sm:$0xff]
      %v2091 = vld [vmem:[#allocation3 + $0x20] sm:$0xff]
      %v2092 = vld [vmem:[#allocation3 + $0x28] sm:$0xff]
      %v2093 = vld [vmem:[#allocation3 + $0x30] sm:$0xff]
      %v2094 = vld [vmem:[#allocation3 + $0x38] sm:$0xff]
      %v2095 = vld [vmem:[#allocation3 + $0x40] sm:$0xff]
      %v2096 = vld [vmem:[#allocation3 + $0x48] sm:$0xff]
      %v2097 = vld [vmem:[#allocation3 + $0x50] sm:$0xff]
      %v2098 = vld [vmem:[#allocation3 + $0x58] sm:$0xff]
      %v2099 = vld [vmem:[#allocation3 + $0x60] sm:$0xff]
      %v2100 = vld [vmem:[#allocation3 + $0x68] sm:$0xff]
      %v2101 = vld [vmem:[#allocation3 + $0x70] sm:$0xff]
      %v2102 = vld [vmem:[#allocation3 + $0x78] sm:$0xff]
      %v2103 = vld [vmem:[#allocation3 + $0x80] sm:$0xff]
      %v2104 = vld [vmem:[#allocation3 + $0x88] sm:$0xff]
      %v2105 = vld [vmem:[#allocation3 + $0x90] sm:$0xff]
      %v2106 = vld [vmem:[#allocation3 + $0x98] sm:$0xff]
      %v2107 = vld [vmem:[#allocation3 + $0xa0] sm:$0xff]
      %v2108 = vld [vmem:[#allocation3 + $0xa8] sm:$0xff]
      %v2109 = vld [vmem:[#allocation3 + $0xb0] sm:$0xff]
      %v2110 = vld [vmem:[#allocation3 + $0xb8] sm:$0xff]
      %v2111 = vld [vmem:[#allocation3 + $0xc0] sm:$0xff]
      %v2112 = vld [vmem:[#allocation3 + $0xc8] sm:$0xff]
      %v2113 = vld [vmem:[#allocation3 + $0xd0] sm:$0xff]
      %v2114 = vld [vmem:[#allocation3 + $0xd8] sm:$0xff]
      %v2115 = vld [vmem:[#allocation3 + $0xe0] sm:$0xff]
      %v2116 = vld [vmem:[#allocation3 + $0xe8] sm:$0xff]
      %v2117 = vld [vmem:[#allocation3 + $0xf0] sm:$0xff]
      %v2118 = vld [vmem:[#allocation3 + $0xf8] sm:$0xff]
      %v2119 = vld [vmem:[%s3] sm:$0xff]
      %v2120 = vld [vmem:[%s3 + $0x8] sm:$0xff]
      %v2121 = vld [vmem:[%s3 + $0x10] sm:$0xff]
      %v2122 = vld [vmem:[%s3 + $0x18] sm:$0xff]
      %v2123 = vld [vmem:[%s3 + $0x20] sm:$0xff]
      %v2124 = vld [vmem:[%s3 + $0x28] sm:$0xff]
      %v2125 = vld [vmem:[%s3 + $0x30] sm:$0xff]
      %v2126 = vld [vmem:[%s3 + $0x38] sm:$0xff]
      %v2127 = vld [vmem:[%s3 + $0x40] sm:$0xff]
      %v2128 = vld [vmem:[%s4] sm:$0x1]
      %v2130 = vperm.slane %v2128, 0
      %vm2132 = vcmask 588800
      %v2134 = vsel %vm2132, %v2087, 0
      %v2137 = vsel %vm2132, %v2088, 0
      %v2140 = vsel %vm2132, %v2089, 0
      %v2143 = vsel %vm2132, %v2090, 0
      %v2146 = vsel %vm2132, %v2091, 0
      %v2149 = vsel %vm2132, %v2092, 0
      %v2152 = vsel %vm2132, %v2093, 0
      %v2155 = vsel %vm2132, %v2094, 0
      %v2158 = vsel %vm2132, %v2095, 0
      %v2161 = vsel %vm2132, %v2096, 0
      %v2164 = vsel %vm2132, %v2097, 0
      %v2167 = vsel %vm2132, %v2098, 0
      %v2170 = vsel %vm2132, %v2099, 0
      %v2173 = vsel %vm2132, %v2100, 0
      %v2176 = vsel %vm2132, %v2101, 0
      %v2179 = vsel %vm2132, %v2102, 0
      %v2182 = vsel %vm2132, %v2103, 0
      %v2185 = vsel %vm2132, %v2104, 0
      %v2188 = vsel %vm2132, %v2105, 0
      %v2191 = vsel %vm2132, %v2106, 0
      %v2194 = vsel %vm2132, %v2107, 0
      %v2197 = vsel %vm2132, %v2108, 0
      %v2200 = vsel %vm2132, %v2109, 0
      %v2203 = vsel %vm2132, %v2110, 0
      %v2206 = vsel %vm2132, %v2111, 0
      %v2209 = vsel %vm2132, %v2112, 0
      %v2212 = vsel %vm2132, %v2113, 0
      %v2215 = vsel %vm2132, %v2114, 0
      %v2218 = vsel %vm2132, %v2115, 0
      %v2221 = vsel %vm2132, %v2116, 0
      %v2224 = vsel %vm2132, %v2117, 0
      %v2227 = vsel %vm2132, %v2118, 0
      %2229 = vmatpush.msra.mxu0 0.0
      %2230 = vmatpush.msra.mxu0 0.0
      %2231 = vmatpush.msra.mxu0 0.0
      %2232 = vmatpush.msra.mxu0 0.0
      %2233 = vmatpush.msra.mxu0 0.0
      %2234 = vmatpush.msra.mxu0 0.0
      %2235 = vmatpush.msra.mxu0 0.0
      %2236 = vmatpush.msra.mxu0 %v2127
      %2237 = vmatpush.msra.mxu0 %v2126
      %2238 = vmatpush.msra.mxu0 %v2125
      %2239 = vmatpush.msra.mxu0 %v2124
      %2240 = vmatpush.msra.mxu0 %v2123
      %2241 = vmatpush.msra.mxu0 %v2122
      %2242 = vmatpush.msra.mxu0 %v2121
      %2243 = vmatpush.msra.mxu0 %v2120
      %2244 = vmatpush.msra.mxu0 %v2119
      %2245 = vmatmul.f32.gmra.mxu0 %v2134
      %v2246 = vpop.f32.mrf.mxu0
      %v2247 = vadd.f32 %v2130, %v2246
      %2248 = vmatmul.f32.gmra.mxu0 %v2137
      %v2249 = vpop.f32.mrf.mxu0
      %v2250 = vadd.f32 %v2130, %v2249
      %2251 = vmatmul.f32.gmra.mxu0 %v2140
      %v2252 = vpop.f32.mrf.mxu0
      %v2253 = vadd.f32 %v2130, %v2252
      %2254 = vmatmul.f32.gmra.mxu0 %v2143
      %v2255 = vpop.f32.mrf.mxu0
      %v2256 = vadd.f32 %v2130, %v2255
      %2257 = vmatmul.f32.gmra.mxu0 %v2146
      %v2258 = vpop.f32.mrf.mxu0
      %v2259 = vadd.f32 %v2130, %v2258
      %2260 = vmatmul.f32.gmra.mxu0 %v2149
      %v2261 = vpop.f32.mrf.mxu0
      %v2262 = vadd.f32 %v2130, %v2261
      %2263 = vmatmul.f32.gmra.mxu0 %v2152
      %v2264 = vpop.f32.mrf.mxu0
      %v2265 = vadd.f32 %v2130, %v2264
      %2266 = vmatmul.f32.gmra.mxu0 %v2155
      %v2267 = vpop.f32.mrf.mxu0
      %v2268 = vadd.f32 %v2130, %v2267
      %2269 = vmatmul.f32.gmra.mxu0 %v2158
      %v2270 = vpop.f32.mrf.mxu0
      %v2271 = vadd.f32 %v2130, %v2270
      %2272 = vmatmul.f32.gmra.mxu0 %v2161
      %v2273 = vpop.f32.mrf.mxu0
      %v2274 = vadd.f32 %v2130, %v2273
      %2275 = vmatmul.f32.gmra.mxu0 %v2164
      %v2276 = vpop.f32.mrf.mxu0
      %v2277 = vadd.f32 %v2130, %v2276
      %2278 = vmatmul.f32.gmra.mxu0 %v2167
      %v2279 = vpop.f32.mrf.mxu0
      %v2280 = vadd.f32 %v2130, %v2279
      %2281 = vmatmul.f32.gmra.mxu0 %v2170
      %v2282 = vpop.f32.mrf.mxu0
      %v2283 = vadd.f32 %v2130, %v2282
      %2284 = vmatmul.f32.gmra.mxu0 %v2173
      %v2285 = vpop.f32.mrf.mxu0
      %v2286 = vadd.f32 %v2130, %v2285
      %2287 = vmatmul.f32.gmra.mxu0 %v2176
      %v2288 = vpop.f32.mrf.mxu0
      %v2289 = vadd.f32 %v2130, %v2288
      %2290 = vmatmul.f32.gmra.mxu0 %v2179
      %v2291 = vpop.f32.mrf.mxu0
      %v2292 = vadd.f32 %v2130, %v2291
      %2293 = vmatmul.f32.gmra.mxu0 %v2182
      %v2294 = vpop.f32.mrf.mxu0
      %v2295 = vadd.f32 %v2130, %v2294
      %2296 = vmatmul.f32.gmra.mxu0 %v2185
      %v2297 = vpop.f32.mrf.mxu0
      %v2298 = vadd.f32 %v2130, %v2297
      %2299 = vmatmul.f32.gmra.mxu0 %v2188
      %v2300 = vpop.f32.mrf.mxu0
      %v2301 = vadd.f32 %v2130, %v2300
      %2302 = vmatmul.f32.gmra.mxu0 %v2191
      %v2303 = vpop.f32.mrf.mxu0
      %v2304 = vadd.f32 %v2130, %v2303
      %2305 = vmatmul.f32.gmra.mxu0 %v2194
      %v2306 = vpop.f32.mrf.mxu0
      %v2307 = vadd.f32 %v2130, %v2306
      %2308 = vmatmul.f32.gmra.mxu0 %v2197
      %v2309 = vpop.f32.mrf.mxu0
      %v2310 = vadd.f32 %v2130, %v2309
      %2311 = vmatmul.f32.gmra.mxu0 %v2200
      %v2312 = vpop.f32.mrf.mxu0
      %v2313 = vadd.f32 %v2130, %v2312
      %2314 = vmatmul.f32.gmra.mxu0 %v2203
      %v2315 = vpop.f32.mrf.mxu0
      %v2316 = vadd.f32 %v2130, %v2315
      %2317 = vmatmul.f32.gmra.mxu0 %v2206
      %v2318 = vpop.f32.mrf.mxu0
      %v2319 = vadd.f32 %v2130, %v2318
      %2320 = vmatmul.f32.gmra.mxu0 %v2209
      %v2321 = vpop.f32.mrf.mxu0
      %v2322 = vadd.f32 %v2130, %v2321
      %2323 = vmatmul.f32.gmra.mxu0 %v2212
      %v2324 = vpop.f32.mrf.mxu0
      %v2325 = vadd.f32 %v2130, %v2324
      %2326 = vmatmul.f32.gmra.mxu0 %v2215
      %v2327 = vpop.f32.mrf.mxu0
      %v2328 = vadd.f32 %v2130, %v2327
      %2329 = vmatmul.f32.gmra.mxu0 %v2218
      %v2330 = vpop.f32.mrf.mxu0
      %v2331 = vadd.f32 %v2130, %v2330
      %2332 = vmatmul.f32.gmra.mxu0 %v2221
      %v2333 = vpop.f32.mrf.mxu0
      %v2334 = vadd.f32 %v2130, %v2333
      %2335 = vmatmul.f32.gmra.mxu0 %v2224
      %v2336 = vpop.f32.mrf.mxu0
      %v2337 = vadd.f32 %v2130, %v2336
      %2338 = vmatmul.f32.gmra.mxu0 %v2227
      %v2339 = vpop.f32.mrf.mxu0
      %v2340 = vadd.f32 %v2130, %v2339
      %2341 = vdwg.mxu0
      %2342 = vst.msk [vmem:[%s258] sm:$0xff] %vm399, %v2247
      %2343 = vst.msk [vmem:[%s258 + $0x8] sm:$0xff] %vm399, %v2250
      %2344 = vst.msk [vmem:[%s258 + $0x10] sm:$0xff] %vm399, %v2253
      %2345 = vst.msk [vmem:[%s258 + $0x18] sm:$0xff] %vm399, %v2256
      %2346 = vst.msk [vmem:[%s258 + $0x20] sm:$0xff] %vm399, %v2259
      %2347 = vst.msk [vmem:[%s258 + $0x28] sm:$0xff] %vm399, %v2262
      %2348 = vst.msk [vmem:[%s258 + $0x30] sm:$0xff] %vm399, %v2265
      %2349 = vst.msk [vmem:[%s258 + $0x38] sm:$0xff] %vm399, %v2268
      %2350 = vst.msk [vmem:[%s258 + $0x40] sm:$0xff] %vm399, %v2271
      %2351 = vst.msk [vmem:[%s258 + $0x48] sm:$0xff] %vm399, %v2274
      %2352 = vst.msk [vmem:[%s258 + $0x50] sm:$0xff] %vm399, %v2277
      %2353 = vst.msk [vmem:[%s258 + $0x58] sm:$0xff] %vm399, %v2280
      %2354 = vst.msk [vmem:[%s258 + $0x60] sm:$0xff] %vm399, %v2283
      %2355 = vst.msk [vmem:[%s258 + $0x68] sm:$0xff] %vm399, %v2286
      %2356 = vst.msk [vmem:[%s258 + $0x70] sm:$0xff] %vm399, %v2289
      %2357 = vst.msk [vmem:[%s258 + $0x78] sm:$0xff] %vm399, %v2292
      %2358 = vst.msk [vmem:[%s258 + $0x80] sm:$0xff] %vm399, %v2295
      %2359 = vst.msk [vmem:[%s258 + $0x88] sm:$0xff] %vm399, %v2298
      %2360 = vst.msk [vmem:[%s258 + $0x90] sm:$0xff] %vm399, %v2301
      %2361 = vst.msk [vmem:[%s258 + $0x98] sm:$0xff] %vm399, %v2304
      %2362 = vst.msk [vmem:[%s258 + $0xa0] sm:$0xff] %vm399, %v2307
      %2363 = vst.msk [vmem:[%s258 + $0xa8] sm:$0xff] %vm399, %v2310
      %2364 = vst.msk [vmem:[%s258 + $0xb0] sm:$0xff] %vm399, %v2313
      %2365 = vst.msk [vmem:[%s258 + $0xb8] sm:$0xff] %vm399, %v2316
      %2366 = vst.msk [vmem:[%s258 + $0xc0] sm:$0xff] %vm399, %v2319
      %2367 = vst.msk [vmem:[%s258 + $0xc8] sm:$0xff] %vm399, %v2322
      %2368 = vst.msk [vmem:[%s258 + $0xd0] sm:$0xff] %vm399, %v2325
      %2369 = vst.msk [vmem:[%s258 + $0xd8] sm:$0xff] %vm399, %v2328
      %2370 = vst.msk [vmem:[%s258 + $0xe0] sm:$0xff] %vm399, %v2331
      %2371 = vst.msk [vmem:[%s258 + $0xe8] sm:$0xff] %vm399, %v2334
      %2372 = vst.msk [vmem:[%s258 + $0xf0] sm:$0xff] %vm399, %v2337
      %2373 = vst.msk [vmem:[%s258 + $0xf8] sm:$0xff] %vm399, %v2340
      %v2374 = vsel %vm399, %v2247, 0.0
      %v2375 = vsel %vm399, %v2250, 0.0
      %v2376 = vadd.f32 %v2374, %v2375
      %v2377 = vsel %vm399, %v2253, 0.0
      %v2378 = vadd.f32 %v2376, %v2377
      %v2379 = vsel %vm399, %v2256, 0.0
      %v2380 = vadd.f32 %v2378, %v2379
      %v2381 = vsel %vm399, %v2259, 0.0
      %v2382 = vadd.f32 %v2380, %v2381
      %v2383 = vsel %vm399, %v2262, 0.0
      %v2384 = vadd.f32 %v2382, %v2383
      %v2385 = vsel %vm399, %v2265, 0.0
      %v2386 = vadd.f32 %v2384, %v2385
      %v2387 = vsel %vm399, %v2268, 0.0
      %v2388 = vadd.f32 %v2386, %v2387
      %v2389 = vsel %vm399, %v2271, 0.0
      %v2390 = vadd.f32 %v2388, %v2389
      %v2391 = vsel %vm399, %v2274, 0.0
      %v2392 = vadd.f32 %v2390, %v2391
      %v2393 = vsel %vm399, %v2277, 0.0
      %v2394 = vadd.f32 %v2392, %v2393
      %v2395 = vsel %vm399, %v2280, 0.0
      %v2396 = vadd.f32 %v2394, %v2395
      %v2397 = vsel %vm399, %v2283, 0.0
      %v2398 = vadd.f32 %v2396, %v2397
      %v2399 = vsel %vm399, %v2286, 0.0
      %v2400 = vadd.f32 %v2398, %v2399
      %v2401 = vsel %vm399, %v2289, 0.0
      %v2402 = vadd.f32 %v2400, %v2401
      %v2403 = vsel %vm399, %v2292, 0.0
      %v2404 = vadd.f32 %v2402, %v2403
      %v2405 = vsel %vm399, %v2295, 0.0
      %v2406 = vadd.f32 %v2404, %v2405
      %v2407 = vsel %vm399, %v2298, 0.0
      %v2408 = vadd.f32 %v2406, %v2407
      %v2409 = vsel %vm399, %v2301, 0.0
      %v2410 = vadd.f32 %v2408, %v2409
      %v2411 = vsel %vm399, %v2304, 0.0
      %v2412 = vadd.f32 %v2410, %v2411
      %v2413 = vsel %vm399, %v2307, 0.0
      %v2414 = vadd.f32 %v2412, %v2413
      %v2415 = vsel %vm399, %v2310, 0.0
      %v2416 = vadd.f32 %v2414, %v2415
      %v2417 = vsel %vm399, %v2313, 0.0
      %v2418 = vadd.f32 %v2416, %v2417
      %v2419 = vsel %vm399, %v2316, 0.0
      %v2420 = vadd.f32 %v2418, %v2419
      %v2421 = vsel %vm399, %v2319, 0.0
      %v2422 = vadd.f32 %v2420, %v2421
      %v2423 = vsel %vm399, %v2322, 0.0
      %v2424 = vadd.f32 %v2422, %v2423
      %v2425 = vsel %vm399, %v2325, 0.0
      %v2426 = vadd.f32 %v2424, %v2425
      %v2427 = vsel %vm399, %v2328, 0.0
      %v2428 = vadd.f32 %v2426, %v2427
      %v2429 = vsel %vm399, %v2331, 0.0
      %v2430 = vadd.f32 %v2428, %v2429
      %v2431 = vsel %vm399, %v2334, 0.0
      %v2432 = vadd.f32 %v2430, %v2431
      %v2433 = vsel %vm399, %v2337, 0.0
      %v2434 = vadd.f32 %v2432, %v2433
      %v2435 = vsel %vm399, %v2340, 0.0
      %v2436 = vadd.f32 %v2434, %v2435
      %v2437 = vrot.slane %v2436, 4
      %v2438 = vadd.f32 %v2436, %v2437
      %v2439 = vrot.slane %v2438, 2
      %v2440 = vadd.f32 %v2438, %v2439
      %v2441 = vrot.slane %v2440, 1
      %v2442 = vadd.f32 %v2440, %v2441
      %2443 = vst.msk [vmem:[%s262] sm:$0x1] %vm408, %v2442
      %v2444 = vmul.f32 %v2247, %v2247
      %v2445 = vmul.f32 %v2250, %v2250
      %v2446 = vmul.f32 %v2253, %v2253
      %v2447 = vmul.f32 %v2256, %v2256
      %v2448 = vmul.f32 %v2259, %v2259
      %v2449 = vmul.f32 %v2262, %v2262
      %v2450 = vmul.f32 %v2265, %v2265
      %v2451 = vmul.f32 %v2268, %v2268
      %v2452 = vmul.f32 %v2271, %v2271
      %v2453 = vmul.f32 %v2274, %v2274
      %v2454 = vmul.f32 %v2277, %v2277
      %v2455 = vmul.f32 %v2280, %v2280
      %v2456 = vmul.f32 %v2283, %v2283
      %v2457 = vmul.f32 %v2286, %v2286
      %v2458 = vmul.f32 %v2289, %v2289
      %v2459 = vmul.f32 %v2292, %v2292
      %v2460 = vmul.f32 %v2295, %v2295
      %v2461 = vmul.f32 %v2298, %v2298
      %v2462 = vmul.f32 %v2301, %v2301
      %v2463 = vmul.f32 %v2304, %v2304
      %v2464 = vmul.f32 %v2307, %v2307
      %v2465 = vmul.f32 %v2310, %v2310
      %v2466 = vmul.f32 %v2313, %v2313
      %v2467 = vmul.f32 %v2316, %v2316
      %v2468 = vmul.f32 %v2319, %v2319
      %v2469 = vmul.f32 %v2322, %v2322
      %v2470 = vmul.f32 %v2325, %v2325
      %v2471 = vmul.f32 %v2328, %v2328
      %v2472 = vmul.f32 %v2331, %v2331
      %v2473 = vmul.f32 %v2334, %v2334
      %v2474 = vmul.f32 %v2337, %v2337
      %v2475 = vmul.f32 %v2340, %v2340
      %v2476 = vsel %vm399, %v2444, 0.0
      %v2477 = vsel %vm399, %v2445, 0.0
      %v2478 = vadd.f32 %v2476, %v2477
      %v2479 = vsel %vm399, %v2446, 0.0
      %v2480 = vadd.f32 %v2478, %v2479
      %v2481 = vsel %vm399, %v2447, 0.0
      %v2482 = vadd.f32 %v2480, %v2481
      %v2483 = vsel %vm399, %v2448, 0.0
      %v2484 = vadd.f32 %v2482, %v2483
      %v2485 = vsel %vm399, %v2449, 0.0
      %v2486 = vadd.f32 %v2484, %v2485
      %v2487 = vsel %vm399, %v2450, 0.0
      %v2488 = vadd.f32 %v2486, %v2487
      %v2489 = vsel %vm399, %v2451, 0.0
      %v2490 = vadd.f32 %v2488, %v2489
      %v2491 = vsel %vm399, %v2452, 0.0
      %v2492 = vadd.f32 %v2490, %v2491
      %v2493 = vsel %vm399, %v2453, 0.0
      %v2494 = vadd.f32 %v2492, %v2493
      %v2495 = vsel %vm399, %v2454, 0.0
      %v2496 = vadd.f32 %v2494, %v2495
      %v2497 = vsel %vm399, %v2455, 0.0
      %v2498 = vadd.f32 %v2496, %v2497
      %v2499 = vsel %vm399, %v2456, 0.0
      %v2500 = vadd.f32 %v2498, %v2499
      %v2501 = vsel %vm399, %v2457, 0.0
      %v2502 = vadd.f32 %v2500, %v2501
      %v2503 = vsel %vm399, %v2458, 0.0
      %v2504 = vadd.f32 %v2502, %v2503
      %v2505 = vsel %vm399, %v2459, 0.0
      %v2506 = vadd.f32 %v2504, %v2505
      %v2507 = vsel %vm399, %v2460, 0.0
      %v2508 = vadd.f32 %v2506, %v2507
      %v2509 = vsel %vm399, %v2461, 0.0
      %v2510 = vadd.f32 %v2508, %v2509
      %v2511 = vsel %vm399, %v2462, 0.0
      %v2512 = vadd.f32 %v2510, %v2511
      %v2513 = vsel %vm399, %v2463, 0.0
      %v2514 = vadd.f32 %v2512, %v2513
      %v2515 = vsel %vm399, %v2464, 0.0
      %v2516 = vadd.f32 %v2514, %v2515
      %v2517 = vsel %vm399, %v2465, 0.0
      %v2518 = vadd.f32 %v2516, %v2517
      %v2519 = vsel %vm399, %v2466, 0.0
      %v2520 = vadd.f32 %v2518, %v2519
      %v2521 = vsel %vm399, %v2467, 0.0
      %v2522 = vadd.f32 %v2520, %v2521
      %v2523 = vsel %vm399, %v2468, 0.0
      %v2524 = vadd.f32 %v2522, %v2523
      %v2525 = vsel %vm399, %v2469, 0.0
      %v2526 = vadd.f32 %v2524, %v2525
      %v2527 = vsel %vm399, %v2470, 0.0
      %v2528 = vadd.f32 %v2526, %v2527
      %v2529 = vsel %vm399, %v2471, 0.0
      %v2530 = vadd.f32 %v2528, %v2529
      %v2531 = vsel %vm399, %v2472, 0.0
      %v2532 = vadd.f32 %v2530, %v2531
      %v2533 = vsel %vm399, %v2473, 0.0
      %v2534 = vadd.f32 %v2532, %v2533
      %v2535 = vsel %vm399, %v2474, 0.0
      %v2536 = vadd.f32 %v2534, %v2535
      %v2537 = vsel %vm399, %v2475, 0.0
      %v2538 = vadd.f32 %v2536, %v2537
      %v2539 = vrot.slane %v2538, 4
      %v2540 = vadd.f32 %v2538, %v2539
      %v2541 = vrot.slane %v2540, 2
      %v2542 = vadd.f32 %v2540, %v2541
      %v2543 = vrot.slane %v2542, 1
      %v2544 = vadd.f32 %v2542, %v2543
      %2545 = vst.msk [vmem:[%s262 + $0x1] sm:$0x1] %vm408, %v2544
      %p2546 = scmp.lt.s32.totalorder %s18, 1
      %s2547 = scalar_select %p2546, %s18, 1
      %s2548 = smul.addr %s2547, 32
      %s2549 = smul.addr %s2548, 8
      %s2550 = scalar_lea.vmem %s5, %s2549
      %p2551 = scmp.lt.s32.totalorder %s18, 1
      %s2552 = scalar_select %p2551, %s18, 1
      %s2553 = smul.addr %s2552, 2
      %s2554 = scalar_lea.vmem %s6, %s2553
      // Predicated region
      $region41: #{conv_block_forward.4} parent=39 // pred_check
        %p2555 = pneg %p146
      $region42: #{conv_block_forward.4} parent=39 // pred_check_branch
        %2557 = sbr.rel (%p2555) target = $region44
      $region43: #{conv_block_forward.4} parent=39 // pred_region
        _
      $region44: #{conv_block_forward.4} parent=39 // pred_fallthru
        _
      // Predicated region
      $region45: #{conv_block_forward.4} parent=39 // pred_check
        %p2558 = pneg %p172
      $region46: #{conv_block_forward.4} parent=39 // pred_check_branch
        %2560 = sbr.rel (%p2558) target = $region48
      $region47: #{conv_block_forward.4} parent=39 // pred_region
        _
      $region48: #{conv_block_forward.4} parent=39 // pred_fallthru
        _
    $region40: #{conv_block_forward.4} parent=5 // pred_fallthru
      _
    %p2561 = scmp.le.s32.totalorder 2, %s13
    // Predicated region
    $region49: #{conv_block_forward.4} parent=5 // pred_check
      %p2562 = pneg %p2561
    $region50: #{conv_block_forward.4} parent=5 // pred_check_branch
      %2564 = sbr.rel (%p2562) target = $region52
    $region51: #{conv_block_forward.4} parent=5 // pred_region
      %s2565 = ssub.s32 %s13, 2
      // Predicated region
      $region53: #{conv_block_forward.4} parent=51 // pred_check
        %p2566 = pneg %p152
      $region54: #{conv_block_forward.4} parent=51 // pred_check_branch
        %2568 = sbr.rel (%p2566) target = $region56
      $region55: #{conv_block_forward.4} parent=51 // pred_region
        %p2569 = scmp.lt.s32.totalorder %s19, 1
        %s2570 = scalar_select %p2569, %s19, 1
        %s2571 = smul.addr %s2570, 32
        %s2572 = smul.addr %s2571, 8
        %s2573 = scalar_lea.vmem %s5, %s2572
      $region56: #{conv_block_forward.4} parent=51 // pred_fallthru
        _
      // Predicated region
      $region57: #{conv_block_forward.4} parent=51 // pred_check
        %p2574 = pneg %p178
      $region58: #{conv_block_forward.4} parent=51 // pred_check_branch
        %2576 = sbr.rel (%p2574) target = $region60
      $region59: #{conv_block_forward.4} parent=51 // pred_region
        %p2577 = scmp.lt.s32.totalorder %s19, 1
        %s2578 = scalar_select %p2577, %s19, 1
        %s2579 = smul.addr %s2578, 2
        %s2580 = scalar_lea.vmem %s6, %s2579
      $region60: #{conv_block_forward.4} parent=51 // pred_fallthru
        _
    $region52: #{conv_block_forward.4} parent=5 // pred_fallthru
      _
  $region6: #{conv_block_forward.4} parent=0 // loop_footer
    %s17 = sadd.s32 1, %s13
  $region7: #{conv_block_forward.4} parent=0 // loop_footer_branch
    %12 = sbr.rel target = $region3
  $region8: #{conv_block_forward.4} parent=0 // loop_exit
    _

// kernel: conv_block_forward.3
$region0: #{conv_block_forward.3}
  #allocation0 [shape = 'u32[]', space=smem, size = 0x4, offset = 0x4, fixed_abs, tag = 'smem constant byte address 0x4 - core index']
  #allocation1 [shape = 'u32[72,128]{1,0:T(1,128)}', space=vmem, size = 0x9000, scoped, tag = 'internal scratch']
  #allocation2 [shape = 'f32[18,18,4]{2,1,0:T(8,128)}', space=vmem, size = 0x36000, scoped, tag = 'scratch operand']
  #allocation3 [shape = 'f32[16,16,36]{2,1,0:T(8,128)}', space=vmem, size = 0x20000, scoped, tag = 'scratch operand']
  %s0 = inlined_call_operand.vmem [shape: f32[2,16,16,4], index: 0, kind: input, shape index: {}]
  %s1 = inlined_call_operand.vmem [shape: f32[36,8], index: 1, kind: input, shape index: {}]
  %s2 = inlined_call_operand.vmem [shape: f32[1,8], index: 2, kind: input, shape index: {}]
  %s3 = inlined_call_operand.vmem [shape: f32[2,16,16,8], index: 3, kind: output, shape index: {0}]
  %s4 = inlined_call_operand.vmem [shape: f32[2,2,8], index: 4, kind: output, shape index: {1}]
  %5 = xla_tuple %s3, %s4
  %s6 = sld [smem:[#allocation0]]
  $region53: #{conv_block_forward.3} parent=0
    _
  %s8 = ssub.s32 1, %s6
  %s9 = scalar_select 0, %s8, %s6
  loop: start=0, step=1, limit=4
  $region2: #{conv_block_forward.3} parent=0 // loop_pre_header
    _
  $region3: #{conv_block_forward.3} parent=0 // loop_header
    %s11 = sphi 0, %s15
    %p12 = scmp.ge.s32.totalorder %s11, 4
    %s21 = sphi 0, %s23
    %s24 = sphi 0, %s21
    %s25 = sphi 0, %s24
    %s41 = sphi 0, %s25
    %s45 = sphi 0, %s45
    %s47 = sphi 0, %s45
    %s48 = sphi 0, %s47
    %s62 = sphi 0, %s48
    %s66 = sphi 0, %s66
    %s68 = sphi 0, %s66
    %s69 = sphi 0, %s68
    %s83 = sphi 0, %s69
    %s89 = sphi 0, %s91
    %s92 = sphi 0, %s89
    %s93 = sphi 0, %s92
    %s109 = sphi 0, %s93
    %s115 = sphi 0, %s117
    %s118 = sphi 0, %s115
    %s119 = sphi 0, %s118
    %s135 = sphi 0, %s119
  $region4: #{conv_block_forward.3} parent=0 // loop_header_branch
    %14 = sbr.rel (%p12) target = $region8
  $region5: #{conv_block_forward.3} parent=0 // loop_body
    %s16 = ssub.s32 %s11, 1
    %s17 = ssub.s32 %s11, 2
    %s18 = sadd.s32 %s11, 1
    %s19 = ssub.s32 %s11, %s18
    %p20 = scmp.eq.s32.totalorder %s19, 0
    %s22 = sadd.s32 %s21, 1
    %s23 = scalar_select %p20, %s21, %s22
    %p26 = pneg %p20
    %p27 = scmp.eq.s32.totalorder %s11, 1
    %p28 = por %p26, %p27
    %p29 = scmp.ne.s32.totalorder %s21, %s24
    %p30 = scmp.eq.s32.totalorder %s11, 0
    %p31 = por %p29, %p30
    %p32 = scmp.ne.s32.totalorder %s21, %s24
    %p33 = scmp.eq.s32.totalorder %s16, 1
    %p34 = por %p32, %p33
    %p35 = scmp.ne.s32.totalorder %s24, %s25
    %p36 = scmp.eq.s32.totalorder %s16, 0
    %p37 = por %p35, %p36
    %p38 = scmp.ne.s32.totalorder %s24, %s25
    %p39 = scmp.eq.s32.totalorder %s17, 1
    %p40 = por %p38, %p39
    %p42 = scmp.ne.s32.totalorder %s25, %s41
    %p43 = scmp.eq.s32.totalorder %s17, 0
    %p44 = por %p42, %p43
    %s46 = sadd.s32 %s45, 1
    %p49 = scmp.eq.s32.totalorder %s11, 1
    %p50 = scmp.ne.s32.totalorder %s45, %s47
    %p51 = scmp.eq.s32.totalorder %s11, 0
    %p52 = por %p50, %p51
    %p53 = scmp.ne.s32.totalorder %s45, %s47
    %p54 = scmp.eq.s32.totalorder %s16, 1
    %p55 = por %p53, %p54
    %p56 = scmp.ne.s32.totalorder %s47, %s48
    %p57 = scmp.eq.s32.totalorder %s16, 0
    %p58 = por %p56, %p57
    %p59 = scmp.ne.s32.totalorder %s47, %s48
    %p60 = scmp.eq.s32.totalorder %s17, 1
    %p61 = por %p59, %p60
    %p63 = scmp.ne.s32.totalorder %s48, %s62
    %p64 = scmp.eq.s32.totalorder %s17, 0
    %p65 = por %p63, %p64
    %s67 = sadd.s32 %s66, 1
    %p70 = scmp.eq.s32.totalorder %s11, 1
    %p71 = scmp.ne.s32.totalorder %s66, %s68
    %p72 = scmp.eq.s32.totalorder %s11, 0
    %p73 = por %p71, %p72
    %p74 = scmp.ne.s32.totalorder %s66, %s68
    %p75 = scmp.eq.s32.totalorder %s16, 1
    %p76 = por %p74, %p75
    %p77 = scmp.ne.s32.totalorder %s68, %s69
    %p78 = scmp.eq.s32.totalorder %s16, 0
    %p79 = por %p77, %p78
    %p80 = scmp.ne.s32.totalorder %s68, %s69
    %p81 = scmp.eq.s32.totalorder %s17, 1
    %p82 = por %p80, %p81
    %p84 = scmp.ne.s32.totalorder %s69, %s83
    %p85 = scmp.eq.s32.totalorder %s17, 0
    %p86 = por %p84, %p85
    %s87 = ssub.s32 %s11, %s18
    %p88 = scmp.eq.s32.totalorder %s87, 0
    %s90 = sadd.s32 %s89, 1
    %s91 = scalar_select %p88, %s89, %s90
    %p94 = pneg %p88
    %p95 = scmp.eq.s32.totalorder %s11, 1
    %p96 = por %p94, %p95
    %p97 = scmp.ne.s32.totalorder %s89, %s92
    %p98 = scmp.eq.s32.totalorder %s11, 0
    %p99 = por %p97, %p98
    %p100 = scmp.ne.s32.totalorder %s89, %s92
    %p101 = scmp.eq.s32.totalorder %s16, 1
    %p102 = por %p100, %p101
    %p103 = scmp.ne.s32.totalorder %s92, %s93
    %p104 = scmp.eq.s32.totalorder %s16, 0
    %p105 = por %p103, %p104
    %p106 = scmp.ne.s32.totalorder %s92, %s93
    %p107 = scmp.eq.s32.totalorder %s17, 1
    %p108 = por %p106, %p107
    %p110 = scmp.ne.s32.totalorder %s93, %s109
    %p111 = scmp.eq.s32.totalorder %s17, 0
    %p112 = por %p110, %p111
    %s113 = ssub.s32 %s11, %s18
    %p114 = scmp.eq.s32.totalorder %s113, 0
    %s116 = sadd.s32 %s115, 1
    %s117 = scalar_select %p114, %s115, %s116
    %p120 = pneg %p114
    %p121 = scmp.eq.s32.totalorder %s11, 1
    %p122 = por %p120, %p121
    %p123 = scmp.ne.s32.totalorder %s115, %s118
    %p124 = scmp.eq.s32.totalorder %s11, 0
    %p125 = por %p123, %p124
    %p126 = scmp.ne.s32.totalorder %s115, %s118
    %p127 = scmp.eq.s32.totalorder %s16, 1
    %p128 = por %p126, %p127
    %p129 = scmp.ne.s32.totalorder %s118, %s119
    %p130 = scmp.eq.s32.totalorder %s16, 0
    %p131 = por %p129, %p130
    %p132 = scmp.ne.s32.totalorder %s118, %s119
    %p133 = scmp.eq.s32.totalorder %s17, 1
    %p134 = por %p132, %p133
    %p136 = scmp.ne.s32.totalorder %s119, %s135
    %p137 = scmp.eq.s32.totalorder %s17, 0
    %p138 = por %p136, %p137
    %p139 = scmp.le.s32.totalorder 1, %s11
    %p140 = scmp.lt.s32.totalorder %s11, 3
    %p141 = pnand %p139, %p140
    %p142 = pneg %p141
    // Predicated region
    $region9: #{conv_block_forward.3} parent=5 // pred_check
      _
    $region10: #{conv_block_forward.3} parent=5 // pred_check_branch
      %144 = sbr.rel (%p141) target = $region12
    $region11: #{conv_block_forward.3} parent=5 // pred_region
      %s145 = ssub.s32 %s11, 1
      // Predicated region
      $region13: #{conv_block_forward.3} parent=11 // pred_check
        %p146 = pneg %p58
      $region14: #{conv_block_forward.3} parent=11 // pred_check_branch
        %148 = sbr.rel (%p146) target = $region16
      $region15: #{conv_block_forward.3} parent=11 // pred_region
        _
      $region16: #{conv_block_forward.3} parent=11 // pred_fallthru
        _
      // Predicated region
      $region17: #{conv_block_forward.3} parent=11 // pred_check
        %p149 = pneg %p79
      $region18: #{conv_block_forward.3} parent=11 // pred_check_branch
        %151 = sbr.rel (%p149) target = $region20
      $region19: #{conv_block_forward.3} parent=11 // pred_region
        _
      $region20: #{conv_block_forward.3} parent=11 // pred_fallthru
        _
    $region12: #{conv_block_forward.3} parent=5 // pred_fallthru
      _
    %p152 = scmp.lt.s32.totalorder %s11, 2
    // Predicated region
    $region21: #{conv_block_forward.3} parent=5 // pred_check
      %p153 = pneg %p152
    $region22: #{conv_block_forward.3} parent=5 // pred_check_branch
      %155 = sbr.rel (%p153) target = $region24
    $region23: #{conv_block_forward.3} parent=5 // pred_region
      // Predicated region
      $region25: #{conv_block_forward.3} parent=23 // pred_check
        %p156 = pneg %p31
      $region26: #{conv_block_forward.3} parent=23 // pred_check_branch
        %158 = sbr.rel (%p156) target = $region28
      $region27: #{conv_block_forward.3} parent=23 // pred_region
        %p159 = scmp.lt.s32.totalorder %s11, 1
        %s160 = scalar_select %p159, %s11, 1
        %s161 = smul.addr %s160, 32
        %s162 = smul.addr %s161, 8
        %s163 = scalar_lea.vmem %s0, %s162
      $region28: #{conv_block_forward.3} parent=23 // pred_fallthru
        _
    $region24: #{conv_block_forward.3} parent=5 // pred_fallthru
      _
    %p164 = scmp.le.s32.totalorder 1, %s11
    %p165 = scmp.lt.s32.totalorder %s11, 3
    %p166 = pnand %p164, %p165
    %p167 = pneg %p166
    // Predicated region
    $region29: #{conv_block_forward.3} parent=5 // pred_check
      _
    $region30: #{conv_block_forward.3} parent=5 // pred_check_branch
      %169 = sbr.rel (%p166) target = $region32
    $region31: #{conv_block_forward.3} parent=5 // pred_region
      %s170 = ssub.s32 %s11, 1
      %p171 = scmp.lt.s32.totalorder %s16, 1
      %s172 = scalar_select %p171, %s16, 1
      %s173 = smul.addr %s172, 32
      %s174 = smul.addr %s173, 8
      %s175 = scalar_lea.vmem %s0, %s174
      %p176 = pneg %p37
      %p177 = pneg %p34
      %p178 = pneg %p58
      %p179 = pneg %p55
      %p180 = pneg %p79
      %p181 = pneg %p76
      %p182 = pneg %p105
      %p183 = pneg %p102
      %p184 = scmp.lt.s32.totalorder %s16, 1
      %s185 = scalar_select %p184, %s16, 1
      %s186 = smul.addr %s185, 32
      %s187 = smul.addr %s186, 8
      %s188 = scalar_lea.vmem %s3, %s187
      %p189 = pneg %p131
      %p190 = pneg %p128
      %p191 = scmp.lt.s32.totalorder %s16, 1
      %s192 = scalar_select %p191, %s16, 1
      %s193 = smul.addr %s192, 2
      %s194 = scalar_lea.vmem %s4, %s193
      %p195 = scmp.lt.s32.totalorder %s16, 1
      %s196 = scalar_select %p195, %s16, 1
      %s197 = smul.addr %s196, 32
      %s198 = smul.addr %s197, 8
      %s199 = scalar_lea.vmem %s0, %s198
      %p200 = scmp.lt.s32.totalorder %s16, 1
      %s201 = scalar_select %p200, %s16, 1
      %s202 = smul.addr %s201, 32
      %s203 = smul.addr %s202, 8
      %s204 = scalar_lea.vmem %s3, %s203
      %p205 = scmp.lt.s32.totalorder %s16, 1
      %s206 = scalar_select %p205, %s16, 1
      %s207 = smul.addr %s206, 2
      %s208 = scalar_lea.vmem %s4, %s207
      %v209 = vld [vmem:[%s199] sm:$0xff]
      %v210 = vld [vmem:[%s199 + $0x8] sm:$0xff]
      %v211 = vld [vmem:[%s199 + $0x10] sm:$0xff]
      %v212 = vld [vmem:[%s199 + $0x18] sm:$0xff]
      %v213 = vld [vmem:[%s199 + $0x20] sm:$0xff]
      %v214 = vld [vmem:[%s199 + $0x28] sm:$0xff]
      %v215 = vld [vmem:[%s199 + $0x30] sm:$0xff]
      %v216 = vld [vmem:[%s199 + $0x38] sm:$0xff]
      %v217 = vld [vmem:[%s199 + $0x40] sm:$0xff]
      %v218 = vld [vmem:[%s199 + $0x48] sm:$0xff]
      %v219 = vld [vmem:[%s199 + $0x50] sm:$0xff]
      %v220 = vld [vmem:[%s199 + $0x58] sm:$0xff]
      %v221 = vld [vmem:[%s199 + $0x60] sm:$0xff]
      %v222 = vld [vmem:[%s199 + $0x68] sm:$0xff]
      %v223 = vld [vmem:[%s199 + $0x70] sm:$0xff]
      %v224 = vld [vmem:[%s199 + $0x78] sm:$0xff]
      %v225 = vld [vmem:[%s199 + $0x80] sm:$0xff]
      %v226 = vld [vmem:[%s199 + $0x88] sm:$0xff]
      %v227 = vld [vmem:[%s199 + $0x90] sm:$0xff]
      %v228 = vld [vmem:[%s199 + $0x98] sm:$0xff]
      %v229 = vld [vmem:[%s199 + $0xa0] sm:$0xff]
      %v230 = vld [vmem:[%s199 + $0xa8] sm:$0xff]
      %v231 = vld [vmem:[%s199 + $0xb0] sm:$0xff]
      %v232 = vld [vmem:[%s199 + $0xb8] sm:$0xff]
      %v233 = vld [vmem:[%s199 + $0xc0] sm:$0xff]
      %v234 = vld [vmem:[%s199 + $0xc8] sm:$0xff]
      %v235 = vld [vmem:[%s199 + $0xd0] sm:$0xff]
      %v236 = vld [vmem:[%s199 + $0xd8] sm:$0xff]
      %v237 = vld [vmem:[%s199 + $0xe0] sm:$0xff]
      %v238 = vld [vmem:[%s199 + $0xe8] sm:$0xff]
      %v239 = vld [vmem:[%s199 + $0xf0] sm:$0xff]
      %v240 = vld [vmem:[%s199 + $0xf8] sm:$0xff]
      %vm241 = vcmask 31744
      %242 = vst.msk [vmem:[#allocation2] sm:$0xff] %vm241, 0.0
      %243 = vst.msk [vmem:[#allocation2 + $0x8] sm:$0xff] %vm241, 0.0
      %vm244 = vcmask 25600
      %245 = vst.msk [vmem:[#allocation2 + $0x10] sm:$0x3] %vm244, 0.0
      %s246 = scalar_lea.vmem [#allocation2], 408
      %247 = vst.msk [vmem:[%s246] sm:$0xff] %vm241, 0.0
      %248 = vst.msk [vmem:[%s246 + $0x8] sm:$0xff] %vm241, 0.0
      %249 = vst.msk [vmem:[%s246 + $0x10] sm:$0x3] %vm244, 0.0
      %vm250 = vcmask 24576
      %251 = vst.msk [vmem:[#allocation2] sm:$0x1] %vm250, 0.0
      %252 = vst.msk [vmem:[#allocation2 + $0x18] sm:$0x1] %vm250, 0.0
      %253 = vst.msk [vmem:[#allocation2 + $0x30] sm:$0x1] %vm250, 0.0
      %254 = vst.msk [vmem:[#allocation2 + $0x48] sm:$0x1] %vm250, 0.0
      %255 = vst.msk [vmem:[#allocation2 + $0x60] sm:$0x1] %vm250, 0.0
      %256 = vst.msk [vmem:[#allocation2 + $0x78] sm:$0x1] %vm250, 0.0
      %257 = vst.msk [vmem:[#allocation2 + $0x90] sm:$0x1] %vm250, 0.0
      %258 = vst.msk [vmem:[#allocation2 + $0xa8] sm:$0x1] %vm250, 0.0
      %259 = vst.msk [vmem:[#allocation2 + $0xc0] sm:$0x1] %vm250, 0.0
      %260 = vst.msk [vmem:[#allocation2 + $0xd8] sm:$0x1] %vm250, 0.0
      %261 = vst.msk [vmem:[#allocation2 + $0xf0] sm:$0x1] %vm250, 0.0
      %262 = vst.msk [vmem:[#allocation2 + $0x108] sm:$0x1] %vm250, 0.0
      %263 = vst.msk [vmem:[#allocation2 + $0x120] sm:$0x1] %vm250, 0.0
      %264 = vst.msk [vmem:[#allocation2 + $0x138] sm:$0x1] %vm250, 0.0
      %265 = vst.msk [vmem:[#allocation2 + $0x150] sm:$0x1] %vm250, 0.0
      %266 = vst.msk [vmem:[#allocation2 + $0x168] sm:$0x1] %vm250, 0.0
      %267 = vst.msk [vmem:[#allocation2 + $0x180] sm:$0x1] %vm250, 0.0
      %268 = vst.msk [vmem:[#allocation2 + $0x198] sm:$0x1] %vm250, 0.0
      %269 = vst.msk [vmem:[#allocation2 + $0x11] sm:$0x1] %vm250, 0.0
      %270 = vst.msk [vmem:[#allocation2 + $0x29] sm:$0x1] %vm250, 0.0
      %271 = vst.msk [vmem:[#allocation2 + $0x41] sm:$0x1] %vm250, 0.0
      %272 = vst.msk [vmem:[#allocation2 + $0x59] sm:$0x1] %vm250, 0.0
      %273 = vst.msk [vmem:[#allocation2 + $0x71] sm:$0x1] %vm250, 0.0
      %274 = vst.msk [vmem:[#allocation2 + $0x89] sm:$0x1] %vm250, 0.0
      %275 = vst.msk [vmem:[#allocation2 + $0xa1] sm:$0x1] %vm250, 0.0
      %276 = vst.msk [vmem:[#allocation2 + $0xb9] sm:$0x1] %vm250, 0.0
      %277 = vst.msk [vmem:[#allocation2 + $0xd1] sm:$0x1] %vm250, 0.0
      %278 = vst.msk [vmem:[#allocation2 + $0xe9] sm:$0x1] %vm250, 0.0
      %279 = vst.msk [vmem:[#allocation2 + $0x101] sm:$0x1] %vm250, 0.0
      %280 = vst.msk [vmem:[#allocation2 + $0x119] sm:$0x1] %vm250, 0.0
      %281 = vst.msk [vmem:[#allocation2 + $0x131] sm:$0x1] %vm250, 0.0
      %282 = vst.msk [vmem:[#allocation2 + $0x149] sm:$0x1] %vm250, 0.0
      %283 = vst.msk [vmem:[#allocation2 + $0x161] sm:$0x1] %vm250, 0.0
      %284 = vst.msk [vmem:[#allocation2 + $0x179] sm:$0x1] %vm250, 0.0
      %285 = vst.msk [vmem:[#allocation2 + $0x191] sm:$0x1] %vm250, 0.0
      %286 = vst.msk [vmem:[#allocation2 + $0x1a9] sm:$0x1] %vm250, 0.0
      %s287 = scalar_lea.vmem [#allocation2], 24
      %288 = vst.msk [vmem:[%s287 + $0x1] sm:$0xff] %vm241, %v209
      %289 = vst.msk [vmem:[%s287 + $0x9] sm:$0xff] %vm241, %v210
      %290 = vst.msk [vmem:[%s287 + $0x19] sm:$0xff] %vm241, %v211
      %291 = vst.msk [vmem:[%s287 + $0x21] sm:$0xff] %vm241, %v212
      %292 = vst.msk [vmem:[%s287 + $0x31] sm:$0xff] %vm241, %v213
      %293 = vst.msk [vmem:[%s287 + $0x39] sm:$0xff] %vm241, %v214
      %294 = vst.msk [vmem:[%s287 + $0x49] sm:$0xff] %vm241, %v215
      %295 = vst.msk [vmem:[%s287 + $0x51] sm:$0xff] %vm241, %v216
      %296 = vst.msk [vmem:[%s287 + $0x61] sm:$0xff] %vm241, %v217
      %297 = vst.msk [vmem:[%s287 + $0x69] sm:$0xff] %vm241, %v218
      %298 = vst.msk [vmem:[%s287 + $0x79] sm:$0xff] %vm241, %v219
      %299 = vst.msk [vmem:[%s287 + $0x81] sm:$0xff] %vm241, %v220
      %300 = vst.msk [vmem:[%s287 + $0x91] sm:$0xff] %vm241, %v221
      %301 = vst.msk [vmem:[%s287 + $0x99] sm:$0xff] %vm241, %v222
      %302 = vst.msk [vmem:[%s287 + $0xa9] sm:$0xff] %vm241, %v223
      %303 = vst.msk [vmem:[%s287 + $0xb1] sm:$0xff] %vm241, %v224
      %304 = vst.msk [vmem:[%s287 + $0xc1] sm:$0xff] %vm241, %v225
      %305 = vst.msk [vmem:[%s287 + $0xc9] sm:$0xff] %vm241, %v226
      %306 = vst.msk [vmem:[%s287 + $0xd9] sm:$0xff] %vm241, %v227
      %307 = vst.msk [vmem:[%s287 + $0xe1] sm:$0xff] %vm241, %v228
      %308 = vst.msk [vmem:[%s287 + $0xf1] sm:$0xff] %vm241, %v229
      %309 = vst.msk [vmem:[%s287 + $0xf9] sm:$0xff] %vm241, %v230
      %310 = vst.msk [vmem:[%s287 + $0x109] sm:$0xff] %vm241, %v231
      %311 = vst.msk [vmem:[%s287 + $0x111] sm:$0xff] %vm241, %v232
      %312 = vst.msk [vmem:[%s287 + $0x121] sm:$0xff] %vm241, %v233
      %313 = vst.msk [vmem:[%s287 + $0x129] sm:$0xff] %vm241, %v234
      %314 = vst.msk [vmem:[%s287 + $0x139] sm:$0xff] %vm241, %v235
      %315 = vst.msk [vmem:[%s287 + $0x141] sm:$0xff] %vm241, %v236
      %316 = vst.msk [vmem:[%s287 + $0x151] sm:$0xff] %vm241, %v237
      %317 = vst.msk [vmem:[%s287 + $0x159] sm:$0xff] %vm241, %v238
      %318 = vst.msk [vmem:[%s287 + $0x169] sm:$0xff] %vm241, %v239
      %319 = vst.msk [vmem:[%s287 + $0x171] sm:$0xff] %vm241, %v240
      %v320 = vld [vmem:[#allocation2] sm:$0xff]
      %v321 = vld [vmem:[#allocation2 + $0x8] sm:$0xff]
      %v322 = vld [vmem:[#allocation2 + $0x18] sm:$0xff]
      %v323 = vld [vmem:[#allocation2 + $0x20] sm:$0xff]
      %v324 = vld [vmem:[#allocation2 + $0x30] sm:$0xff]
      %v325 = vld [vmem:[#allocation2 + $0x38] sm:$0xff]
      %v326 = vld [vmem:[#allocation2 + $0x48] sm:$0xff]
      %v327 = vld [vmem:[#allocation2 + $0x50] sm:$0xff]
      %v328 = vld [vmem:[#allocation2 + $0x60] sm:$0xff]
      %v329 = vld [vmem:[#allocation2 + $0x68] sm:$0xff]
      %v330 = vld [vmem:[#allocation2 + $0x78] sm:$0xff]
      %v331 = vld [vmem:[#allocation2 + $0x80] sm:$0xff]
      %v332 = vld [vmem:[#allocation2 + $0x90] sm:$0xff]
      %v333 = vld [vmem:[#allocation2 + $0x98] sm:$0xff]
      %v334 = vld [vmem:[#allocation2 + $0xa8] sm:$0xff]
      %v335 = vld [vmem:[#allocation2 + $0xb0] sm:$0xff]
      %v336 = vld [vmem:[#allocation2 + $0xc0] sm:$0xff]
      %v337 = vld [vmem:[#allocation2 + $0xc8] sm:$0xff]
      %v338 = vld [vmem:[#allocation2 + $0xd8] sm:$0xff]
      %v339 = vld [vmem:[#allocation2 + $0xe0] sm:$0xff]
      %v340 = vld [vmem:[#allocation2 + $0xf0] sm:$0xff]
      %v341 = vld [vmem:[#allocation2 + $0xf8] sm:$0xff]
      %v342 = vld [vmem:[#allocation2 + $0x108] sm:$0xff]
      %v343 = vld [vmem:[#allocation2 + $0x110] sm:$0xff]
      %v344 = vld [vmem:[#allocation2 + $0x120] sm:$0xff]
      %v345 = vld [vmem:[#allocation2 + $0x128] sm:$0xff]
      %v346 = vld [vmem:[#allocation2 + $0x138] sm:$0xff]
      %v347 = vld [vmem:[#allocation2 + $0x140] sm:$0xff]
      %v348 = vld [vmem:[#allocation2 + $0x150] sm:$0xff]
      %v349 = vld [vmem:[#allocation2 + $0x158] sm:$0xff]
      %v350 = vld [vmem:[#allocation2 + $0x168] sm:$0xff]
      %v351 = vld [vmem:[#allocation2 + $0x170] sm:$0xff]
      %352 = vst.msk [vmem:[#allocation3] sm:$0xff] %vm241, %v320
      %353 = vst.msk [vmem:[#allocation3 + $0x8] sm:$0xff] %vm241, %v321
      %354 = vst.msk [vmem:[#allocation3 + $0x10] sm:$0xff] %vm241, %v322
      %355 = vst.msk [vmem:[#allocation3 + $0x18] sm:$0xff] %vm241, %v323
      %356 = vst.msk [vmem:[#allocation3 + $0x20] sm:$0xff] %vm241, %v324
      %357 = vst.msk [vmem:[#allocation3 + $0x28] sm:$0xff] %vm241, %v325
      %358 = vst.msk [vmem:[#allocation3 + $0x30] sm:$0xff] %vm241, %v326
      %359 = vst.msk [vmem:[#allocation3 + $0x38] sm:$0xff] %vm241, %v327
      %360 = vst.msk [vmem:[#allocation3 + $0x40] sm:$0xff] %vm241, %v328
      %361 = vst.msk [vmem:[#allocation3 + $0x48] sm:$0xff] %vm241, %v329
      %362 = vst.msk [vmem:[#allocation3 + $0x50] sm:$0xff] %vm241, %v330
      %363 = vst.msk [vmem:[#allocation3 + $0x58] sm:$0xff] %vm241, %v331
      %364 = vst.msk [vmem:[#allocation3 + $0x60] sm:$0xff] %vm241, %v332
      %365 = vst.msk [vmem:[#allocation3 + $0x68] sm:$0xff] %vm241, %v333
      %366 = vst.msk [vmem:[#allocation3 + $0x70] sm:$0xff] %vm241, %v334
      %367 = vst.msk [vmem:[#allocation3 + $0x78] sm:$0xff] %vm241, %v335
      %368 = vst.msk [vmem:[#allocation3 + $0x80] sm:$0xff] %vm241, %v336
      %369 = vst.msk [vmem:[#allocation3 + $0x88] sm:$0xff] %vm241, %v337
      %370 = vst.msk [vmem:[#allocation3 + $0x90] sm:$0xff] %vm241, %v338
      %371 = vst.msk [vmem:[#allocation3 + $0x98] sm:$0xff] %vm241, %v339
      %372 = vst.msk [vmem:[#allocation3 + $0xa0] sm:$0xff] %vm241, %v340
      %373 = vst.msk [vmem:[#allocation3 + $0xa8] sm:$0xff] %vm241, %v341
      %374 = vst.msk [vmem:[#allocation3 + $0xb0] sm:$0xff] %vm241, %v342
      %375 = vst.msk [vmem:[#allocation3 + $0xb8] sm:$0xff] %vm241, %v343
      %376 = vst.msk [vmem:[#allocation3 + $0xc0] sm:$0xff] %vm241, %v344
      %377 = vst.msk [vmem:[#allocation3 + $0xc8] sm:$0xff] %vm241, %v345
      %378 = vst.msk [vmem:[#allocation3 + $0xd0] sm:$0xff] %vm241, %v346
      %379 = vst.msk [vmem:[#allocation3 + $0xd8] sm:$0xff] %vm241, %v347
      %380 = vst.msk [vmem:[#allocation3 + $0xe0] sm:$0xff] %vm241, %v348
      %381 = vst.msk [vmem:[#allocation3 + $0xe8] sm:$0xff] %vm241, %v349
      %382 = vst.msk [vmem:[#allocation3 + $0xf0] sm:$0xff] %vm241, %v350
      %383 = vst.msk [vmem:[#allocation3 + $0xf8] sm:$0xff] %vm241, %v351
      %v384 = vld [vmem:[#allocation2 + $0x1] sm:$0xff]
      %v385 = vld [vmem:[#allocation2 + $0x9] sm:$0xff]
      %v386 = vld [vmem:[#allocation2 + $0x19] sm:$0xff]
      %v387 = vld [vmem:[#allocation2 + $0x21] sm:$0xff]
      %v388 = vld [vmem:[#allocation2 + $0x31] sm:$0xff]
      %v389 = vld [vmem:[#allocation2 + $0x39] sm:$0xff]
      %v390 = vld [vmem:[#allocation2 + $0x49] sm:$0xff]
      %v391 = vld [vmem:[#allocation2 + $0x51] sm:$0xff]
      %v392 = vld [vmem:[#allocation2 + $0x61] sm:$0xff]
      %v393 = vld [vmem:[#allocation2 + $0x69] sm:$0xff]
      %v394 = vld [vmem:[#allocation2 + $0x79] sm:$0xff]
      %v395 = vld [vmem:[#allocation2 + $0x81] sm:$0xff]
      %v396 = vld [vmem:[#allocation2 + $0x91] sm:$0xff]
      %v397 = vld [vmem:[#allocation2 + $0x99] sm:$0xff]
      %v398 = vld [vmem:[#allocation2 + $0xa9] sm:$0xff]
      %v399 = vld [vmem:[#allocation2 + $0xb1] sm:$0xff]
      %v400 = vld [vmem:[#allocation2 + $0xc1] sm:$0xff]
      %v401 = vld [vmem:[#allocation2 + $0xc9] sm:$0xff]
      %v402 = vld [vmem:[#allocation2 + $0xd9] sm:$0xff]
      %v403 = vld [vmem:[#allocation2 + $0xe1] sm:$0xff]
      %v404 = vld [vmem:[#allocation2 + $0xf1] sm:$0xff]
      %v405 = vld [vmem:[#allocation2 + $0xf9] sm:$0xff]
      %v406 = vld [vmem:[#allocation2 + $0x109] sm:$0xff]
      %v407 = vld [vmem:[#allocation2 + $0x111] sm:$0xff]
      %v408 = vld [vmem:[#allocation2 + $0x121] sm:$0xff]
      %v409 = vld [vmem:[#allocation2 + $0x129] sm:$0xff]
      %v410 = vld [vmem:[#allocation2 + $0x139] sm:$0xff]
      %v411 = vld [vmem:[#allocation2 + $0x141] sm:$0xff]
      %v412 = vld [vmem:[#allocation2 + $0x151] sm:$0xff]
      %v413 = vld [vmem:[#allocation2 + $0x159] sm:$0xff]
      %v414 = vld [vmem:[#allocation2 + $0x169] sm:$0xff]
      %v415 = vld [vmem:[#allocation2 + $0x171] sm:$0xff]
      %448 = vrot.lane.b32.xlu0 %v384, 4
      %v449 = vpop.permute.xlu0 %448
      %450 = vrot.lane.b32.xlu0 %v385, 4
      %v451 = vpop.permute.xlu0 %450
      %452 = vrot.lane.b32.xlu0 %v386, 4
      %v453 = vpop.permute.xlu0 %452
      %454 = vrot.lane.b32.xlu0 %v387, 4
      %v455 = vpop.permute.xlu0 %454
      %456 = vrot.lane.b32.xlu0 %v388, 4
      %v457 = vpop.permute.xlu0 %456
      %458 = vrot.lane.b32.xlu0 %v389, 4
      %v459 = vpop.permute.xlu0 %458
      %460 = vrot.lane.b32.xlu0 %v390, 4
      %v461 = vpop.permute.xlu0 %460
      %462 = vrot.lane.b32.xlu0 %v391, 4
      %v463 = vpop.permute.xlu0 %462
      %464 = vrot.lane.b32.xlu0 %v392, 4
      %v465 = vpop.permute.xlu0 %464
      %466 = vrot.lane.b32.xlu0 %v393, 4
      %v467 = vpop.permute.xlu0 %466
      %468 = vrot.lane.b32.xlu0 %v394, 4
      %v469 = vpop.permute.xlu0 %468
      %470 = vrot.lane.b32.xlu0 %v395, 4
      %v471 = vpop.permute.xlu0 %470
      %472 = vrot.lane.b32.xlu0 %v396, 4
      %v473 = vpop.permute.xlu0 %472
      %474 = vrot.lane.b32.xlu0 %v397, 4
      %v475 = vpop.permute.xlu0 %474
      %476 = vrot.lane.b32.xlu0 %v398, 4
      %v477 = vpop.permute.xlu0 %476
      %478 = vrot.lane.b32.xlu0 %v399, 4
      %v479 = vpop.permute.xlu0 %478
      %480 = vrot.lane.b32.xlu0 %v400, 4
      %v481 = vpop.permute.xlu0 %480
      %482 = vrot.lane.b32.xlu0 %v401, 4
      %v483 = vpop.permute.xlu0 %482
      %484 = vrot.lane.b32.xlu0 %v402, 4
      %v485 = vpop.permute.xlu0 %484
      %486 = vrot.lane.b32.xlu0 %v403, 4
      %v487 = vpop.permute.xlu0 %486
      %488 = vrot.lane.b32.xlu0 %v404, 4
      %v489 = vpop.permute.xlu0 %488
      %490 = vrot.lane.b32.xlu0 %v405, 4
      %v491 = vpop.permute.xlu0 %490
      %492 = vrot.lane.b32.xlu0 %v406, 4
      %v493 = vpop.permute.xlu0 %492
      %494 = vrot.lane.b32.xlu0 %v407, 4
      %v495 = vpop.permute.xlu0 %494
      %496 = vrot.lane.b32.xlu0 %v408, 4
      %v497 = vpop.permute.xlu0 %496
      %498 = vrot.lane.b32.xlu0 %v409, 4
      %v499 = vpop.permute.xlu0 %498
      %500 = vrot.lane.b32.xlu0 %v410, 4
      %v501 = vpop.permute.xlu0 %500
      %502 = vrot.lane.b32.xlu0 %v411, 4
      %v503 = vpop.permute.xlu0 %502
      %504 = vrot.lane.b32.xlu0 %v412, 4
      %v505 = vpop.permute.xlu0 %504
      %506 = vrot.lane.b32.xlu0 %v413, 4
      %v507 = vpop.permute.xlu0 %506
      %508 = vrot.lane.b32.xlu0 %v414, 4
      %v509 = vpop.permute.xlu0 %508
      %510 = vrot.lane.b32.xlu0 %v415, 4
      %v511 = vpop.permute.xlu0 %510
      %vm544 = vcmask 64544
      %545 = vst.msk [vmem:[#allocation3] sm:$0xff] %vm544, %v449
      %546 = vst.msk [vmem:[#allocation3 + $0x8] sm:$0xff] %vm544, %v451
      %547 = vst.msk [vmem:[#allocation3 + $0x10] sm:$0xff] %vm544, %v453
      %548 = vst.msk [vmem:[#allocation3 + $0x18] sm:$0xff] %vm544, %v455
      %549 = vst.msk [vmem:[#allocation3 + $0x20] sm:$0xff] %vm544, %v457
      %550 = vst.msk [vmem:[#allocation3 + $0x28] sm:$0xff] %vm544, %v459
      %551 = vst.msk [vmem:[#allocation3 + $0x30] sm:$0xff] %vm544, %v461
      %552 = vst.msk [vmem:[#allocation3 + $0x38] sm:$0xff] %vm544, %v463
      %553 = vst.msk [vmem:[#allocation3 + $0x40] sm:$0xff] %vm544, %v465
      %554 = vst.msk [vmem:[#allocation3 + $0x48] sm:$0xff] %vm544, %v467
      %555 = vst.msk [vmem:[#allocation3 + $0x50] sm:$0xff] %vm544, %v469
      %556 = vst.msk [vmem:[#allocation3 + $0x58] sm:$0xff] %vm544, %v471
      %557 = vst.msk [vmem:[#allocation3 + $0x60] sm:$0xff] %vm544, %v473
      %558 = vst.msk [vmem:[#allocation3 + $0x68] sm:$0xff] %vm544, %v475
      %559 = vst.msk [vmem:[#allocation3 + $0x70] sm:$0xff] %vm544, %v477
      %560 = vst.msk [vmem:[#allocation3 + $0x78] sm:$0xff] %vm544, %v479
      %561 = vst.msk [vmem:[#allocation3 + $0x80] sm:$0xff] %vm544, %v481
      %562 = vst.msk [vmem:[#allocation3 + $0x88] sm:$0xff] %vm544, %v483
      %563 = vst.msk [vmem:[#allocation3 + $0x90] sm:$0xff] %vm544, %v485
      %564 = vst.msk [vmem:[#allocation3 + $0x98] sm:$0xff] %vm544, %v487
      %565 = vst.msk [vmem:[#allocation3 + $0xa0] sm:$0xff] %vm544, %v489
      %566 = vst.msk [vmem:[#allocation3 + $0xa8] sm:$0xff] %vm544, %v491
      %567 = vst.msk [vmem:[#allocation3 + $0xb0] sm:$0xff] %vm544, %v493
      %568 = vst.msk [vmem:[#allocation3 + $0xb8] sm:$0xff] %vm544, %v495
      %569 = vst.msk [vmem:[#allocation3 + $0xc0] sm:$0xff] %vm544, %v497
      %570 = vst.msk [vmem:[#allocation3 + $0xc8] sm:$0xff] %vm544, %v499
      %571 = vst.msk [vmem:[#allocation3 + $0xd0] sm:$0xff] %vm544, %v501
      %572 = vst.msk [vmem:[#allocation3 + $0xd8] sm:$0xff] %vm544, %v503
      %573 = vst.msk [vmem:[#allocation3 + $0xe0] sm:$0xff] %vm544, %v505
      %574 = vst.msk [vmem:[#allocation3 + $0xe8] sm:$0xff] %vm544, %v507
      %575 = vst.msk [vmem:[#allocation3 + $0xf0] sm:$0xff] %vm544, %v509
      %576 = vst.msk [vmem:[#allocation3 + $0xf8] sm:$0xff] %vm544, %v511
      %v577 = vld [vmem:[#allocation2 + $0x2] sm:$0xff]
      %v578 = vld [vmem:[#allocation2 + $0xa] sm:$0xff]
      %v579 = vld [vmem:[#allocation2 + $0x1a] sm:$0xff]
      %v580 = vld [vmem:[#allocation2 + $0x22] sm:$0xff]
      %v581 = vld [vmem:[#allocation2 + $0x32] sm:$0xff]
      %v582 = vld [vmem:[#allocation2 + $0x3a] sm:$0xff]
      %v583 = vld [vmem:[#allocation2 + $0x4a] sm:$0xff]
      %v584 = vld [vmem:[#allocation2 + $0x52] sm:$0xff]
      %v585 = vld [vmem:[#allocation2 + $0x62] sm:$0xff]
      %v586 = vld [vmem:[#allocation2 + $0x6a] sm:$0xff]
      %v587 = vld [vmem:[#allocation2 + $0x7a] sm:$0xff]
      %v588 = vld [vmem:[#allocation2 + $0x82] sm:$0xff]
      %v589 = vld [vmem:[#allocation2 + $0x92] sm:$0xff]
      %v590 = vld [vmem:[#allocation2 + $0x9a] sm:$0xff]
      %v591 = vld [vmem:[#allocation2 + $0xaa] sm:$0xff]
      %v592 = vld [vmem:[#allocation2 + $0xb2] sm:$0xff]
      %v593 = vld [vmem:[#allocation2 + $0xc2] sm:$0xff]
      %v594 = vld [vmem:[#allocation2 + $0xca] sm:$0xff]
      %v595 = vld [vmem:[#allocation2 + $0xda] sm:$0xff]
      %v596 = vld [vmem:[#allocation2 + $0xe2] sm:$0xff]
      %v597 = vld [vmem:[#allocation2 + $0xf2] sm:$0xff]
      %v598 = vld [vmem:[#allocation2 + $0xfa] sm:$0xff]
      %v599 = vld [vmem:[#allocation2 + $0x10a] sm:$0xff]
      %v600 = vld [vmem:[#allocation2 + $0x112] sm:$0xff]
      %v601 = vld [vmem:[#allocation2 + $0x122] sm:$0xff]
      %v602 = vld [vmem:[#allocation2 + $0x12a] sm:$0xff]
      %v603 = vld [vmem:[#allocation2 + $0x13a] sm:$0xff]
      %v604 = vld [vmem:[#allocation2 + $0x142] sm:$0xff]
      %v605 = vld [vmem:[#allocation2 + $0x152] sm:$0xff]
      %v606 = vld [vmem:[#allocation2 + $0x15a] sm:$0xff]
      %v607 = vld [vmem:[#allocation2 + $0x16a] sm:$0xff]
      %v608 = vld [vmem:[#allocation2 + $0x172] sm:$0xff]
      %641 = vrot.lane.b32.xlu0 %v577, 8
      %v642 = vpop.permute.xlu0 %641
      %643 = vrot.lane.b32.xlu0 %v578, 8
      %v644 = vpop.permute.xlu0 %643
      %645 = vrot.lane.b32.xlu0 %v579, 8
      %v646 = vpop.permute.xlu0 %645
      %647 = vrot.lane.b32.xlu0 %v580, 8
      %v648 = vpop.permute.xlu0 %647
      %649 = vrot.lane.b32.xlu0 %v581, 8
      %v650 = vpop.permute.xlu0 %649
      %651 = vrot.lane.b32.xlu0 %v582, 8
      %v652 = vpop.permute.xlu0 %651
      %653 = vrot.lane.b32.xlu0 %v583, 8
      %v654 = vpop.permute.xlu0 %653
      %655 = vrot.lane.b32.xlu0 %v584, 8
      %v656 = vpop.permute.xlu0 %655
      %657 = vrot.lane.b32.xlu0 %v585, 8
      %v658 = vpop.permute.xlu0 %657
      %659 = vrot.lane.b32.xlu0 %v586, 8
      %v660 = vpop.permute.xlu0 %659
      %661 = vrot.lane.b32.xlu0 %v587, 8
      %v662 = vpop.permute.xlu0 %661
      %663 = vrot.lane.b32.xlu0 %v588, 8
      %v664 = vpop.permute.xlu0 %663
      %665 = vrot.lane.b32.xlu0 %v589, 8
      %v666 = vpop.permute.xlu0 %665
      %667 = vrot.lane.b32.xlu0 %v590, 8
      %v668 = vpop.permute.xlu0 %667
      %669 = vrot.lane.b32.xlu0 %v591, 8
      %v670 = vpop.permute.xlu0 %669
      %671 = vrot.lane.b32.xlu0 %v592, 8
      %v672 = vpop.permute.xlu0 %671
      %673 = vrot.lane.b32.xlu0 %v593, 8
      %v674 = vpop.permute.xlu0 %673
      %675 = vrot.lane.b32.xlu0 %v594, 8
      %v676 = vpop.permute.xlu0 %675
      %677 = vrot.lane.b32.xlu0 %v595, 8
      %v678 = vpop.permute.xlu0 %677
      %679 = vrot.lane.b32.xlu0 %v596, 8
      %v680 = vpop.permute.xlu0 %679
      %681 = vrot.lane.b32.xlu0 %v597, 8
      %v682 = vpop.permute.xlu0 %681
      %683 = vrot.lane.b32.xlu0 %v598, 8
      %v684 = vpop.permute.xlu0 %683
      %685 = vrot.lane.b32.xlu0 %v599, 8
      %v686 = vpop.permute.xlu0 %685
      %687 = vrot.lane.b32.xlu0 %v600, 8
      %v688 = vpop.permute.xlu0 %687
      %689 = vrot.lane.b32.xlu0 %v601, 8
      %v690 = vpop.permute.xlu0 %689
      %691 = vrot.lane.b32.xlu0 %v602, 8
      %v692 = vpop.permute.xlu0 %691
      %693 = vrot.lane.b32.xlu0 %v603, 8
      %v694 = vpop.permute.xlu0 %693
      %695 = vrot.lane.b32.xlu0 %v604, 8
      %v696 = vpop.permute.xlu0 %695
      %697 = vrot.lane.b32.xlu0 %v605, 8
      %v698 = vpop.permute.xlu0 %697
      %699 = vrot.lane.b32.xlu0 %v606, 8
      %v700 = vpop.permute.xlu0 %699
      %701 = vrot.lane.b32.xlu0 %v607, 8
      %v702 = vpop.permute.xlu0 %701
      %703 = vrot.lane.b32.xlu0 %v608, 8
      %v704 = vpop.permute.xlu0 %703
      %vm737 = vcmask 97344
      %738 = vst.msk [vmem:[#allocation3] sm:$0xff] %vm737, %v642
      %739 = vst.msk [vmem:[#allocation3 + $0x8] sm:$0xff] %vm737, %v644
      %740 = vst.msk [vmem:[#allocation3 + $0x10] sm:$0xff] %vm737, %v646
      %741 = vst.msk [vmem:[#allocation3 + $0x18] sm:$0xff] %vm737, %v648
      %742 = vst.msk [vmem:[#allocation3 + $0x20] sm:$0xff] %vm737, %v650
      %743 = vst.msk [vmem:[#allocation3 + $0x28] sm:$0xff] %vm737, %v652
      %744 = vst.msk [vmem:[#allocation3 + $0x30] sm:$0xff] %vm737, %v654
      %745 = vst.msk [vmem:[#allocation3 + $0x38] sm:$0xff] %vm737, %v656
      %746 = vst.msk [vmem:[#allocation3 + $0x40] sm:$0xff] %vm737, %v658
      %747 = vst.msk [vmem:[#allocation3 + $0x48] sm:$0xff] %vm737, %v660
      %748 = vst.msk [vmem:[#allocation3 + $0x50] sm:$0xff] %vm737, %v662
      %749 = vst.msk [vmem:[#allocation3 + $0x58] sm:$0xff] %vm737, %v664
      %750 = vst.msk [vmem:[#allocation3 + $0x60] sm:$0xff] %vm737, %v666
      %751 = vst.msk [vmem:[#allocation3 + $0x68] sm:$0xff] %vm737, %v668
      %752 = vst.msk [vmem:[#allocation3 + $0x70] sm:$0xff] %vm737, %v670
      %753 = vst.msk [vmem:[#allocation3 + $0x78] sm:$0xff] %vm737, %v672
      %754 = vst.msk [vmem:[#allocation3 + $0x80] sm:$0xff] %vm737, %v674
      %755 = vst.msk [vmem:[#allocation3 + $0x88] sm:$0xff] %vm737, %v676
      %756 = vst.msk [vmem:[#allocation3 + $0x90] sm:$0xff] %vm737, %v678
      %757 = vst.msk [vmem:[#allocation3 + $0x98] sm:$0xff] %vm737, %v680
      %758 = vst.msk [vmem:[#allocation3 + $0xa0] sm:$0xff] %vm737, %v682
      %759 = vst.msk [vmem:[#allocation3 + $0xa8] sm:$0xff] %vm737, %v684
      %760 = vst.msk [vmem:[#allocation3 + $0xb0] sm:$0xff] %vm737, %v686
      %761 = vst.msk [vmem:[#allocation3 + $0xb8] sm:$0xff] %vm737, %v688
      %762 = vst.msk [vmem:[#allocation3 + $0xc0] sm:$0xff] %vm737, %v690
      %763 = vst.msk [vmem:[#allocation3 + $0xc8] sm:$0xff] %vm737, %v692
      %764 = vst.msk [vmem:[#allocation3 + $0xd0] sm:$0xff] %vm737, %v694
      %765 = vst.msk [vmem:[#allocation3 + $0xd8] sm:$0xff] %vm737, %v696
      %766 = vst.msk [vmem:[#allocation3 + $0xe0] sm:$0xff] %vm737, %v698
      %767 = vst.msk [vmem:[#allocation3 + $0xe8] sm:$0xff] %vm737, %v700
      %768 = vst.msk [vmem:[#allocation3 + $0xf0] sm:$0xff] %vm737, %v702
      %769 = vst.msk [vmem:[#allocation3 + $0xf8] sm:$0xff] %vm737, %v704
      %v770 = vld [vmem:[%s287] sm:$0xff]
      %v771 = vld [vmem:[%s287 + $0x8] sm:$0xff]
      %v772 = vld [vmem:[%s287 + $0x18] sm:$0xff]
      %v773 = vld [vmem:[%s287 + $0x20] sm:$0xff]
      %v774 = vld [vmem:[%s287 + $0x30] sm:$0xff]
      %v775 = vld [vmem:[%s287 + $0x38] sm:$0xff]
      %v776 = vld [vmem:[%s287 + $0x48] sm:$0xff]
      %v777 = vld [vmem:[%s287 + $0x50] sm:$0xff]
      %v778 = vld [vmem:[%s287 + $0x60] sm:$0xff]
      %v779 = vld [vmem:[%s287 + $0x68] sm:$0xff]
      %v780 = vld [vmem:[%s287 + $0x78] sm:$0xff]
      %v781 = vld [vmem:[%s287 + $0x80] sm:$0xff]
      %v782 = vld [vmem:[%s287 + $0x90] sm:$0xff]
      %v783 = vld [vmem:[%s287 + $0x98] sm:$0xff]
      %v784 = vld [vmem:[%s287 + $0xa8] sm:$0xff]
      %v785 = vld [vmem:[%s287 + $0xb0] sm:$0xff]
      %v786 = vld [vmem:[%s287 + $0xc0] sm:$0xff]
      %v787 = vld [vmem:[%s287 + $0xc8] sm:$0xff]
      %v788 = vld [vmem:[%s287 + $0xd8] sm:$0xff]
      %v789 = vld [vmem:[%s287 + $0xe0] sm:$0xff]
      %v790 = vld [vmem:[%s287 + $0xf0] sm:$0xff]
      %v791 = vld [vmem:[%s287 + $0xf8] sm:$0xff]
      %v792 = vld [vmem:[%s287 + $0x108] sm:$0xff]
      %v793 = vld [vmem:[%s287 + $0x110] sm:$0xff]
      %v794 = vld [vmem:[%s287 + $0x120] sm:$0xff]
      %v795 = vld [vmem:[%s287 + $0x128] sm:$0xff]
      %v796 = vld [vmem:[%s287 + $0x138] sm:$0xff]
      %v797 = vld [vmem:[%s287 + $0x140] sm:$0xff]
      %v798 = vld [vmem:[%s287 + $0x150] sm:$0xff]
      %v799 = vld [vmem:[%s287 + $0x158] sm:$0xff]
      %v800 = vld [vmem:[%s287 + $0x168] sm:$0xff]
      %v801 = vld [vmem:[%s287 + $0x170] sm:$0xff]
      %834 = vrot.lane.b32.xlu0 %v770, 12
      %v835 = vpop.permute.xlu0 %834
      %836 = vrot.lane.b32.xlu0 %v771, 12
      %v837 = vpop.permute.xlu0 %836
      %838 = vrot.lane.b32.xlu0 %v772, 12
      %v839 = vpop.permute.xlu0 %838
      %840 = vrot.lane.b32.xlu0 %v773, 12
      %v841 = vpop.permute.xlu0 %840
      %842 = vrot.lane.b32.xlu0 %v774, 12
      %v843 = vpop.permute.xlu0 %842
      %844 = vrot.lane.b32.xlu0 %v775, 12
      %v845 = vpop.permute.xlu0 %844
      %846 = vrot.lane.b32.xlu0 %v776, 12
      %v847 = vpop.permute.xlu0 %846
      %848 = vrot.lane.b32.xlu0 %v777, 12
      %v849 = vpop.permute.xlu0 %848
      %850 = vrot.lane.b32.xlu0 %v778, 12
      %v851 = vpop.permute.xlu0 %850
      %852 = vrot.lane.b32.xlu0 %v779, 12
      %v853 = vpop.permute.xlu0 %852
      %854 = vrot.lane.b32.xlu0 %v780, 12
      %v855 = vpop.permute.xlu0 %854
      %856 = vrot.lane.b32.xlu0 %v781, 12
      %v857 = vpop.permute.xlu0 %856
      %858 = vrot.lane.b32.xlu0 %v782, 12
      %v859 = vpop.permute.xlu0 %858
      %860 = vrot.lane.b32.xlu0 %v783, 12
      %v861 = vpop.permute.xlu0 %860
      %862 = vrot.lane.b32.xlu0 %v784, 12
      %v863 = vpop.permute.xlu0 %862
      %864 = vrot.lane.b32.xlu0 %v785, 12
      %v865 = vpop.permute.xlu0 %864
      %866 = vrot.lane.b32.xlu0 %v786, 12
      %v867 = vpop.permute.xlu0 %866
      %868 = vrot.lane.b32.xlu0 %v787, 12
      %v869 = vpop.permute.xlu0 %868
      %870 = vrot.lane.b32.xlu0 %v788, 12
      %v871 = vpop.permute.xlu0 %870
      %872 = vrot.lane.b32.xlu0 %v789, 12
      %v873 = vpop.permute.xlu0 %872
      %874 = vrot.lane.b32.xlu0 %v790, 12
      %v875 = vpop.permute.xlu0 %874
      %876 = vrot.lane.b32.xlu0 %v791, 12
      %v877 = vpop.permute.xlu0 %876
      %878 = vrot.lane.b32.xlu0 %v792, 12
      %v879 = vpop.permute.xlu0 %878
      %880 = vrot.lane.b32.xlu0 %v793, 12
      %v881 = vpop.permute.xlu0 %880
      %882 = vrot.lane.b32.xlu0 %v794, 12
      %v883 = vpop.permute.xlu0 %882
      %884 = vrot.lane.b32.xlu0 %v795, 12
      %v885 = vpop.permute.xlu0 %884
      %886 = vrot.lane.b32.xlu0 %v796, 12
      %v887 = vpop.permute.xlu0 %886
      %888 = vrot.lane.b32.xlu0 %v797, 12
      %v889 = vpop.permute.xlu0 %888
      %890 = vrot.lane.b32.xlu0 %v798, 12
      %v891 = vpop.permute.xlu0 %890
      %892 = vrot.lane.b32.xlu0 %v799, 12
      %v893 = vpop.permute.xlu0 %892
      %894 = vrot.lane.b32.xlu0 %v800, 12
      %v895 = vpop.permute.xlu0 %894
      %896 = vrot.lane.b32.xlu0 %v801, 12
      %v897 = vpop.permute.xlu0 %896
      %vm930 = vcmask 130144
      %931 = vst.msk [vmem:[#allocation3] sm:$0xff] %vm930, %v835
      %932 = vst.msk [vmem:[#allocation3 + $0x8] sm:$0xff] %vm930, %v837
      %933 = vst.msk [vmem:[#allocation3 + $0x10] sm:$0xff] %vm930, %v839
      %934 = vst.msk [vmem:[#allocation3 + $0x18] sm:$0xff] %vm930, %v841
      %935 = vst.msk [vmem:[#allocation3 + $0x20] sm:$0xff] %vm930, %v843
      %936 = vst.msk [vmem:[#allocation3 + $0x28] sm:$0xff] %vm930, %v845
      %937 = vst.msk [vmem:[#allocation3 + $0x30] sm:$0xff] %vm930, %v847
      %938 = vst.msk [vmem:[#allocation3 + $0x38] sm:$0xff] %vm930, %v849
      %939 = vst.msk [vmem:[#allocation3 + $0x40] sm:$0xff] %vm930, %v851
      %940 = vst.msk [vmem:[#allocation3 + $0x48] sm:$0xff] %vm930, %v853
      %941 = vst.msk [vmem:[#allocation3 + $0x50] sm:$0xff] %vm930, %v855
      %942 = vst.msk [vmem:[#allocation3 + $0x58] sm:$0xff] %vm930, %v857
      %943 = vst.msk [vmem:[#allocation3 + $0x60] sm:$0xff] %vm930, %v859
      %944 = vst.msk [vmem:[#allocation3 + $0x68] sm:$0xff] %vm930, %v861
      %945 = vst.msk [vmem:[#allocation3 + $0x70] sm:$0xff] %vm930, %v863
      %946 = vst.msk [vmem:[#allocation3 + $0x78] sm:$0xff] %vm930, %v865
      %947 = vst.msk [vmem:[#allocation3 + $0x80] sm:$0xff] %vm930, %v867
      %948 = vst.msk [vmem:[#allocation3 + $0x88] sm:$0xff] %vm930, %v869
      %949 = vst.msk [vmem:[#allocation3 + $0x90] sm:$0xff] %vm930, %v871
      %950 = vst.msk [vmem:[#allocation3 + $0x98] sm:$0xff] %vm930, %v873
      %951 = vst.msk [vmem:[#allocation3 + $0xa0] sm:$0xff] %vm930, %v875
      %952 = vst.msk [vmem:[#allocation3 + $0xa8] sm:$0xff] %vm930, %v877
      %953 = vst.msk [vmem:[#allocation3 + $0xb0] sm:$0xff] %vm930, %v879
      %954 = vst.msk [vmem:[#allocation3 + $0xb8] sm:$0xff] %vm930, %v881
      %955 = vst.msk [vmem:[#allocation3 + $0xc0] sm:$0xff] %vm930, %v883
      %956 = vst.msk [vmem:[#allocation3 + $0xc8] sm:$0xff] %vm930, %v885
      %957 = vst.msk [vmem:[#allocation3 + $0xd0] sm:$0xff] %vm930, %v887
      %958 = vst.msk [vmem:[#allocation3 + $0xd8] sm:$0xff] %vm930, %v889
      %959 = vst.msk [vmem:[#allocation3 + $0xe0] sm:$0xff] %vm930, %v891
      %960 = vst.msk [vmem:[#allocation3 + $0xe8] sm:$0xff] %vm930, %v893
      %961 = vst.msk [vmem:[#allocation3 + $0xf0] sm:$0xff] %vm930, %v895
      %962 = vst.msk [vmem:[#allocation3 + $0xf8] sm:$0xff] %vm930, %v897
      %v963 = vld [vmem:[%s287 + $0x1] sm:$0xff]
      %v964 = vld [vmem:[%s287 + $0x9] sm:$0xff]
      %v965 = vld [vmem:[%s287 + $0x19] sm:$0xff]
      %v966 = vld [vmem:[%s287 + $0x21] sm:$0xff]
      %v967 = vld [vmem:[%s287 + $0x31] sm:$0xff]
      %v968 = vld [vmem:[%s287 + $0x39] sm:$0xff]
      %v969 = vld [vmem:[%s287 + $0x49] sm:$0xff]
      %v970 = vld [vmem:[%s287 + $0x51] sm:$0xff]
      %v971 = vld [vmem:[%s287 + $0x61] sm:$0xff]
      %v972 = vld [vmem:[%s287 + $0x69] sm:$0xff]
      %v973 = vld [vmem:[%s287 + $0x79] sm:$0xff]
      %v974 = vld [vmem:[%s287 + $0x81] sm:$0xff]
      %v975 = vld [vmem:[%s287 + $0x91] sm:$0xff]
      %v976 = vld [vmem:[%s287 + $0x99] sm:$0xff]
      %v977 = vld [vmem:[%s287 + $0xa9] sm:$0xff]
      %v978 = vld [vmem:[%s287 + $0xb1] sm:$0xff]
      %v979 = vld [vmem:[%s287 + $0xc1] sm:$0xff]
      %v980 = vld [vmem:[%s287 + $0xc9] sm:$0xff]
      %v981 = vld [vmem:[%s287 + $0xd9] sm:$0xff]
      %v982 = vld [vmem:[%s287 + $0xe1] sm:$0xff]
      %v983 = vld [vmem:[%s287 + $0xf1] sm:$0xff]
      %v984 = vld [vmem:[%s287 + $0xf9] sm:$0xff]
      %v985 = vld [vmem:[%s287 + $0x109] sm:$0xff]
      %v986 = vld [vmem:[%s287 + $0x111] sm:$0xff]
      %v987 = vld [vmem:[%s287 + $0x121] sm:$0xff]
      %v988 = vld [vmem:[%s287 + $0x129] sm:$0xff]
      %v989 = vld [vmem:[%s287 + $0x139] sm:$0xff]
      %v990 = vld [vmem:[%s287 + $0x141] sm:$0xff]
      %v991 = vld [vmem:[%s287 + $0x151] sm:$0xff]
      %v992 = vld [vmem:[%s287 + $0x159] sm:$0xff]
      %v993 = vld [vmem:[%s287 + $0x169] sm:$0xff]
      %v994 = vld [vmem:[%s287 + $0x171] sm:$0xff]
      %1027 = vrot.lane.b32.xlu0 %v963, 16
      %v1028 = vpop.permute.xlu0 %1027
      %1029 = vrot.lane.b32.xlu0 %v964, 16
      %v1030 = vpop.permute.xlu0 %1029
      %1031 = vrot.lane.b32.xlu0 %v965, 16
      %v1032 = vpop.permute.xlu0 %1031
      %1033 = vrot.lane.b32.xlu0 %v966, 16
      %v1034 = vpop.permute.xlu0 %1033
      %1035 = vrot.lane.b32.xlu0 %v967, 16
      %v1036 = vpop.permute.xlu0 %1035
      %1037 = vrot.lane.b32.xlu0 %v968, 16
      %v1038 = vpop.permute.xlu0 %1037
      %1039 = vrot.lane.b32.xlu0 %v969, 16
      %v1040 = vpop.permute.xlu0 %1039
      %1041 = vrot.lane.b32.xlu0 %v970, 16
      %v1042 = vpop.permute.xlu0 %1041
      %1043 = vrot.lane.b32.xlu0 %v971, 16
      %v1044 = vpop.permute.xlu0 %1043
      %1045 = vrot.lane.b32.xlu0 %v972, 16
      %v1046 = vpop.permute.xlu0 %1045
      %1047 = vrot.lane.b32.xlu0 %v973, 16
      %v1048 = vpop.permute.xlu0 %1047
      %1049 = vrot.lane.b32.xlu0 %v974, 16
      %v1050 = vpop.permute.xlu0 %1049
      %1051 = vrot.lane.b32.xlu0 %v975, 16
      %v1052 = vpop.permute.xlu0 %1051
      %1053 = vrot.lane.b32.xlu0 %v976, 16
      %v1054 = vpop.permute.xlu0 %1053
      %1055 = vrot.lane.b32.xlu0 %v977, 16
      %v1056 = vpop.permute.xlu0 %1055
      %1057 = vrot.lane.b32.xlu0 %v978, 16
      %v1058 = vpop.permute.xlu0 %1057
      %1059 = vrot.lane.b32.xlu0 %v979, 16
      %v1060 = vpop.permute.xlu0 %1059
      %1061 = vrot.lane.b32.xlu0 %v980, 16
      %v1062 = vpop.permute.xlu0 %1061
      %1063 = vrot.lane.b32.xlu0 %v981, 16
      %v1064 = vpop.permute.xlu0 %1063
      %1065 = vrot.lane.b32.xlu0 %v982, 16
      %v1066 = vpop.permute.xlu0 %1065
      %1067 = vrot.lane.b32.xlu0 %v983, 16
      %v1068 = vpop.permute.xlu0 %1067
      %1069 = vrot.lane.b32.xlu0 %v984, 16
      %v1070 = vpop.permute.xlu0 %1069
      %1071 = vrot.lane.b32.xlu0 %v985, 16
      %v1072 = vpop.permute.xlu0 %1071
      %1073 = vrot.lane.b32.xlu0 %v986, 16
      %v1074 = vpop.permute.xlu0 %1073
      %1075 = vrot.lane.b32.xlu0 %v987, 16
      %v1076 = vpop.permute.xlu0 %1075
      %1077 = vrot.lane.b32.xlu0 %v988, 16
      %v1078 = vpop.permute.xlu0 %1077
      %1079 = vrot.lane.b32.xlu0 %v989, 16
      %v1080 = vpop.permute.xlu0 %1079
      %1081 = vrot.lane.b32.xlu0 %v990, 16
      %v1082 = vpop.permute.xlu0 %1081
      %1083 = vrot.lane.b32.xlu0 %v991, 16
      %v1084 = vpop.permute.xlu0 %1083
      %1085 = vrot.lane.b32.xlu0 %v992, 16
      %v1086 = vpop.permute.xlu0 %1085
      %1087 = vrot.lane.b32.xlu0 %v993, 16
      %v1088 = vpop.permute.xlu0 %1087
      %1089 = vrot.lane.b32.xlu0 %v994, 16
      %v1090 = vpop.permute.xlu0 %1089
      %vm1123 = vcmask 162944
      %1124 = vst.msk [vmem:[#allocation3] sm:$0xff] %vm1123, %v1028
      %1125 = vst.msk [vmem:[#allocation3 + $0x8] sm:$0xff] %vm1123, %v1030
      %1126 = vst.msk [vmem:[#allocation3 + $0x10] sm:$0xff] %vm1123, %v1032
      %1127 = vst.msk [vmem:[#allocation3 + $0x18] sm:$0xff] %vm1123, %v1034
      %1128 = vst.msk [vmem:[#allocation3 + $0x20] sm:$0xff] %vm1123, %v1036
      %1129 = vst.msk [vmem:[#allocation3 + $0x28] sm:$0xff] %vm1123, %v1038
      %1130 = vst.msk [vmem:[#allocation3 + $0x30] sm:$0xff] %vm1123, %v1040
      %1131 = vst.msk [vmem:[#allocation3 + $0x38] sm:$0xff] %vm1123, %v1042
      %1132 = vst.msk [vmem:[#allocation3 + $0x40] sm:$0xff] %vm1123, %v1044
      %1133 = vst.msk [vmem:[#allocation3 + $0x48] sm:$0xff] %vm1123, %v1046
      %1134 = vst.msk [vmem:[#allocation3 + $0x50] sm:$0xff] %vm1123, %v1048
      %1135 = vst.msk [vmem:[#allocation3 + $0x58] sm:$0xff] %vm1123, %v1050
      %1136 = vst.msk [vmem:[#allocation3 + $0x60] sm:$0xff] %vm1123, %v1052
      %1137 = vst.msk [vmem:[#allocation3 + $0x68] sm:$0xff] %vm1123, %v1054
      %1138 = vst.msk [vmem:[#allocation3 + $0x70] sm:$0xff] %vm1123, %v1056
      %1139 = vst.msk [vmem:[#allocation3 + $0x78] sm:$0xff] %vm1123, %v1058
      %1140 = vst.msk [vmem:[#allocation3 + $0x80] sm:$0xff] %vm1123, %v1060
      %1141 = vst.msk [vmem:[#allocation3 + $0x88] sm:$0xff] %vm1123, %v1062
      %1142 = vst.msk [vmem:[#allocation3 + $0x90] sm:$0xff] %vm1123, %v1064
      %1143 = vst.msk [vmem:[#allocation3 + $0x98] sm:$0xff] %vm1123, %v1066
      %1144 = vst.msk [vmem:[#allocation3 + $0xa0] sm:$0xff] %vm1123, %v1068
      %1145 = vst.msk [vmem:[#allocation3 + $0xa8] sm:$0xff] %vm1123, %v1070
      %1146 = vst.msk [vmem:[#allocation3 + $0xb0] sm:$0xff] %vm1123, %v1072
      %1147 = vst.msk [vmem:[#allocation3 + $0xb8] sm:$0xff] %vm1123, %v1074
      %1148 = vst.msk [vmem:[#allocation3 + $0xc0] sm:$0xff] %vm1123, %v1076
      %1149 = vst.msk [vmem:[#allocation3 + $0xc8] sm:$0xff] %vm1123, %v1078
      %1150 = vst.msk [vmem:[#allocation3 + $0xd0] sm:$0xff] %vm1123, %v1080
      %1151 = vst.msk [vmem:[#allocation3 + $0xd8] sm:$0xff] %vm1123, %v1082
      %1152 = vst.msk [vmem:[#allocation3 + $0xe0] sm:$0xff] %vm1123, %v1084
      %1153 = vst.msk [vmem:[#allocation3 + $0xe8] sm:$0xff] %vm1123, %v1086
      %1154 = vst.msk [vmem:[#allocation3 + $0xf0] sm:$0xff] %vm1123, %v1088
      %1155 = vst.msk [vmem:[#allocation3 + $0xf8] sm:$0xff] %vm1123, %v1090
      %v1156 = vld [vmem:[%s287 + $0x2] sm:$0xff]
      %v1157 = vld [vmem:[%s287 + $0xa] sm:$0xff]
      %v1158 = vld [vmem:[%s287 + $0x1a] sm:$0xff]
      %v1159 = vld [vmem:[%s287 + $0x22] sm:$0xff]
      %v1160 = vld [vmem:[%s287 + $0x32] sm:$0xff]
      %v1161 = vld [vmem:[%s287 + $0x3a] sm:$0xff]
      %v1162 = vld [vmem:[%s287 + $0x4a] sm:$0xff]
      %v1163 = vld [vmem:[%s287 + $0x52] sm:$0xff]
      %v1164 = vld [vmem:[%s287 + $0x62] sm:$0xff]
      %v1165 = vld [vmem:[%s287 + $0x6a] sm:$0xff]
      %v1166 = vld [vmem:[%s287 + $0x7a] sm:$0xff]
      %v1167 = vld [vmem:[%s287 + $0x82] sm:$0xff]
      %v1168 = vld [vmem:[%s287 + $0x92] sm:$0xff]
      %v1169 = vld [vmem:[%s287 + $0x9a] sm:$0xff]
      %v1170 = vld [vmem:[%s287 + $0xaa] sm:$0xff]
      %v1171 = vld [vmem:[%s287 + $0xb2] sm:$0xff]
      %v1172 = vld [vmem:[%s287 + $0xc2] sm:$0xff]
      %v1173 = vld [vmem:[%s287 + $0xca] sm:$0xff]
      %v1174 = vld [vmem:[%s287 + $0xda] sm:$0xff]
      %v1175 = vld [vmem:[%s287 + $0xe2] sm:$0xff]
      %v1176 = vld [vmem:[%s287 + $0xf2] sm:$0xff]
      %v1177 = vld [vmem:[%s287 + $0xfa] sm:$0xff]
      %v1178 = vld [vmem:[%s287 + $0x10a] sm:$0xff]
      %v1179 = vld [vmem:[%s287 + $0x112] sm:$0xff]
      %v1180 = vld [vmem:[%s287 + $0x122] sm:$0xff]
      %v1181 = vld [vmem:[%s287 + $0x12a] sm:$0xff]
      %v1182 = vld [vmem:[%s287 + $0x13a] sm:$0xff]
      %v1183 = vld [vmem:[%s287 + $0x142] sm:$0xff]
      %v1184 = vld [vmem:[%s287 + $0x152] sm:$0xff]
      %v1185 = vld [vmem:[%s287 + $0x15a] sm:$0xff]
      %v1186 = vld [vmem:[%s287 + $0x16a] sm:$0xff]
      %v1187 = vld [vmem:[%s287 + $0x172] sm:$0xff]
      %1220 = vrot.lane.b32.xlu0 %v1156, 20
      %v1221 = vpop.permute.xlu0 %1220
      %1222 = vrot.lane.b32.xlu0 %v1157, 20
      %v1223 = vpop.permute.xlu0 %1222
      %1224 = vrot.lane.b32.xlu0 %v1158, 20
      %v1225 = vpop.permute.xlu0 %1224
      %1226 = vrot.lane.b32.xlu0 %v1159, 20
      %v1227 = vpop.permute.xlu0 %1226
      %1228 = vrot.lane.b32.xlu0 %v1160, 20
      %v1229 = vpop.permute.xlu0 %1228
      %1230 = vrot.lane.b32.xlu0 %v1161, 20
      %v1231 = vpop.permute.xlu0 %1230
      %1232 = vrot.lane.b32.xlu0 %v1162, 20
      %v1233 = vpop.permute.xlu0 %1232
      %1234 = vrot.lane.b32.xlu0 %v1163, 20
      %v1235 = vpop.permute.xlu0 %1234
      %1236 = vrot.lane.b32.xlu0 %v1164, 20
      %v1237 = vpop.permute.xlu0 %1236
      %1238 = vrot.lane.b32.xlu0 %v1165, 20
      %v1239 = vpop.permute.xlu0 %1238
      %1240 = vrot.lane.b32.xlu0 %v1166, 20
      %v1241 = vpop.permute.xlu0 %1240
      %1242 = vrot.lane.b32.xlu0 %v1167, 20
      %v1243 = vpop.permute.xlu0 %1242
      %1244 = vrot.lane.b32.xlu0 %v1168, 20
      %v1245 = vpop.permute.xlu0 %1244
      %1246 = vrot.lane.b32.xlu0 %v1169, 20
      %v1247 = vpop.permute.xlu0 %1246
      %1248 = vrot.lane.b32.xlu0 %v1170, 20
      %v1249 = vpop.permute.xlu0 %1248
      %1250 = vrot.lane.b32.xlu0 %v1171, 20
      %v1251 = vpop.permute.xlu0 %1250
      %1252 = vrot.lane.b32.xlu0 %v1172, 20
      %v1253 = vpop.permute.xlu0 %1252
      %1254 = vrot.lane.b32.xlu0 %v1173, 20
      %v1255 = vpop.permute.xlu0 %1254
      %1256 = vrot.lane.b32.xlu0 %v1174, 20
      %v1257 = vpop.permute.xlu0 %1256
      %1258 = vrot.lane.b32.xlu0 %v1175, 20
      %v1259 = vpop.permute.xlu0 %1258
      %1260 = vrot.lane.b32.xlu0 %v1176, 20
      %v1261 = vpop.permute.xlu0 %1260
      %1262 = vrot.lane.b32.xlu0 %v1177, 20
      %v1263 = vpop.permute.xlu0 %1262
      %1264 = vrot.lane.b32.xlu0 %v1178, 20
      %v1265 = vpop.permute.xlu0 %1264
      %1266 = vrot.lane.b32.xlu0 %v1179, 20
      %v1267 = vpop.permute.xlu0 %1266
      %1268 = vrot.lane.b32.xlu0 %v1180, 20
      %v1269 = vpop.permute.xlu0 %1268
      %1270 = vrot.lane.b32.xlu0 %v1181, 20
      %v1271 = vpop.permute.xlu0 %1270
      %1272 = vrot.lane.b32.xlu0 %v1182, 20
      %v1273 = vpop.permute.xlu0 %1272
      %1274 = vrot.lane.b32.xlu0 %v1183, 20
      %v1275 = vpop.permute.xlu0 %1274
      %1276 = vrot.lane.b32.xlu0 %v1184, 20
      %v1277 = vpop.permute.xlu0 %1276
      %1278 = vrot.lane.b32.xlu0 %v1185, 20
      %v1279 = vpop.permute.xlu0 %1278
      %1280 = vrot.lane.b32.xlu0 %v1186, 20
      %v1281 = vpop.permute.xlu0 %1280
      %1282 = vrot.lane.b32.xlu0 %v1187, 20
      %v1283 = vpop.permute.xlu0 %1282
      %vm1316 = vcmask 195744
      %1317 = vst.msk [vmem:[#allocation3] sm:$0xff] %vm1316, %v1221
      %1318 = vst.msk [vmem:[#allocation3 + $0x8] sm:$0xff] %vm1316, %v1223
      %1319 = vst.msk [vmem:[#allocation3 + $0x10] sm:$0xff] %vm1316, %v1225
      %1320 = vst.msk [vmem:[#allocation3 + $0x18] sm:$0xff] %vm1316, %v1227
      %1321 = vst.msk [vmem:[#allocation3 + $0x20] sm:$0xff] %vm1316, %v1229
      %1322 = vst.msk [vmem:[#allocation3 + $0x28] sm:$0xff] %vm1316, %v1231
      %1323 = vst.msk [vmem:[#allocation3 + $0x30] sm:$0xff] %vm1316, %v1233
      %1324 = vst.msk [vmem:[#allocation3 + $0x38] sm:$0xff] %vm1316, %v1235
      %1325 = vst.msk [vmem:[#allocation3 + $0x40] sm:$0xff] %vm1316, %v1237
      %1326 = vst.msk [vmem:[#allocation3 + $0x48] sm:$0xff] %vm1316, %v1239
      %1327 = vst.msk [vmem:[#allocation3 + $0x50] sm:$0xff] %vm1316, %v1241
      %1328 = vst.msk [vmem:[#allocation3 + $0x58] sm:$0xff] %vm1316, %v1243
      %1329 = vst.msk [vmem:[#allocation3 + $0x60] sm:$0xff] %vm1316, %v1245
      %1330 = vst.msk [vmem:[#allocation3 + $0x68] sm:$0xff] %vm1316, %v1247
      %1331 = vst.msk [vmem:[#allocation3 + $0x70] sm:$0xff] %vm1316, %v1249
      %1332 = vst.msk [vmem:[#allocation3 + $0x78] sm:$0xff] %vm1316, %v1251
      %1333 = vst.msk [vmem:[#allocation3 + $0x80] sm:$0xff] %vm1316, %v1253
      %1334 = vst.msk [vmem:[#allocation3 + $0x88] sm:$0xff] %vm1316, %v1255
      %1335 = vst.msk [vmem:[#allocation3 + $0x90] sm:$0xff] %vm1316, %v1257
      %1336 = vst.msk [vmem:[#allocation3 + $0x98] sm:$0xff] %vm1316, %v1259
      %1337 = vst.msk [vmem:[#allocation3 + $0xa0] sm:$0xff] %vm1316, %v1261
      %1338 = vst.msk [vmem:[#allocation3 + $0xa8] sm:$0xff] %vm1316, %v1263
      %1339 = vst.msk [vmem:[#allocation3 + $0xb0] sm:$0xff] %vm1316, %v1265
      %1340 = vst.msk [vmem:[#allocation3 + $0xb8] sm:$0xff] %vm1316, %v1267
      %1341 = vst.msk [vmem:[#allocation3 + $0xc0] sm:$0xff] %vm1316, %v1269
      %1342 = vst.msk [vmem:[#allocation3 + $0xc8] sm:$0xff] %vm1316, %v1271
      %1343 = vst.msk [vmem:[#allocation3 + $0xd0] sm:$0xff] %vm1316, %v1273
      %1344 = vst.msk [vmem:[#allocation3 + $0xd8] sm:$0xff] %vm1316, %v1275
      %1345 = vst.msk [vmem:[#allocation3 + $0xe0] sm:$0xff] %vm1316, %v1277
      %1346 = vst.msk [vmem:[#allocation3 + $0xe8] sm:$0xff] %vm1316, %v1279
      %1347 = vst.msk [vmem:[#allocation3 + $0xf0] sm:$0xff] %vm1316, %v1281
      %1348 = vst.msk [vmem:[#allocation3 + $0xf8] sm:$0xff] %vm1316, %v1283
      %s1349 = scalar_lea.vmem [#allocation2], 48
      %v1350 = vld [vmem:[%s1349] sm:$0xff]
      %v1351 = vld [vmem:[%s1349 + $0x8] sm:$0xff]
      %v1352 = vld [vmem:[%s1349 + $0x18] sm:$0xff]
      %v1353 = vld [vmem:[%s1349 + $0x20] sm:$0xff]
      %v1354 = vld [vmem:[%s1349 + $0x30] sm:$0xff]
      %v1355 = vld [vmem:[%s1349 + $0x38] sm:$0xff]
      %v1356 = vld [vmem:[%s1349 + $0x48] sm:$0xff]
      %v1357 = vld [vmem:[%s1349 + $0x50] sm:$0xff]
      %v1358 = vld [vmem:[%s1349 + $0x60] sm:$0xff]
      %v1359 = vld [vmem:[%s1349 + $0x68] sm:$0xff]
      %v1360 = vld [vmem:[%s1349 + $0x78] sm:$0xff]
      %v1361 = vld [vmem:[%s1349 + $0x80] sm:$0xff]
      %v1362 = vld [vmem:[%s1349 + $0x90] sm:$0xff]
      %v1363 = vld [vmem:[%s1349 + $0x98] sm:$0xff]
      %v1364 = vld [vmem:[%s1349 + $0xa8] sm:$0xff]
      %v1365 = vld [vmem:[%s1349 + $0xb0] sm:$0xff]
      %v1366 = vld [vmem:[%s1349 + $0xc0] sm:$0xff]
      %v1367 = vld [vmem:[%s1349 + $0xc8] sm:$0xff]
      %v1368 = vld [vmem:[%s1349 + $0xd8] sm:$0xff]
      %v1369 = vld [vmem:[%s1349 + $0xe0] sm:$0xff]
      %v1370 = vld [vmem:[%s1349 + $0xf0] sm:$0xff]
      %v1371 = vld [vmem:[%s1349 + $0xf8] sm:$0xff]
      %v1372 = vld [vmem:[%s1349 + $0x108] sm:$0xff]
      %v1373 = vld [vmem:[%s1349 + $0x110] sm:$0xff]
      %v1374 = vld [vmem:[%s1349 + $0x120] sm:$0xff]
      %v1375 = vld [vmem:[%s1349 + $0x128] sm:$0xff]
      %v1376 = vld [vmem:[%s1349 + $0x138] sm:$0xff]
      %v1377 = vld [vmem:[%s1349 + $0x140] sm:$0xff]
      %v1378 = vld [vmem:[%s1349 + $0x150] sm:$0xff]
      %v1379 = vld [vmem:[%s1349 + $0x158] sm:$0xff]
      %v1380 = vld [vmem:[%s1349 + $0x168] sm:$0xff]
      %v1381 = vld [vmem:[%s1349 + $0x170] sm:$0xff]
      %1414 = vrot.lane.b32.xlu0 %v1350, 24
      %v1415 = vpop.permute.xlu0 %1414
      %1416 = vrot.lane.b32.xlu0 %v1351, 24
      %v1417 = vpop.permute.xlu0 %1416
      %1418 = vrot.lane.b32.xlu0 %v1352, 24
      %v1419 = vpop.permute.xlu0 %1418
      %1420 = vrot.lane.b32.xlu0 %v1353, 24
      %v1421 = vpop.permute.xlu0 %1420
      %1422 = vrot.lane.b32.xlu0 %v1354, 24
      %v1423 = vpop.permute.xlu0 %1422
      %1424 = vrot.lane.b32.xlu0 %v1355, 24
      %v1425 = vpop.permute.xlu0 %1424
      %1426 = vrot.lane.b32.xlu0 %v1356, 24
      %v1427 = vpop.permute.xlu0 %1426
      %1428 = vrot.lane.b32.xlu0 %v1357, 24
      %v1429 = vpop.permute.xlu0 %1428
      %1430 = vrot.lane.b32.xlu0 %v1358, 24
      %v1431 = vpop.permute.xlu0 %1430
      %1432 = vrot.lane.b32.xlu0 %v1359, 24
      %v1433 = vpop.permute.xlu0 %1432
      %1434 = vrot.lane.b32.xlu0 %v1360, 24
      %v1435 = vpop.permute.xlu0 %1434
      %1436 = vrot.lane.b32.xlu0 %v1361, 24
      %v1437 = vpop.permute.xlu0 %1436
      %1438 = vrot.lane.b32.xlu0 %v1362, 24
      %v1439 = vpop.permute.xlu0 %1438
      %1440 = vrot.lane.b32.xlu0 %v1363, 24
      %v1441 = vpop.permute.xlu0 %1440
      %1442 = vrot.lane.b32.xlu0 %v1364, 24
      %v1443 = vpop.permute.xlu0 %1442
      %1444 = vrot.lane.b32.xlu0 %v1365, 24
      %v1445 = vpop.permute.xlu0 %1444
      %1446 = vrot.lane.b32.xlu0 %v1366, 24
      %v1447 = vpop.permute.xlu0 %1446
      %1448 = vrot.lane.b32.xlu0 %v1367, 24
      %v1449 = vpop.permute.xlu0 %1448
      %1450 = vrot.lane.b32.xlu0 %v1368, 24
      %v1451 = vpop.permute.xlu0 %1450
      %1452 = vrot.lane.b32.xlu0 %v1369, 24
      %v1453 = vpop.permute.xlu0 %1452
      %1454 = vrot.lane.b32.xlu0 %v1370, 24
      %v1455 = vpop.permute.xlu0 %1454
      %1456 = vrot.lane.b32.xlu0 %v1371, 24
      %v1457 = vpop.permute.xlu0 %1456
      %1458 = vrot.lane.b32.xlu0 %v1372, 24
      %v1459 = vpop.permute.xlu0 %1458
      %1460 = vrot.lane.b32.xlu0 %v1373, 24
      %v1461 = vpop.permute.xlu0 %1460
      %1462 = vrot.lane.b32.xlu0 %v1374, 24
      %v1463 = vpop.permute.xlu0 %1462
      %1464 = vrot.lane.b32.xlu0 %v1375, 24
      %v1465 = vpop.permute.xlu0 %1464
      %1466 = vrot.lane.b32.xlu0 %v1376, 24
      %v1467 = vpop.permute.xlu0 %1466
      %1468 = vrot.lane.b32.xlu0 %v1377, 24
      %v1469 = vpop.permute.xlu0 %1468
      %1470 = vrot.lane.b32.xlu0 %v1378, 24
      %v1471 = vpop.permute.xlu0 %1470
      %1472 = vrot.lane.b32.xlu0 %v1379, 24
      %v1473 = vpop.permute.xlu0 %1472
      %1474 = vrot.lane.b32.xlu0 %v1380, 24
      %v1475 = vpop.permute.xlu0 %1474
      %1476 = vrot.lane.b32.xlu0 %v1381, 24
      %v1477 = vpop.permute.xlu0 %1476
      %vm1510 = vcmask 228544
      %1511 = vst.msk [vmem:[#allocation3] sm:$0xff] %vm1510, %v1415
      %1512 = vst.msk [vmem:[#allocation3 + $0x8] sm:$0xff] %vm1510, %v1417
      %1513 = vst.msk [vmem:[#allocation3 + $0x10] sm:$0xff] %vm1510, %v1419
      %1514 = vst.msk [vmem:[#allocation3 + $0x18] sm:$0xff] %vm1510, %v1421
      %1515 = vst.msk [vmem:[#allocation3 + $0x20] sm:$0xff] %vm1510, %v1423
      %1516 = vst.msk [vmem:[#allocation3 + $0x28] sm:$0xff] %vm1510, %v1425
      %1517 = vst.msk [vmem:[#allocation3 + $0x30] sm:$0xff] %vm1510, %v1427
      %1518 = vst.msk [vmem:[#allocation3 + $0x38] sm:$0xff] %vm1510, %v1429
      %1519 = vst.msk [vmem:[#allocation3 + $0x40] sm:$0xff] %vm1510, %v1431
      %1520 = vst.msk [vmem:[#allocation3 + $0x48] sm:$0xff] %vm1510, %v1433
      %1521 = vst.msk [vmem:[#allocation3 + $0x50] sm:$0xff] %vm1510, %v1435
      %1522 = vst.msk [vmem:[#allocation3 + $0x58] sm:$0xff] %vm1510, %v1437
      %1523 = vst.msk [vmem:[#allocation3 + $0x60] sm:$0xff] %vm1510, %v1439
      %1524 = vst.msk [vmem:[#allocation3 + $0x68] sm:$0xff] %vm1510, %v1441
      %1525 = vst.msk [vmem:[#allocation3 + $0x70] sm:$0xff] %vm1510, %v1443
      %1526 = vst.msk [vmem:[#allocation3 + $0x78] sm:$0xff] %vm1510, %v1445
      %1527 = vst.msk [vmem:[#allocation3 + $0x80] sm:$0xff] %vm1510, %v1447
      %1528 = vst.msk [vmem:[#allocation3 + $0x88] sm:$0xff] %vm1510, %v1449
      %1529 = vst.msk [vmem:[#allocation3 + $0x90] sm:$0xff] %vm1510, %v1451
      %1530 = vst.msk [vmem:[#allocation3 + $0x98] sm:$0xff] %vm1510, %v1453
      %1531 = vst.msk [vmem:[#allocation3 + $0xa0] sm:$0xff] %vm1510, %v1455
      %1532 = vst.msk [vmem:[#allocation3 + $0xa8] sm:$0xff] %vm1510, %v1457
      %1533 = vst.msk [vmem:[#allocation3 + $0xb0] sm:$0xff] %vm1510, %v1459
      %1534 = vst.msk [vmem:[#allocation3 + $0xb8] sm:$0xff] %vm1510, %v1461
      %1535 = vst.msk [vmem:[#allocation3 + $0xc0] sm:$0xff] %vm1510, %v1463
      %1536 = vst.msk [vmem:[#allocation3 + $0xc8] sm:$0xff] %vm1510, %v1465
      %1537 = vst.msk [vmem:[#allocation3 + $0xd0] sm:$0xff] %vm1510, %v1467
      %1538 = vst.msk [vmem:[#allocation3 + $0xd8] sm:$0xff] %vm1510, %v1469
      %1539 = vst.msk [vmem:[#allocation3 + $0xe0] sm:$0xff] %vm1510, %v1471
      %1540 = vst.msk [vmem:[#allocation3 + $0xe8] sm:$0xff] %vm1510, %v1473
      %1541 = vst.msk [vmem:[#allocation3 + $0xf0] sm:$0xff] %vm1510, %v1475
      %1542 = vst.msk [vmem:[#allocation3 + $0xf8] sm:$0xff] %vm1510, %v1477
      %v1543 = vld [vmem:[%s1349 + $0x1] sm:$0xff]
      %v1544 = vld [vmem:[%s1349 + $0x9] sm:$0xff]
      %v1545 = vld [vmem:[%s1349 + $0x19] sm:$0xff]
      %v1546 = vld [vmem:[%s1349 + $0x21] sm:$0xff]
      %v1547 = vld [vmem:[%s1349 + $0x31] sm:$0xff]
      %v1548 = vld [vmem:[%s1349 + $0x39] sm:$0xff]
      %v1549 = vld [vmem:[%s1349 + $0x49] sm:$0xff]
      %v1550 = vld [vmem:[%s1349 + $0x51] sm:$0xff]
      %v1551 = vld [vmem:[%s1349 + $0x61] sm:$0xff]
      %v1552 = vld [vmem:[%s1349 + $0x69] sm:$0xff]
      %v1553 = vld [vmem:[%s1349 + $0x79] sm:$0xff]
      %v1554 = vld [vmem:[%s1349 + $0x81] sm:$0xff]
      %v1555 = vld [vmem:[%s1349 + $0x91] sm:$0xff]
      %v1556 = vld [vmem:[%s1349 + $0x99] sm:$0xff]
      %v1557 = vld [vmem:[%s1349 + $0xa9] sm:$0xff]
      %v1558 = vld [vmem:[%s1349 + $0xb1] sm:$0xff]
      %v1559 = vld [vmem:[%s1349 + $0xc1] sm:$0xff]
      %v1560 = vld [vmem:[%s1349 + $0xc9] sm:$0xff]
      %v1561 = vld [vmem:[%s1349 + $0xd9] sm:$0xff]
      %v1562 = vld [vmem:[%s1349 + $0xe1] sm:$0xff]
      %v1563 = vld [vmem:[%s1349 + $0xf1] sm:$0xff]
      %v1564 = vld [vmem:[%s1349 + $0xf9] sm:$0xff]
      %v1565 = vld [vmem:[%s1349 + $0x109] sm:$0xff]
      %v1566 = vld [vmem:[%s1349 + $0x111] sm:$0xff]
      %v1567 = vld [vmem:[%s1349 + $0x121] sm:$0xff]
      %v1568 = vld [vmem:[%s1349 + $0x129] sm:$0xff]
      %v1569 = vld [vmem:[%s1349 + $0x139] sm:$0xff]
      %v1570 = vld [vmem:[%s1349 + $0x141] sm:$0xff]
      %v1571 = vld [vmem:[%s1349 + $0x151] sm:$0xff]
      %v1572 = vld [vmem:[%s1349 + $0x159] sm:$0xff]
      %v1573 = vld [vmem:[%s1349 + $0x169] sm:$0xff]
      %v1574 = vld [vmem:[%s1349 + $0x171] sm:$0xff]
      %1607 = vrot.lane.b32.xlu0 %v1543, 28
      %v1608 = vpop.permute.xlu0 %1607
      %1609 = vrot.lane.b32.xlu0 %v1544, 28
      %v1610 = vpop.permute.xlu0 %1609
      %1611 = vrot.lane.b32.xlu0 %v1545, 28
      %v1612 = vpop.permute.xlu0 %1611
      %1613 = vrot.lane.b32.xlu0 %v1546, 28
      %v1614 = vpop.permute.xlu0 %1613
      %1615 = vrot.lane.b32.xlu0 %v1547, 28
      %v1616 = vpop.permute.xlu0 %1615
      %1617 = vrot.lane.b32.xlu0 %v1548, 28
      %v1618 = vpop.permute.xlu0 %1617
      %1619 = vrot.lane.b32.xlu0 %v1549, 28
      %v1620 = vpop.permute.xlu0 %1619
      %1621 = vrot.lane.b32.xlu0 %v1550, 28
      %v1622 = vpop.permute.xlu0 %1621
      %1623 = vrot.lane.b32.xlu0 %v1551, 28
      %v1624 = vpop.permute.xlu0 %1623
      %1625 = vrot.lane.b32.xlu0 %v1552, 28
      %v1626 = vpop.permute.xlu0 %1625
      %1627 = vrot.lane.b32.xlu0 %v1553, 28
      %v1628 = vpop.permute.xlu0 %1627
      %1629 = vrot.lane.b32.xlu0 %v1554, 28
      %v1630 = vpop.permute.xlu0 %1629
      %1631 = vrot.lane.b32.xlu0 %v1555, 28
      %v1632 = vpop.permute.xlu0 %1631
      %1633 = vrot.lane.b32.xlu0 %v1556, 28
      %v1634 = vpop.permute.xlu0 %1633
      %1635 = vrot.lane.b32.xlu0 %v1557, 28
      %v1636 = vpop.permute.xlu0 %1635
      %1637 = vrot.lane.b32.xlu0 %v1558, 28
      %v1638 = vpop.permute.xlu0 %1637
      %1639 = vrot.lane.b32.xlu0 %v1559, 28
      %v1640 = vpop.permute.xlu0 %1639
      %1641 = vrot.lane.b32.xlu0 %v1560, 28
      %v1642 = vpop.permute.xlu0 %1641
      %1643 = vrot.lane.b32.xlu0 %v1561, 28
      %v1644 = vpop.permute.xlu0 %1643
      %1645 = vrot.lane.b32.xlu0 %v1562, 28
      %v1646 = vpop.permute.xlu0 %1645
      %1647 = vrot.lane.b32.xlu0 %v1563, 28
      %v1648 = vpop.permute.xlu0 %1647
      %1649 = vrot.lane.b32.xlu0 %v1564, 28
      %v1650 = vpop.permute.xlu0 %1649
      %1651 = vrot.lane.b32.xlu0 %v1565, 28
      %v1652 = vpop.permute.xlu0 %1651
      %1653 = vrot.lane.b32.xlu0 %v1566, 28
      %v1654 = vpop.permute.xlu0 %1653
      %1655 = vrot.lane.b32.xlu0 %v1567, 28
      %v1656 = vpop.permute.xlu0 %1655
      %1657 = vrot.lane.b32.xlu0 %v1568, 28
      %v1658 = vpop.permute.xlu0 %1657
      %1659 = vrot.lane.b32.xlu0 %v1569, 28
      %v1660 = vpop.permute.xlu0 %1659
      %1661 = vrot.lane.b32.xlu0 %v1570, 28
      %v1662 = vpop.permute.xlu0 %1661
      %1663 = vrot.lane.b32.xlu0 %v1571, 28
      %v1664 = vpop.permute.xlu0 %1663
      %1665 = vrot.lane.b32.xlu0 %v1572, 28
      %v1666 = vpop.permute.xlu0 %1665
      %1667 = vrot.lane.b32.xlu0 %v1573, 28
      %v1668 = vpop.permute.xlu0 %1667
      %1669 = vrot.lane.b32.xlu0 %v1574, 28
      %v1670 = vpop.permute.xlu0 %1669
      %vm1703 = vcmask 261344
      %1704 = vst.msk [vmem:[#allocation3] sm:$0xff] %vm1703, %v1608
      %1705 = vst.msk [vmem:[#allocation3 + $0x8] sm:$0xff] %vm1703, %v1610
      %1706 = vst.msk [vmem:[#allocation3 + $0x10] sm:$0xff] %vm1703, %v1612
      %1707 = vst.msk [vmem:[#allocation3 + $0x18] sm:$0xff] %vm1703, %v1614
      %1708 = vst.msk [vmem:[#allocation3 + $0x20] sm:$0xff] %vm1703, %v1616
      %1709 = vst.msk [vmem:[#allocation3 + $0x28] sm:$0xff] %vm1703, %v1618
      %1710 = vst.msk [vmem:[#allocation3 + $0x30] sm:$0xff] %vm1703, %v1620
      %1711 = vst.msk [vmem:[#allocation3 + $0x38] sm:$0xff] %vm1703, %v1622
      %1712 = vst.msk [vmem:[#allocation3 + $0x40] sm:$0xff] %vm1703, %v1624
      %1713 = vst.msk [vmem:[#allocation3 + $0x48] sm:$0xff] %vm1703, %v1626
      %1714 = vst.msk [vmem:[#allocation3 + $0x50] sm:$0xff] %vm1703, %v1628
      %1715 = vst.msk [vmem:[#allocation3 + $0x58] sm:$0xff] %vm1703, %v1630
      %1716 = vst.msk [vmem:[#allocation3 + $0x60] sm:$0xff] %vm1703, %v1632
      %1717 = vst.msk [vmem:[#allocation3 + $0x68] sm:$0xff] %vm1703, %v1634
      %1718 = vst.msk [vmem:[#allocation3 + $0x70] sm:$0xff] %vm1703, %v1636
      %1719 = vst.msk [vmem:[#allocation3 + $0x78] sm:$0xff] %vm1703, %v1638
      %1720 = vst.msk [vmem:[#allocation3 + $0x80] sm:$0xff] %vm1703, %v1640
      %1721 = vst.msk [vmem:[#allocation3 + $0x88] sm:$0xff] %vm1703, %v1642
      %1722 = vst.msk [vmem:[#allocation3 + $0x90] sm:$0xff] %vm1703, %v1644
      %1723 = vst.msk [vmem:[#allocation3 + $0x98] sm:$0xff] %vm1703, %v1646
      %1724 = vst.msk [vmem:[#allocation3 + $0xa0] sm:$0xff] %vm1703, %v1648
      %1725 = vst.msk [vmem:[#allocation3 + $0xa8] sm:$0xff] %vm1703, %v1650
      %1726 = vst.msk [vmem:[#allocation3 + $0xb0] sm:$0xff] %vm1703, %v1652
      %1727 = vst.msk [vmem:[#allocation3 + $0xb8] sm:$0xff] %vm1703, %v1654
      %1728 = vst.msk [vmem:[#allocation3 + $0xc0] sm:$0xff] %vm1703, %v1656
      %1729 = vst.msk [vmem:[#allocation3 + $0xc8] sm:$0xff] %vm1703, %v1658
      %1730 = vst.msk [vmem:[#allocation3 + $0xd0] sm:$0xff] %vm1703, %v1660
      %1731 = vst.msk [vmem:[#allocation3 + $0xd8] sm:$0xff] %vm1703, %v1662
      %1732 = vst.msk [vmem:[#allocation3 + $0xe0] sm:$0xff] %vm1703, %v1664
      %1733 = vst.msk [vmem:[#allocation3 + $0xe8] sm:$0xff] %vm1703, %v1666
      %1734 = vst.msk [vmem:[#allocation3 + $0xf0] sm:$0xff] %vm1703, %v1668
      %1735 = vst.msk [vmem:[#allocation3 + $0xf8] sm:$0xff] %vm1703, %v1670
      %v1736 = vld [vmem:[%s1349 + $0x2] sm:$0xff]
      %v1737 = vld [vmem:[%s1349 + $0xa] sm:$0xff]
      %v1738 = vld [vmem:[%s1349 + $0x1a] sm:$0xff]
      %v1739 = vld [vmem:[%s1349 + $0x22] sm:$0xff]
      %v1740 = vld [vmem:[%s1349 + $0x32] sm:$0xff]
      %v1741 = vld [vmem:[%s1349 + $0x3a] sm:$0xff]
      %v1742 = vld [vmem:[%s1349 + $0x4a] sm:$0xff]
      %v1743 = vld [vmem:[%s1349 + $0x52] sm:$0xff]
      %v1744 = vld [vmem:[%s1349 + $0x62] sm:$0xff]
      %v1745 = vld [vmem:[%s1349 + $0x6a] sm:$0xff]
      %v1746 = vld [vmem:[%s1349 + $0x7a] sm:$0xff]
      %v1747 = vld [vmem:[%s1349 + $0x82] sm:$0xff]
      %v1748 = vld [vmem:[%s1349 + $0x92] sm:$0xff]
      %v1749 = vld [vmem:[%s1349 + $0x9a] sm:$0xff]
      %v1750 = vld [vmem:[%s1349 + $0xaa] sm:$0xff]
      %v1751 = vld [vmem:[%s1349 + $0xb2] sm:$0xff]
      %v1752 = vld [vmem:[%s1349 + $0xc2] sm:$0xff]
      %v1753 = vld [vmem:[%s1349 + $0xca] sm:$0xff]
      %v1754 = vld [vmem:[%s1349 + $0xda] sm:$0xff]
      %v1755 = vld [vmem:[%s1349 + $0xe2] sm:$0xff]
      %v1756 = vld [vmem:[%s1349 + $0xf2] sm:$0xff]
      %v1757 = vld [vmem:[%s1349 + $0xfa] sm:$0xff]
      %v1758 = vld [vmem:[%s1349 + $0x10a] sm:$0xff]
      %v1759 = vld [vmem:[%s1349 + $0x112] sm:$0xff]
      %v1760 = vld [vmem:[%s1349 + $0x122] sm:$0xff]
      %v1761 = vld [vmem:[%s1349 + $0x12a] sm:$0xff]
      %v1762 = vld [vmem:[%s1349 + $0x13a] sm:$0xff]
      %v1763 = vld [vmem:[%s1349 + $0x142] sm:$0xff]
      %v1764 = vld [vmem:[%s1349 + $0x152] sm:$0xff]
      %v1765 = vld [vmem:[%s1349 + $0x15a] sm:$0xff]
      %v1766 = vld [vmem:[%s1349 + $0x16a] sm:$0xff]
      %v1767 = vld [vmem:[%s1349 + $0x172] sm:$0xff]
      %1800 = vrot.lane.b32.xlu0 %v1736, 32
      %v1801 = vpop.permute.xlu0 %1800
      %1802 = vrot.lane.b32.xlu0 %v1737, 32
      %v1803 = vpop.permute.xlu0 %1802
      %1804 = vrot.lane.b32.xlu0 %v1738, 32
      %v1805 = vpop.permute.xlu0 %1804
      %1806 = vrot.lane.b32.xlu0 %v1739, 32
      %v1807 = vpop.permute.xlu0 %1806
      %1808 = vrot.lane.b32.xlu0 %v1740, 32
      %v1809 = vpop.permute.xlu0 %1808
      %1810 = vrot.lane.b32.xlu0 %v1741, 32
      %v1811 = vpop.permute.xlu0 %1810
      %1812 = vrot.lane.b32.xlu0 %v1742, 32
      %v1813 = vpop.permute.xlu0 %1812
      %1814 = vrot.lane.b32.xlu0 %v1743, 32
      %v1815 = vpop.permute.xlu0 %1814
      %1816 = vrot.lane.b32.xlu0 %v1744, 32
      %v1817 = vpop.permute.xlu0 %1816
      %1818 = vrot.lane.b32.xlu0 %v1745, 32
      %v1819 = vpop.permute.xlu0 %1818
      %1820 = vrot.lane.b32.xlu0 %v1746, 32
      %v1821 = vpop.permute.xlu0 %1820
      %1822 = vrot.lane.b32.xlu0 %v1747, 32
      %v1823 = vpop.permute.xlu0 %1822
      %1824 = vrot.lane.b32.xlu0 %v1748, 32
      %v1825 = vpop.permute.xlu0 %1824
      %1826 = vrot.lane.b32.xlu0 %v1749, 32
      %v1827 = vpop.permute.xlu0 %1826
      %1828 = vrot.lane.b32.xlu0 %v1750, 32
      %v1829 = vpop.permute.xlu0 %1828
      %1830 = vrot.lane.b32.xlu0 %v1751, 32
      %v1831 = vpop.permute.xlu0 %1830
      %1832 = vrot.lane.b32.xlu0 %v1752, 32
      %v1833 = vpop.permute.xlu0 %1832
      %1834 = vrot.lane.b32.xlu0 %v1753, 32
      %v1835 = vpop.permute.xlu0 %1834
      %1836 = vrot.lane.b32.xlu0 %v1754, 32
      %v1837 = vpop.permute.xlu0 %1836
      %1838 = vrot.lane.b32.xlu0 %v1755, 32
      %v1839 = vpop.permute.xlu0 %1838
      %1840 = vrot.lane.b32.xlu0 %v1756, 32
      %v1841 = vpop.permute.xlu0 %1840
      %1842 = vrot.lane.b32.xlu0 %v1757, 32
      %v1843 = vpop.permute.xlu0 %1842
      %1844 = vrot.lane.b32.xlu0 %v1758, 32
      %v1845 = vpop.permute.xlu0 %1844
      %1846 = vrot.lane.b32.xlu0 %v1759, 32
      %v1847 = vpop.permute.xlu0 %1846
      %1848 = vrot.lane.b32.xlu0 %v1760, 32
      %v1849 = vpop.permute.xlu0 %1848
      %1850 = vrot.lane.b32.xlu0 %v1761, 32
      %v1851 = vpop.permute.xlu0 %1850
      %1852 = vrot.lane.b32.xlu0 %v1762, 32
      %v1853 = vpop.permute.xlu0 %1852
      %1854 = vrot.lane.b32.xlu0 %v1763, 32
      %v1855 = vpop.permute.xlu0 %1854
      %1856 = vrot.lane.b32.xlu0 %v1764, 32
      %v1857 = vpop.permute.xlu0 %1856
      %1858 = vrot.lane.b32.xlu0 %v1765, 32
      %v1859 = vpop.permute.xlu0 %1858
      %1860 = vrot.lane.b32.xlu0 %v1766, 32
      %v1861 = vpop.permute.xlu0 %1860
      %1862 = vrot.lane.b32.xlu0 %v1767, 32
      %v1863 = vpop.permute.xlu0 %1862
      %vm1896 = vcmask 294144
      %1897 = vst.msk [vmem:[#allocation3] sm:$0xff] %vm1896, %v1801
      %1898 = vst.msk [vmem:[#allocation3 + $0x8] sm:$0xff] %vm1896, %v1803
      %1899 = vst.msk [vmem:[#allocation3 + $0x10] sm:$0xff] %vm1896, %v1805
      %1900 = vst.msk [vmem:[#allocation3 + $0x18] sm:$0xff] %vm1896, %v1807
      %1901 = vst.msk [vmem:[#allocation3 + $0x20] sm:$0xff] %vm1896, %v1809
      %1902 = vst.msk [vmem:[#allocation3 + $0x28] sm:$0xff] %vm1896, %v1811
      %1903 = vst.msk [vmem:[#allocation3 + $0x30] sm:$0xff] %vm1896, %v1813
      %1904 = vst.msk [vmem:[#allocation3 + $0x38] sm:$0xff] %vm1896, %v1815
      %1905 = vst.msk [vmem:[#allocation3 + $0x40] sm:$0xff] %vm1896, %v1817
      %1906 = vst.msk [vmem:[#allocation3 + $0x48] sm:$0xff] %vm1896, %v1819
      %1907 = vst.msk [vmem:[#allocation3 + $0x50] sm:$0xff] %vm1896, %v1821
      %1908 = vst.msk [vmem:[#allocation3 + $0x58] sm:$0xff] %vm1896, %v1823
      %1909 = vst.msk [vmem:[#allocation3 + $0x60] sm:$0xff] %vm1896, %v1825
      %1910 = vst.msk [vmem:[#allocation3 + $0x68] sm:$0xff] %vm1896, %v1827
      %1911 = vst.msk [vmem:[#allocation3 + $0x70] sm:$0xff] %vm1896, %v1829
      %1912 = vst.msk [vmem:[#allocation3 + $0x78] sm:$0xff] %vm1896, %v1831
      %1913 = vst.msk [vmem:[#allocation3 + $0x80] sm:$0xff] %vm1896, %v1833
      %1914 = vst.msk [vmem:[#allocation3 + $0x88] sm:$0xff] %vm1896, %v1835
      %1915 = vst.msk [vmem:[#allocation3 + $0x90] sm:$0xff] %vm1896, %v1837
      %1916 = vst.msk [vmem:[#allocation3 + $0x98] sm:$0xff] %vm1896, %v1839
      %1917 = vst.msk [vmem:[#allocation3 + $0xa0] sm:$0xff] %vm1896, %v1841
      %1918 = vst.msk [vmem:[#allocation3 + $0xa8] sm:$0xff] %vm1896, %v1843
      %1919 = vst.msk [vmem:[#allocation3 + $0xb0] sm:$0xff] %vm1896, %v1845
      %1920 = vst.msk [vmem:[#allocation3 + $0xb8] sm:$0xff] %vm1896, %v1847
      %1921 = vst.msk [vmem:[#allocation3 + $0xc0] sm:$0xff] %vm1896, %v1849
      %1922 = vst.msk [vmem:[#allocation3 + $0xc8] sm:$0xff] %vm1896, %v1851
      %1923 = vst.msk [vmem:[#allocation3 + $0xd0] sm:$0xff] %vm1896, %v1853
      %1924 = vst.msk [vmem:[#allocation3 + $0xd8] sm:$0xff] %vm1896, %v1855
      %1925 = vst.msk [vmem:[#allocation3 + $0xe0] sm:$0xff] %vm1896, %v1857
      %1926 = vst.msk [vmem:[#allocation3 + $0xe8] sm:$0xff] %vm1896, %v1859
      %1927 = vst.msk [vmem:[#allocation3 + $0xf0] sm:$0xff] %vm1896, %v1861
      %1928 = vst.msk [vmem:[#allocation3 + $0xf8] sm:$0xff] %vm1896, %v1863
      %v1929 = vld [vmem:[#allocation3] sm:$0xff]
      %v1930 = vld [vmem:[#allocation3 + $0x8] sm:$0xff]
      %v1931 = vld [vmem:[#allocation3 + $0x10] sm:$0xff]
      %v1932 = vld [vmem:[#allocation3 + $0x18] sm:$0xff]
      %v1933 = vld [vmem:[#allocation3 + $0x20] sm:$0xff]
      %v1934 = vld [vmem:[#allocation3 + $0x28] sm:$0xff]
      %v1935 = vld [vmem:[#allocation3 + $0x30] sm:$0xff]
      %v1936 = vld [vmem:[#allocation3 + $0x38] sm:$0xff]
      %v1937 = vld [vmem:[#allocation3 + $0x40] sm:$0xff]
      %v1938 = vld [vmem:[#allocation3 + $0x48] sm:$0xff]
      %v1939 = vld [vmem:[#allocation3 + $0x50] sm:$0xff]
      %v1940 = vld [vmem:[#allocation3 + $0x58] sm:$0xff]
      %v1941 = vld [vmem:[#allocation3 + $0x60] sm:$0xff]
      %v1942 = vld [vmem:[#allocation3 + $0x68] sm:$0xff]
      %v1943 = vld [vmem:[#allocation3 + $0x70] sm:$0xff]
      %v1944 = vld [vmem:[#allocation3 + $0x78] sm:$0xff]
      %v1945 = vld [vmem:[#allocation3 + $0x80] sm:$0xff]
      %v1946 = vld [vmem:[#allocation3 + $0x88] sm:$0xff]
      %v1947 = vld [vmem:[#allocation3 + $0x90] sm:$0xff]
      %v1948 = vld [vmem:[#allocation3 + $0x98] sm:$0xff]
      %v1949 = vld [vmem:[#allocation3 + $0xa0] sm:$0xff]
      %v1950 = vld [vmem:[#allocation3 + $0xa8] sm:$0xff]
      %v1951 = vld [vmem:[#allocation3 + $0xb0] sm:$0xff]
      %v1952 = vld [vmem:[#allocation3 + $0xb8] sm:$0xff]
      %v1953 = vld [vmem:[#allocation3 + $0xc0] sm:$0xff]
      %v1954 = vld [vmem:[#allocation3 + $0xc8] sm:$0xff]
      %v1955 = vld [vmem:[#allocation3 + $0xd0] sm:$0xff]
      %v1956 = vld [vmem:[#allocation3 + $0xd8] sm:$0xff]
      %v1957 = vld [vmem:[#allocation3 + $0xe0] sm:$0xff]
      %v1958 = vld [vmem:[#allocation3 + $0xe8] sm:$0xff]
      %v1959 = vld [vmem:[#allocation3 + $0xf0] sm:$0xff]
      %v1960 = vld [vmem:[#allocation3 + $0xf8] sm:$0xff]
      %v1961 = vld [vmem:[%s1] sm:$0xff]
      %v1962 = vld [vmem:[%s1 + $0x8] sm:$0xff]
      %v1963 = vld [vmem:[%s1 + $0x10] sm:$0xff]
      %v1964 = vld [vmem:[%s1 + $0x18] sm:$0xff]
      %v1965 = vld [vmem:[%s1 + $0x20] sm:$0xf]
      %v1966 = vld [vmem:[%s2] sm:$0x1]
      %v1968 = vperm.slane %v1966, 0
      %vm1970 = vcmask 293888
      %v1972 = vsel %vm1970, %v1929, 0
      %v1975 = vsel %vm1970, %v1930, 0
      %v1978 = vsel %vm1970, %v1931, 0
      %v1981 = vsel %vm1970, %v1932, 0
      %v1984 = vsel %vm1970, %v1933, 0
      %v1987 = vsel %vm1970, %v1934, 0
      %v1990 = vsel %vm1970, %v1935, 0
      %v1993 = vsel %vm1970, %v1936, 0
      %v1996 = vsel %vm1970, %v1937, 0
      %v1999 = vsel %vm1970, %v1938, 0
      %v2002 = vsel %vm1970, %v1939, 0
      %v2005 = vsel %vm1970, %v1940, 0
      %v2008 = vsel %vm1970, %v1941, 0
      %v2011 = vsel %vm1970, %v1942, 0
      %v2014 = vsel %vm1970, %v1943, 0
      %v2017 = vsel %vm1970, %v1944, 0
      %v2020 = vsel %vm1970, %v1945, 0
      %v2023 = vsel %vm1970, %v1946, 0
      %v2026 = vsel %vm1970, %v1947, 0
      %v2029 = vsel %vm1970, %v1948, 0
      %v2032 = vsel %vm1970, %v1949, 0
      %v2035 = vsel %vm1970, %v1950, 0
      %v2038 = vsel %vm1970, %v1951, 0
      %v2041 = vsel %vm1970, %v1952, 0
      %v2044 = vsel %vm1970, %v1953, 0
      %v2047 = vsel %vm1970, %v1954, 0
      %v2050 = vsel %vm1970, %v1955, 0
      %v2053 = vsel %vm1970, %v1956, 0
      %v2056 = vsel %vm1970, %v1957, 0
      %v2059 = vsel %vm1970, %v1958, 0
      %v2062 = vsel %vm1970, %v1959, 0
      %v2065 = vsel %vm1970, %v1960, 0
      %vm2067 = vcmask 1043456
      %v2069 = vsel %vm2067, %v1965, 0
      %2071 = vmatpush.msra.mxu0 0.0
      %2072 = vmatpush.msra.mxu0 0.0
      %2073 = vmatpush.msra.mxu0 0.0
      %2074 = vmatpush.msra.mxu0 0.0
      %2075 = vmatpush.msra.mxu0 0.0
      %2076 = vmatpush.msra.mxu0 0.0
      %2077 = vmatpush.msra.mxu0 0.0
      %2078 = vmatpush.msra.mxu0 0.0
      %2079 = vmatpush.msra.mxu0 0.0
      %2080 = vmatpush.msra.mxu0 0.0
      %2081 = vmatpush.msra.mxu0 0.0
      %2082 = vmatpush.msra.mxu0 %v2069
      %2083 = vmatpush.msra.mxu0 %v1964
      %2084 = vmatpush.msra.mxu0 %v1963
      %2085 = vmatpush.msra.mxu0 %v1962
      %2086 = vmatpush.msra.mxu0 %v1961
      %2087 = vmatmul.f32.gmra.mxu0 %v1972
      %v2088 = vpop.f32.mrf.mxu0
      %v2089 = vadd.f32 %v1968, %v2088
      %2090 = vmatmul.f32.gmra.mxu0 %v1975
      %v2091 = vpop.f32.mrf.mxu0
      %v2092 = vadd.f32 %v1968, %v2091
      %2093 = vmatmul.f32.gmra.mxu0 %v1978
      %v2094 = vpop.f32.mrf.mxu0
      %v2095 = vadd.f32 %v1968, %v2094
      %2096 = vmatmul.f32.gmra.mxu0 %v1981
      %v2097 = vpop.f32.mrf.mxu0
      %v2098 = vadd.f32 %v1968, %v2097
      %2099 = vmatmul.f32.gmra.mxu0 %v1984
      %v2100 = vpop.f32.mrf.mxu0
      %v2101 = vadd.f32 %v1968, %v2100
      %2102 = vmatmul.f32.gmra.mxu0 %v1987
      %v2103 = vpop.f32.mrf.mxu0
      %v2104 = vadd.f32 %v1968, %v2103
      %2105 = vmatmul.f32.gmra.mxu0 %v1990
      %v2106 = vpop.f32.mrf.mxu0
      %v2107 = vadd.f32 %v1968, %v2106
      %2108 = vmatmul.f32.gmra.mxu0 %v1993
      %v2109 = vpop.f32.mrf.mxu0
      %v2110 = vadd.f32 %v1968, %v2109
      %2111 = vmatmul.f32.gmra.mxu0 %v1996
      %v2112 = vpop.f32.mrf.mxu0
      %v2113 = vadd.f32 %v1968, %v2112
      %2114 = vmatmul.f32.gmra.mxu0 %v1999
      %v2115 = vpop.f32.mrf.mxu0
      %v2116 = vadd.f32 %v1968, %v2115
      %2117 = vmatmul.f32.gmra.mxu0 %v2002
      %v2118 = vpop.f32.mrf.mxu0
      %v2119 = vadd.f32 %v1968, %v2118
      %2120 = vmatmul.f32.gmra.mxu0 %v2005
      %v2121 = vpop.f32.mrf.mxu0
      %v2122 = vadd.f32 %v1968, %v2121
      %2123 = vmatmul.f32.gmra.mxu0 %v2008
      %v2124 = vpop.f32.mrf.mxu0
      %v2125 = vadd.f32 %v1968, %v2124
      %2126 = vmatmul.f32.gmra.mxu0 %v2011
      %v2127 = vpop.f32.mrf.mxu0
      %v2128 = vadd.f32 %v1968, %v2127
      %2129 = vmatmul.f32.gmra.mxu0 %v2014
      %v2130 = vpop.f32.mrf.mxu0
      %v2131 = vadd.f32 %v1968, %v2130
      %2132 = vmatmul.f32.gmra.mxu0 %v2017
      %v2133 = vpop.f32.mrf.mxu0
      %v2134 = vadd.f32 %v1968, %v2133
      %2135 = vmatmul.f32.gmra.mxu0 %v2020
      %v2136 = vpop.f32.mrf.mxu0
      %v2137 = vadd.f32 %v1968, %v2136
      %2138 = vmatmul.f32.gmra.mxu0 %v2023
      %v2139 = vpop.f32.mrf.mxu0
      %v2140 = vadd.f32 %v1968, %v2139
      %2141 = vmatmul.f32.gmra.mxu0 %v2026
      %v2142 = vpop.f32.mrf.mxu0
      %v2143 = vadd.f32 %v1968, %v2142
      %2144 = vmatmul.f32.gmra.mxu0 %v2029
      %v2145 = vpop.f32.mrf.mxu0
      %v2146 = vadd.f32 %v1968, %v2145
      %2147 = vmatmul.f32.gmra.mxu0 %v2032
      %v2148 = vpop.f32.mrf.mxu0
      %v2149 = vadd.f32 %v1968, %v2148
      %2150 = vmatmul.f32.gmra.mxu0 %v2035
      %v2151 = vpop.f32.mrf.mxu0
      %v2152 = vadd.f32 %v1968, %v2151
      %2153 = vmatmul.f32.gmra.mxu0 %v2038
      %v2154 = vpop.f32.mrf.mxu0
      %v2155 = vadd.f32 %v1968, %v2154
      %2156 = vmatmul.f32.gmra.mxu0 %v2041
      %v2157 = vpop.f32.mrf.mxu0
      %v2158 = vadd.f32 %v1968, %v2157
      %2159 = vmatmul.f32.gmra.mxu0 %v2044
      %v2160 = vpop.f32.mrf.mxu0
      %v2161 = vadd.f32 %v1968, %v2160
      %2162 = vmatmul.f32.gmra.mxu0 %v2047
      %v2163 = vpop.f32.mrf.mxu0
      %v2164 = vadd.f32 %v1968, %v2163
      %2165 = vmatmul.f32.gmra.mxu0 %v2050
      %v2166 = vpop.f32.mrf.mxu0
      %v2167 = vadd.f32 %v1968, %v2166
      %2168 = vmatmul.f32.gmra.mxu0 %v2053
      %v2169 = vpop.f32.mrf.mxu0
      %v2170 = vadd.f32 %v1968, %v2169
      %2171 = vmatmul.f32.gmra.mxu0 %v2056
      %v2172 = vpop.f32.mrf.mxu0
      %v2173 = vadd.f32 %v1968, %v2172
      %2174 = vmatmul.f32.gmra.mxu0 %v2059
      %v2175 = vpop.f32.mrf.mxu0
      %v2176 = vadd.f32 %v1968, %v2175
      %2177 = vmatmul.f32.gmra.mxu0 %v2062
      %v2178 = vpop.f32.mrf.mxu0
      %v2179 = vadd.f32 %v1968, %v2178
      %2180 = vmatmul.f32.gmra.mxu0 %v2065
      %v2181 = vpop.f32.mrf.mxu0
      %v2182 = vadd.f32 %v1968, %v2181
      %2183 = vdwg.mxu0
      %vm2184 = vcmask 64512
      %2185 = vst.msk [vmem:[%s204] sm:$0xff] %vm2184, %v2089
      %2186 = vst.msk [vmem:[%s204 + $0x8] sm:$0xff] %vm2184, %v2092
      %2187 = vst.msk [vmem:[%s204 + $0x10] sm:$0xff] %vm2184, %v2095
      %2188 = vst.msk [vmem:[%s204 + $0x18] sm:$0xff] %vm2184, %v2098
      %2189 = vst.msk [vmem:[%s204 + $0x20] sm:$0xff] %vm2184, %v2101
      %2190 = vst.msk [vmem:[%s204 + $0x28] sm:$0xff] %vm2184, %v2104
      %2191 = vst.msk [vmem:[%s204 + $0x30] sm:$0xff] %vm2184, %v2107
      %2192 = vst.msk [vmem:[%s204 + $0x38] sm:$0xff] %vm2184, %v2110
      %2193 = vst.msk [vmem:[%s204 + $0x40] sm:$0xff] %vm2184, %v2113
      %2194 = vst.msk [vmem:[%s204 + $0x48] sm:$0xff] %vm2184, %v2116
      %2195 = vst.msk [vmem:[%s204 + $0x50] sm:$0xff] %vm2184, %v2119
      %2196 = vst.msk [vmem:[%s204 + $0x58] sm:$0xff] %vm2184, %v2122
      %2197 = vst.msk [vmem:[%s204 + $0x60] sm:$0xff] %vm2184, %v2125
      %2198 = vst.msk [vmem:[%s204 + $0x68] sm:$0xff] %vm2184, %v2128
      %2199 = vst.msk [vmem:[%s204 + $0x70] sm:$0xff] %vm2184, %v2131
      %2200 = vst.msk [vmem:[%s204 + $0x78] sm:$0xff] %vm2184, %v2134
      %2201 = vst.msk [vmem:[%s204 + $0x80] sm:$0xff] %vm2184, %v2137
      %2202 = vst.msk [vmem:[%s204 + $0x88] sm:$0xff] %vm2184, %v2140
      %2203 = vst.msk [vmem:[%s204 + $0x90] sm:$0xff] %vm2184, %v2143
      %2204 = vst.msk [vmem:[%s204 + $0x98] sm:$0xff] %vm2184, %v2146
      %2205 = vst.msk [vmem:[%s204 + $0xa0] sm:$0xff] %vm2184, %v2149
      %2206 = vst.msk [vmem:[%s204 + $0xa8] sm:$0xff] %vm2184, %v2152
      %2207 = vst.msk [vmem:[%s204 + $0xb0] sm:$0xff] %vm2184, %v2155
      %2208 = vst.msk [vmem:[%s204 + $0xb8] sm:$0xff] %vm2184, %v2158
      %2209 = vst.msk [vmem:[%s204 + $0xc0] sm:$0xff] %vm2184, %v2161
      %2210 = vst.msk [vmem:[%s204 + $0xc8] sm:$0xff] %vm2184, %v2164
      %2211 = vst.msk [vmem:[%s204 + $0xd0] sm:$0xff] %vm2184, %v2167
      %2212 = vst.msk [vmem:[%s204 + $0xd8] sm:$0xff] %vm2184, %v2170
      %2213 = vst.msk [vmem:[%s204 + $0xe0] sm:$0xff] %vm2184, %v2173
      %2214 = vst.msk [vmem:[%s204 + $0xe8] sm:$0xff] %vm2184, %v2176
      %2215 = vst.msk [vmem:[%s204 + $0xf0] sm:$0xff] %vm2184, %v2179
      %2216 = vst.msk [vmem:[%s204 + $0xf8] sm:$0xff] %vm2184, %v2182
      %v2217 = vsel %vm2184, %v2089, 0.0
      %v2218 = vsel %vm2184, %v2092, 0.0
      %v2219 = vadd.f32 %v2217, %v2218
      %v2220 = vsel %vm2184, %v2095, 0.0
      %v2221 = vadd.f32 %v2219, %v2220
      %v2222 = vsel %vm2184, %v2098, 0.0
      %v2223 = vadd.f32 %v2221, %v2222
      %v2224 = vsel %vm2184, %v2101, 0.0
      %v2225 = vadd.f32 %v2223, %v2224
      %v2226 = vsel %vm2184, %v2104, 0.0
      %v2227 = vadd.f32 %v2225, %v2226
      %v2228 = vsel %vm2184, %v2107, 0.0
      %v2229 = vadd.f32 %v2227, %v2228
      %v2230 = vsel %vm2184, %v2110, 0.0
      %v2231 = vadd.f32 %v2229, %v2230
      %v2232 = vsel %vm2184, %v2113, 0.0
      %v2233 = vadd.f32 %v2231, %v2232
      %v2234 = vsel %vm2184, %v2116, 0.0
      %v2235 = vadd.f32 %v2233, %v2234
      %v2236 = vsel %vm2184, %v2119, 0.0
      %v2237 = vadd.f32 %v2235, %v2236
      %v2238 = vsel %vm2184, %v2122, 0.0
      %v2239 = vadd.f32 %v2237, %v2238
      %v2240 = vsel %vm2184, %v2125, 0.0
      %v2241 = vadd.f32 %v2239, %v2240
      %v2242 = vsel %vm2184, %v2128, 0.0
      %v2243 = vadd.f32 %v2241, %v2242
      %v2244 = vsel %vm2184, %v2131, 0.0
      %v2245 = vadd.f32 %v2243, %v2244
      %v2246 = vsel %vm2184, %v2134, 0.0
      %v2247 = vadd.f32 %v2245, %v2246
      %v2248 = vsel %vm2184, %v2137, 0.0
      %v2249 = vadd.f32 %v2247, %v2248
      %v2250 = vsel %vm2184, %v2140, 0.0
      %v2251 = vadd.f32 %v2249, %v2250
      %v2252 = vsel %vm2184, %v2143, 0.0
      %v2253 = vadd.f32 %v2251, %v2252
      %v2254 = vsel %vm2184, %v2146, 0.0
      %v2255 = vadd.f32 %v2253, %v2254
      %v2256 = vsel %vm2184, %v2149, 0.0
      %v2257 = vadd.f32 %v2255, %v2256
      %v2258 = vsel %vm2184, %v2152, 0.0
      %v2259 = vadd.f32 %v2257, %v2258
      %v2260 = vsel %vm2184, %v2155, 0.0
      %v2261 = vadd.f32 %v2259, %v2260
      %v2262 = vsel %vm2184, %v2158, 0.0
      %v2263 = vadd.f32 %v2261, %v2262
      %v2264 = vsel %vm2184, %v2161, 0.0
      %v2265 = vadd.f32 %v2263, %v2264
      %v2266 = vsel %vm2184, %v2164, 0.0
      %v2267 = vadd.f32 %v2265, %v2266
      %v2268 = vsel %vm2184, %v2167, 0.0
      %v2269 = vadd.f32 %v2267, %v2268
      %v2270 = vsel %vm2184, %v2170, 0.0
      %v2271 = vadd.f32 %v2269, %v2270
      %v2272 = vsel %vm2184, %v2173, 0.0
      %v2273 = vadd.f32 %v2271, %v2272
      %v2274 = vsel %vm2184, %v2176, 0.0
      %v2275 = vadd.f32 %v2273, %v2274
      %v2276 = vsel %vm2184, %v2179, 0.0
      %v2277 = vadd.f32 %v2275, %v2276
      %v2278 = vsel %vm2184, %v2182, 0.0
      %v2279 = vadd.f32 %v2277, %v2278
      %v2280 = vrot.slane %v2279, 4
      %v2281 = vadd.f32 %v2279, %v2280
      %v2282 = vrot.slane %v2281, 2
      %v2283 = vadd.f32 %v2281, %v2282
      %v2284 = vrot.slane %v2283, 1
      %v2285 = vadd.f32 %v2283, %v2284
      %vm2286 = vcmask 57344
      %2287 = vst.msk [vmem:[%s208] sm:$0x1] %vm2286, %v2285
      %v2288 = vmul.f32 %v2089, %v2089
      %v2289 = vmul.f32 %v2092, %v2092
      %v2290 = vmul.f32 %v2095, %v2095
      %v2291 = vmul.f32 %v2098, %v2098
      %v2292 = vmul.f32 %v2101, %v2101
      %v2293 = vmul.f32 %v2104, %v2104
      %v2294 = vmul.f32 %v2107, %v2107
      %v2295 = vmul.f32 %v2110, %v2110
      %v2296 = vmul.f32 %v2113, %v2113
      %v2297 = vmul.f32 %v2116, %v2116
      %v2298 = vmul.f32 %v2119, %v2119
      %v2299 = vmul.f32 %v2122, %v2122
      %v2300 = vmul.f32 %v2125, %v2125
      %v2301 = vmul.f32 %v2128, %v2128
      %v2302 = vmul.f32 %v2131, %v2131
      %v2303 = vmul.f32 %v2134, %v2134
      %v2304 = vmul.f32 %v2137, %v2137
      %v2305 = vmul.f32 %v2140, %v2140
      %v2306 = vmul.f32 %v2143, %v2143
      %v2307 = vmul.f32 %v2146, %v2146
      %v2308 = vmul.f32 %v2149, %v2149
      %v2309 = vmul.f32 %v2152, %v2152
      %v2310 = vmul.f32 %v2155, %v2155
      %v2311 = vmul.f32 %v2158, %v2158
      %v2312 = vmul.f32 %v2161, %v2161
      %v2313 = vmul.f32 %v2164, %v2164
      %v2314 = vmul.f32 %v2167, %v2167
      %v2315 = vmul.f32 %v2170, %v2170
      %v2316 = vmul.f32 %v2173, %v2173
      %v2317 = vmul.f32 %v2176, %v2176
      %v2318 = vmul.f32 %v2179, %v2179
      %v2319 = vmul.f32 %v2182, %v2182
      %v2320 = vsel %vm2184, %v2288, 0.0
      %v2321 = vsel %vm2184, %v2289, 0.0
      %v2322 = vadd.f32 %v2320, %v2321
      %v2323 = vsel %vm2184, %v2290, 0.0
      %v2324 = vadd.f32 %v2322, %v2323
      %v2325 = vsel %vm2184, %v2291, 0.0
      %v2326 = vadd.f32 %v2324, %v2325
      %v2327 = vsel %vm2184, %v2292, 0.0
      %v2328 = vadd.f32 %v2326, %v2327
      %v2329 = vsel %vm2184, %v2293, 0.0
      %v2330 = vadd.f32 %v2328, %v2329
      %v2331 = vsel %vm2184, %v2294, 0.0
      %v2332 = vadd.f32 %v2330, %v2331
      %v2333 = vsel %vm2184, %v2295, 0.0
      %v2334 = vadd.f32 %v2332, %v2333
      %v2335 = vsel %vm2184, %v2296, 0.0
      %v2336 = vadd.f32 %v2334, %v2335
      %v2337 = vsel %vm2184, %v2297, 0.0
      %v2338 = vadd.f32 %v2336, %v2337
      %v2339 = vsel %vm2184, %v2298, 0.0
      %v2340 = vadd.f32 %v2338, %v2339
      %v2341 = vsel %vm2184, %v2299, 0.0
      %v2342 = vadd.f32 %v2340, %v2341
      %v2343 = vsel %vm2184, %v2300, 0.0
      %v2344 = vadd.f32 %v2342, %v2343
      %v2345 = vsel %vm2184, %v2301, 0.0
      %v2346 = vadd.f32 %v2344, %v2345
      %v2347 = vsel %vm2184, %v2302, 0.0
      %v2348 = vadd.f32 %v2346, %v2347
      %v2349 = vsel %vm2184, %v2303, 0.0
      %v2350 = vadd.f32 %v2348, %v2349
      %v2351 = vsel %vm2184, %v2304, 0.0
      %v2352 = vadd.f32 %v2350, %v2351
      %v2353 = vsel %vm2184, %v2305, 0.0
      %v2354 = vadd.f32 %v2352, %v2353
      %v2355 = vsel %vm2184, %v2306, 0.0
      %v2356 = vadd.f32 %v2354, %v2355
      %v2357 = vsel %vm2184, %v2307, 0.0
      %v2358 = vadd.f32 %v2356, %v2357
      %v2359 = vsel %vm2184, %v2308, 0.0
      %v2360 = vadd.f32 %v2358, %v2359
      %v2361 = vsel %vm2184, %v2309, 0.0
      %v2362 = vadd.f32 %v2360, %v2361
      %v2363 = vsel %vm2184, %v2310, 0.0
      %v2364 = vadd.f32 %v2362, %v2363
      %v2365 = vsel %vm2184, %v2311, 0.0
      %v2366 = vadd.f32 %v2364, %v2365
      %v2367 = vsel %vm2184, %v2312, 0.0
      %v2368 = vadd.f32 %v2366, %v2367
      %v2369 = vsel %vm2184, %v2313, 0.0
      %v2370 = vadd.f32 %v2368, %v2369
      %v2371 = vsel %vm2184, %v2314, 0.0
      %v2372 = vadd.f32 %v2370, %v2371
      %v2373 = vsel %vm2184, %v2315, 0.0
      %v2374 = vadd.f32 %v2372, %v2373
      %v2375 = vsel %vm2184, %v2316, 0.0
      %v2376 = vadd.f32 %v2374, %v2375
      %v2377 = vsel %vm2184, %v2317, 0.0
      %v2378 = vadd.f32 %v2376, %v2377
      %v2379 = vsel %vm2184, %v2318, 0.0
      %v2380 = vadd.f32 %v2378, %v2379
      %v2381 = vsel %vm2184, %v2319, 0.0
      %v2382 = vadd.f32 %v2380, %v2381
      %v2383 = vrot.slane %v2382, 4
      %v2384 = vadd.f32 %v2382, %v2383
      %v2385 = vrot.slane %v2384, 2
      %v2386 = vadd.f32 %v2384, %v2385
      %v2387 = vrot.slane %v2386, 1
      %v2388 = vadd.f32 %v2386, %v2387
      %2389 = vst.msk [vmem:[%s208 + $0x1] sm:$0x1] %vm2286, %v2388
      %p2390 = scmp.lt.s32.totalorder %s16, 1
      %s2391 = scalar_select %p2390, %s16, 1
      %s2392 = smul.addr %s2391, 32
      %s2393 = smul.addr %s2392, 8
      %s2394 = scalar_lea.vmem %s3, %s2393
      %p2395 = scmp.lt.s32.totalorder %s16, 1
      %s2396 = scalar_select %p2395, %s16, 1
      %s2397 = smul.addr %s2396, 2
      %s2398 = scalar_lea.vmem %s4, %s2397
      // Predicated region
      $region33: #{conv_block_forward.3} parent=31 // pred_check
        %p2399 = pneg %p102
      $region34: #{conv_block_forward.3} parent=31 // pred_check_branch
        %2401 = sbr.rel (%p2399) target = $region36
      $region35: #{conv_block_forward.3} parent=31 // pred_region
        _
      $region36: #{conv_block_forward.3} parent=31 // pred_fallthru
        _
      // Predicated region
      $region37: #{conv_block_forward.3} parent=31 // pred_check
        %p2402 = pneg %p128
      $region38: #{conv_block_forward.3} parent=31 // pred_check_branch
        %2404 = sbr.rel (%p2402) target = $region40
      $region39: #{conv_block_forward.3} parent=31 // pred_region
        _
      $region40: #{conv_block_forward.3} parent=31 // pred_fallthru
        _
    $region32: #{conv_block_forward.3} parent=5 // pred_fallthru
      _
    %p2405 = scmp.le.s32.totalorder 2, %s11
    // Predicated region
    $region41: #{conv_block_forward.3} parent=5 // pred_check
      %p2406 = pneg %p2405
    $region42: #{conv_block_forward.3} parent=5 // pred_check_branch
      %2408 = sbr.rel (%p2406) target = $region44
    $region43: #{conv_block_forward.3} parent=5 // pred_region
      %s2409 = ssub.s32 %s11, 2
      // Predicated region
      $region45: #{conv_block_forward.3} parent=43 // pred_check
        %p2410 = pneg %p108
      $region46: #{conv_block_forward.3} parent=43 // pred_check_branch
        %2412 = sbr.rel (%p2410) target = $region48
      $region47: #{conv_block_forward.3} parent=43 // pred_region
        %p2413 = scmp.lt.s32.totalorder %s17, 1
        %s2414 = scalar_select %p2413, %s17, 1
        %s2415 = smul.addr %s2414, 32
        %s2416 = smul.addr %s2415, 8
        %s2417 = scalar_lea.vmem %s3, %s2416
      $region48: #{conv_block_forward.3} parent=43 // pred_fallthru
        _
      // Predicated region
      $region49: #{conv_block_forward.3} parent=43 // pred_check
        %p2418 = pneg %p134
      $region50: #{conv_block_forward.3} parent=43 // pred_check_branch
        %2420 = sbr.rel (%p2418) target = $region52
      $region51: #{conv_block_forward.3} parent=43 // pred_region
        %p2421 = scmp.lt.s32.totalorder %s17, 1
        %s2422 = scalar_select %p2421, %s17, 1
        %s2423 = smul.addr %s2422, 2
        %s2424 = scalar_lea.vmem %s4, %s2423
      $region52: #{conv_block_forward.3} parent=43 // pred_fallthru
        _
    $region44: #{conv_block_forward.3} parent=5 // pred_fallthru
      _
  $region6: #{conv_block_forward.3} parent=0 // loop_footer
    %s15 = sadd.s32 1, %s11
  $region7: #{conv_block_forward.3} parent=0 // loop_footer_branch
    %10 = sbr.rel target = $region3
  $region8: #{conv_block_forward.3} parent=0 // loop_exit
    _

</llo_original>
